<compile_context>
chip_gen: v6e
topology: v6e:2x2x1
jax: 0.10.0
libtpu: 0.0.40
codegen_flags: <defaults>
</compile_context>

<pallas_src>
import math

import jax
import jax.numpy as jnp
from jax.experimental import pallas as pl
from jax.experimental.pallas import tpu as pltpu

# ---- small-BERT config (scaled-down, consistent with the module's forward) ----
VOCAB = 100
TYPE_VOCAB = 2
MAX_POS = 16
HIDDEN = 32
N_HEADS = 4
HEAD_DIM = HIDDEN // N_HEADS
FFN = 64
N_LAYERS = 2
EPS = 1e-12


# ----------------------------- fused Pallas kernel ------------------------------

def _ln(x, g, b):
    mu = jnp.mean(x, axis=-1, keepdims=True)
    var = jnp.mean(jnp.square(x - mu), axis=-1, keepdims=True)
    return (x - mu) * jax.lax.rsqrt(var + EPS) * g + b


def _bert_fused_kernel(x_ref, m_ref, embg_ref, embb_ref,
                       wqkv_ref, bqkv_ref, wo_ref, bo_ref,
                       ln1g_ref, ln1b_ref, w1_ref, b1_ref,
                       w2_ref, b2_ref, ln2g_ref, ln2b_ref,
                       wa_ref, wm_ref, bout_ref, o_ref):
    """One grid step == one batch element: full 2-layer encoder + pooled head,
    everything resident in VMEM (no HBM round-trips between sub-ops)."""
    scale = 1.0 / math.sqrt(HEAD_DIM)

    # embedding LayerNorm
    x = _ln(x_ref[...], embg_ref[...], embb_ref[...])           # [S, H] f32

    # BERT extended attention mask: (1 - mask) * -10000, broadcast over query rows
    bias = (1.0 - m_ref[0]) * -10000.0                          # [1, S]

    for l in range(N_LAYERS):                                   # static unroll
        # ---- fused QKV projection: one MXU pass, bf16 in / f32 accumulate ----
        qkv = jnp.dot(x.astype(jnp.bfloat16), wqkv_ref[l],
                      preferred_element_type=jnp.float32) + bqkv_ref[l]   # [S, 3H]
        q = qkv[:, 0 * HIDDEN:1 * HIDDEN]
        k = qkv[:, 1 * HIDDEN:2 * HIDDEN]
        v = qkv[:, 2 * HIDDEN:3 * HIDDEN]

        wo_l = wo_ref[l]                                        # [H, H]
        attn = None
        for h in range(N_HEADS):                                # heads stay lane-packed
            sl = slice(h * HEAD_DIM, (h + 1) * HEAD_DIM)
            qh, kh, vh = q[:, sl], k[:, sl], v[:, sl]           # [S, Dh]
            s = jnp.dot(qh, kh.T, preferred_element_type=jnp.float32) * scale + bias
            s = s - jnp.max(s, axis=-1, keepdims=True)
            p = jnp.exp(s)
            p = p * pl.reciprocal(jnp.sum(p, axis=-1, keepdims=True), approx=True)
            ctx = jnp.dot(p, vh, preferred_element_type=jnp.float32)      # [S, Dh]
            # fold output projection per head: concat_h(ctx_h) @ Wo
            #   == sum_h ctx_h @ Wo[h*Dh:(h+1)*Dh, :]
            contrib = jnp.dot(ctx, wo_l[sl, :], preferred_element_type=jnp.float32)
            attn = contrib if attn is None else attn + contrib
        attn = attn + bo_ref[l]

        # ---- residual + LayerNorm (fused epilogue) ----
        x = _ln(attn + x, ln1g_ref[l], ln1b_ref[l])

        # ---- FFN: dense + GELU + dense, residual + LayerNorm ----
        # TODO(synk): HF BERT default GELU is the exact erf form; tanh approximation used.
        h1 = jnp.dot(x.astype(jnp.bfloat16), w1_ref[l],
                     preferred_element_type=jnp.float32) + b1_ref[l]      # [S, FFN]
        h1 = jax.nn.gelu(h1, approximate=True)
        ffn = jnp.dot(h1.astype(jnp.bfloat16), w2_ref[l],
                      preferred_element_type=jnp.float32) + b2_ref[l]     # [S, H]
        x = _ln(ffn + x, ln2g_ref[l], ln2b_ref[l])

    # ---- fused pooling head: mean/max over seq + Linear(2H -> 1) ----
    # (matches torch reference: pooling over all positions, no mask applied)
    apool = jnp.mean(x, axis=0, keepdims=True)                  # [1, H]
    mpool = jnp.max(x, axis=0, keepdims=True)                   # [1, H]
    # TODO(synk): nn.Dropout(0.3) is identity at inference; training-mode masking omitted.
    out = (jnp.dot(apool, wa_ref[...], preferred_element_type=jnp.float32)
           + jnp.dot(mpool, wm_ref[...], preferred_element_type=jnp.float32)
           + bout_ref[...])                                     # [1, 1]
    o_ref[0] = out


# ----------------------------- parameters ---------------------------------------

def init_params(key):
    keys = iter(jax.random.split(key, 64))

    def w(shape):
        return 0.02 * jax.random.normal(next(keys), shape, dtype=jnp.float32)

    def zeros(shape):
        return jnp.zeros(shape, jnp.float32)

    def ones(shape):
        return jnp.ones(shape, jnp.float32)

    params = {
        "word_emb": w((VOCAB, HIDDEN)),
        "pos_emb": w((MAX_POS, HIDDEN)),
        "type_emb": w((TYPE_VOCAB, HIDDEN)),
        "emb_ln_g": ones((HIDDEN,)), "emb_ln_b": zeros((HIDDEN,)),
        "layers": [],
        "out_w": w((2 * HIDDEN, 1)),        # nn.Linear(768*2, 1) analogue
        "out_b": zeros((1,)),
    }
    for _ in range(N_LAYERS):
        params["layers"].append({
            "wq": w((HIDDEN, HIDDEN)), "bq": zeros((HIDDEN,)),
            "wk": w((HIDDEN, HIDDEN)), "bk": zeros((HIDDEN,)),
            "wv": w((HIDDEN, HIDDEN)), "bv": zeros((HIDDEN,)),
            "wo": w((HIDDEN, HIDDEN)), "bo": zeros((HIDDEN,)),
            "ln1_g": ones((HIDDEN,)), "ln1_b": zeros((HIDDEN,)),
            "w1": w((HIDDEN, FFN)), "b1": zeros((FFN,)),
            "w2": w((FFN, HIDDEN)), "b2": zeros((HIDDEN,)),
            "ln2_g": ones((HIDDEN,)), "ln2_b": zeros((HIDDEN,)),
        })
    return params


def pack_params(params):
    """Stack per-layer weights, pre-concatenate QKV, pre-reshape biases once, and
    cast the big matmul weights to bf16 (accumulation stays f32 in-kernel)."""
    ls = params["layers"]
    H = HIDDEN

    def stack(fn, dtype=jnp.float32):
        return jnp.stack([fn(lp) for lp in ls]).astype(dtype)

    return {
        "word_emb": params["word_emb"],
        "pos_emb": params["pos_emb"],
        "type_emb": params["type_emb"],
        "emb_g": params["emb_ln_g"].reshape(1, H),
        "emb_b": params["emb_ln_b"].reshape(1, H),
        "wqkv": stack(lambda lp: jnp.concatenate([lp["wq"], lp["wk"], lp["wv"]], axis=1),
                      jnp.bfloat16),                              # [L, H, 3H]
        "bqkv": stack(lambda lp: jnp.concatenate([lp["bq"], lp["bk"], lp["bv"]])
                      .reshape(1, 3 * H)),                        # [L, 1, 3H]
        "wo": stack(lambda lp: lp["wo"]),                         # [L, H, H]  (f32: sliced per head)
        "bo": stack(lambda lp: lp["bo"].reshape(1, H)),
        "ln1_g": stack(lambda lp: lp["ln1_g"].reshape(1, H)),
        "ln1_b": stack(lambda lp: lp["ln1_b"].reshape(1, H)),
        "w1": stack(lambda lp: lp["w1"], jnp.bfloat16),           # [L, H, FFN]
        "b1": stack(lambda lp: lp["b1"].reshape(1, FFN)),
        "w2": stack(lambda lp: lp["w2"], jnp.bfloat16),           # [L, FFN, H]
        "b2": stack(lambda lp: lp["b2"].reshape(1, H)),
        "ln2_g": stack(lambda lp: lp["ln2_g"].reshape(1, H)),
        "ln2_b": stack(lambda lp: lp["ln2_b"].reshape(1, H)),
        "wa": params["out_w"][:H, :],                             # [H, 1]
        "wm": params["out_w"][H:, :],                             # [H, 1]
        "b_out": params["out_b"].reshape(1, 1),
    }


# ----------------------------- forward pass -------------------------------------

def bert_base_uncased_forward(packed, ids, mask, token_type_ids):
    B, S = ids.shape
    # Embedding lookups are gathers (glue, outside the Pallas hot path).
    x = (jnp.take(packed["word_emb"], ids, axis=0)
         + packed["pos_emb"][None, :S, :]
         + jnp.take(packed["type_emb"], token_type_ids, axis=0))
    x2d = x.reshape(B * S, HIDDEN).astype(jnp.float32)
    maskf = mask.astype(jnp.float32).reshape(B, 1, S)

    L = N_LAYERS

    def full(shape):
        return pl.BlockSpec(shape, lambda b, _s=shape: (0,) * len(_s))

    out = pl.pallas_call(
        _bert_fused_kernel,
        out_shape=jax.ShapeDtypeStruct((B, 1, 1), jnp.float32),
        grid=(B,),
        in_specs=[
            pl.BlockSpec((S, HIDDEN), lambda b: (b, 0)),          # this batch's rows
            pl.BlockSpec((1, 1, S), lambda b: (b, 0, 0)),         # attention mask
            full((1, HIDDEN)), full((1, HIDDEN)),                 # embedding LN
            full((L, HIDDEN, 3 * HIDDEN)), full((L, 1, 3 * HIDDEN)),   # fused QKV
            full((L, HIDDEN, HIDDEN)), full((L, 1, HIDDEN)),      # attn out proj
            full((L, 1, HIDDEN)), full((L, 1, HIDDEN)),           # LN1
            full((L, HIDDEN, FFN)), full((L, 1, FFN)),            # FFN in
            full((L, FFN, HIDDEN)), full((L, 1, HIDDEN)),         # FFN out
            full((L, 1, HIDDEN)), full((L, 1, HIDDEN)),           # LN2
            full((HIDDEN, 1)), full((HIDDEN, 1)), full((1, 1)),   # pooled head
        ],
        out_specs=pl.BlockSpec((1, 1, 1), lambda b: (b, 0, 0)),
        compiler_params=pltpu.CompilerParams(
            dimension_semantics=("parallel",)),                   # v7x: 2 TCs over batch
    )(x2d, maskf,
      packed["emb_g"], packed["emb_b"],
      packed["wqkv"], packed["bqkv"], packed["wo"], packed["bo"],
      packed["ln1_g"], packed["ln1_b"], packed["w1"], packed["b1"],
      packed["w2"], packed["b2"], packed["ln2_g"], packed["ln2_b"],
      packed["wa"], packed["wm"], packed["b_out"])
    return out.reshape(B, 1)                                      # [B, 1]


# ----------------------------- main ----------------------------------------------

if __name__ == "__main__":
    key = jax.random.PRNGKey(0)
    k_params, k_ids = jax.random.split(key)

    B, S = 2, 8
    packed = pack_params(init_params(k_params))
    ids = jax.random.randint(k_ids, (B, S), 0, VOCAB, dtype=jnp.int32)
    mask = jnp.ones((B, S), jnp.int32)
    token_type_ids = jnp.zeros((B, S), jnp.int32)

    fwd = jax.jit(bert_base_uncased_forward)
    out = fwd(packed, ids, mask, token_type_ids)
    out = jax.block_until_ready(out)
    assert out.shape == (B, 1)
    print("KERNEL_OK")
</pallas_src>

<mosaic_0001>
module attributes {stable_mosaic.version = 11 : i64} {
  func.func @_bert_fused_kernel(%arg0: i32, %arg1: memref<8x32xf32, #tpu.memory_space<vmem>>, %arg2: memref<1x1x8xf32, #tpu.memory_space<vmem>>, %arg3: memref<1x32xf32, #tpu.memory_space<vmem>>, %arg4: memref<1x32xf32, #tpu.memory_space<vmem>>, %arg5: memref<2x32x96xbf16, #tpu.memory_space<vmem>>, %arg6: memref<2x1x96xf32, #tpu.memory_space<vmem>>, %arg7: memref<2x32x32xf32, #tpu.memory_space<vmem>>, %arg8: memref<2x1x32xf32, #tpu.memory_space<vmem>>, %arg9: memref<2x1x32xf32, #tpu.memory_space<vmem>>, %arg10: memref<2x1x32xf32, #tpu.memory_space<vmem>>, %arg11: memref<2x32x64xbf16, #tpu.memory_space<vmem>>, %arg12: memref<2x1x64xf32, #tpu.memory_space<vmem>>, %arg13: memref<2x64x32xbf16, #tpu.memory_space<vmem>>, %arg14: memref<2x1x32xf32, #tpu.memory_space<vmem>>, %arg15: memref<2x1x32xf32, #tpu.memory_space<vmem>>, %arg16: memref<2x1x32xf32, #tpu.memory_space<vmem>>, %arg17: memref<32x1xf32, #tpu.memory_space<vmem>>, %arg18: memref<32x1xf32, #tpu.memory_space<vmem>>, %arg19: memref<1x1xf32, #tpu.memory_space<vmem>>, %arg20: memref<1x1x1xf32, #tpu.memory_space<vmem>>) attributes {dimension_semantics = [#tpu.dimension_semantics<parallel>], iteration_bounds = array<i64: 2>, scalar_prefetch = 0 : i64, scratch_operands = 0 : i64, tpu.core_type = #tpu.core_type<tc>, window_params = [{transform_indices = @transform_0, window_bounds = array<i64: 8, 32>}, {transform_indices = @transform_1, window_bounds = array<i64: 1, 1, 8>}, {pipeline_mode = #tpu.pipeline_mode<synchronous>, transform_indices = @transform_2, window_bounds = array<i64: 1, 32>}, {pipeline_mode = #tpu.pipeline_mode<synchronous>, transform_indices = @transform_3, window_bounds = array<i64: 1, 32>}, {pipeline_mode = #tpu.pipeline_mode<synchronous>, transform_indices = @transform_4, window_bounds = array<i64: 2, 32, 96>}, {pipeline_mode = #tpu.pipeline_mode<synchronous>, transform_indices = @transform_5, window_bounds = array<i64: 2, 1, 96>}, {pipeline_mode = #tpu.pipeline_mode<synchronous>, transform_indices = @transform_6, window_bounds = array<i64: 2, 32, 32>}, {pipeline_mode = #tpu.pipeline_mode<synchronous>, transform_indices = @transform_7, window_bounds = array<i64: 2, 1, 32>}, {pipeline_mode = #tpu.pipeline_mode<synchronous>, transform_indices = @transform_8, window_bounds = array<i64: 2, 1, 32>}, {pipeline_mode = #tpu.pipeline_mode<synchronous>, transform_indices = @transform_9, window_bounds = array<i64: 2, 1, 32>}, {pipeline_mode = #tpu.pipeline_mode<synchronous>, transform_indices = @transform_10, window_bounds = array<i64: 2, 32, 64>}, {pipeline_mode = #tpu.pipeline_mode<synchronous>, transform_indices = @transform_11, window_bounds = array<i64: 2, 1, 64>}, {pipeline_mode = #tpu.pipeline_mode<synchronous>, transform_indices = @transform_12, window_bounds = array<i64: 2, 64, 32>}, {pipeline_mode = #tpu.pipeline_mode<synchronous>, transform_indices = @transform_13, window_bounds = array<i64: 2, 1, 32>}, {pipeline_mode = #tpu.pipeline_mode<synchronous>, transform_indices = @transform_14, window_bounds = array<i64: 2, 1, 32>}, {pipeline_mode = #tpu.pipeline_mode<synchronous>, transform_indices = @transform_15, window_bounds = array<i64: 2, 1, 32>}, {pipeline_mode = #tpu.pipeline_mode<synchronous>, transform_indices = @transform_16, window_bounds = array<i64: 32, 1>}, {pipeline_mode = #tpu.pipeline_mode<synchronous>, transform_indices = @transform_17, window_bounds = array<i64: 32, 1>}, {pipeline_mode = #tpu.pipeline_mode<synchronous>, transform_indices = @transform_18, window_bounds = array<i64: 1, 1>}, {transform_indices = @transform_19, window_bounds = array<i64: 1, 1, 1>}]} {
    %c0 = arith.constant 0 : index
    %c0_0 = arith.constant 0 : index
    %0 = vector.load %arg1[%c0, %c0_0] : memref<8x32xf32, #tpu.memory_space<vmem>>, vector<8x32xf32>
    %c0_1 = arith.constant 0 : index
    %c0_2 = arith.constant 0 : index
    %1 = vector.load %arg3[%c0_1, %c0_2] : memref<1x32xf32, #tpu.memory_space<vmem>>, vector<1x32xf32>
    %c0_3 = arith.constant 0 : index
    %c0_4 = arith.constant 0 : index
    %2 = vector.load %arg4[%c0_3, %c0_4] : memref<1x32xf32, #tpu.memory_space<vmem>>, vector<1x32xf32>
    %cst = arith.constant dense<0.000000e+00> : vector<8xf32>
    %3 = vector.multi_reduction <add>, %0, %cst [1] : vector<8x32xf32> to vector<8xf32>
    %4 = vector.shape_cast %3 : vector<8xf32> to vector<8x1xf32>
    %cst_5 = arith.constant 3.200000e+01 : f32
    %5 = vector.broadcast %cst_5 : f32 to vector<8x1xf32>
    %6 = arith.divf %4, %5 : vector<8x1xf32>
    %7 = vector.broadcast %6 : vector<8x1xf32> to vector<8x32xf32>
    %8 = arith.subf %0, %7 : vector<8x32xf32>
    %9 = arith.mulf %8, %8 : vector<8x32xf32>
    %cst_6 = arith.constant dense<0.000000e+00> : vector<8xf32>
    %10 = vector.multi_reduction <add>, %9, %cst_6 [1] : vector<8x32xf32> to vector<8xf32>
    %11 = vector.shape_cast %10 : vector<8xf32> to vector<8x1xf32>
    %cst_7 = arith.constant 3.200000e+01 : f32
    %12 = vector.broadcast %cst_7 : f32 to vector<8x1xf32>
    %13 = arith.divf %11, %12 : vector<8x1xf32>
    %14 = vector.broadcast %6 : vector<8x1xf32> to vector<8x32xf32>
    %15 = arith.subf %0, %14 : vector<8x32xf32>
    %cst_8 = arith.constant 9.99999996E-13 : f32
    %16 = vector.broadcast %cst_8 : f32 to vector<8x1xf32>
    %17 = arith.addf %13, %16 : vector<8x1xf32>
    %18 = math.rsqrt %17 : vector<8x1xf32>
    %19 = vector.broadcast %18 : vector<8x1xf32> to vector<8x32xf32>
    %20 = arith.mulf %15, %19 : vector<8x32xf32>
    %21 = vector.broadcast %1 : vector<1x32xf32> to vector<8x32xf32>
    %22 = arith.mulf %20, %21 : vector<8x32xf32>
    %23 = vector.broadcast %2 : vector<1x32xf32> to vector<8x32xf32>
    %24 = arith.addf %22, %23 : vector<8x32xf32>
    %c0_9 = arith.constant 0 : index
    %c0_10 = arith.constant 0 : index
    %c0_11 = arith.constant 0 : index
    %25 = vector.load %arg2[%c0_9, %c0_10, %c0_11] : memref<1x1x8xf32, #tpu.memory_space<vmem>>, vector<1x1x8xf32>
    %26 = vector.shape_cast %25 : vector<1x1x8xf32> to vector<1x8xf32>
    %cst_12 = arith.constant 1.000000e+00 : f32
    %27 = vector.broadcast %cst_12 : f32 to vector<1x8xf32>
    %28 = arith.subf %27, %26 : vector<1x8xf32>
    %cst_13 = arith.constant -1.000000e+04 : f32
    %29 = vector.broadcast %cst_13 : f32 to vector<1x8xf32>
    %30 = arith.mulf %28, %29 : vector<1x8xf32>
    %31 = arith.truncf %24 : vector<8x32xf32> to vector<8x32xbf16>
    %c0_14 = arith.constant 0 : index
    %c0_15 = arith.constant 0 : index
    %c0_16 = arith.constant 0 : index
    %32 = vector.load %arg5[%c0_14, %c0_15, %c0_16] : memref<2x32x96xbf16, #tpu.memory_space<vmem>>, vector<1x32x96xbf16>
    %33 = vector.shape_cast %32 : vector<1x32x96xbf16> to vector<32x96xbf16>
    %cst_17 = arith.constant dense<0.000000e+00> : vector<8x96xf32>
    %34 = tpu.matmul %31, %33, %cst_17 {dimension_numbers = #tpu.dot_dimension_numbers<[1], [0], [0], [1], [0, 0, 1, 1], [], []>} : vector<8x32xbf16>, vector<32x96xbf16>, vector<8x96xf32> -> vector<8x96xf32>
    %c0_18 = arith.constant 0 : index
    %c0_19 = arith.constant 0 : index
    %c0_20 = arith.constant 0 : index
    %35 = vector.load %arg6[%c0_18, %c0_19, %c0_20] : memref<2x1x96xf32, #tpu.memory_space<vmem>>, vector<1x1x96xf32>
    %36 = vector.shape_cast %35 : vector<1x1x96xf32> to vector<1x96xf32>
    %37 = vector.broadcast %36 : vector<1x96xf32> to vector<8x96xf32>
    %38 = arith.addf %34, %37 : vector<8x96xf32>
    %39 = vector.extract_strided_slice %38 {offsets = [0, 0], sizes = [8, 32], strides = [1, 1]} : vector<8x96xf32> to vector<8x32xf32>
    %40 = vector.extract_strided_slice %38 {offsets = [0, 32], sizes = [8, 32], strides = [1, 1]} : vector<8x96xf32> to vector<8x32xf32>
    %41 = vector.extract_strided_slice %38 {offsets = [0, 64], sizes = [8, 32], strides = [1, 1]} : vector<8x96xf32> to vector<8x32xf32>
    %c0_21 = arith.constant 0 : index
    %c0_22 = arith.constant 0 : index
    %c0_23 = arith.constant 0 : index
    %42 = vector.load %arg7[%c0_21, %c0_22, %c0_23] : memref<2x32x32xf32, #tpu.memory_space<vmem>>, vector<1x32x32xf32>
    %43 = vector.shape_cast %42 : vector<1x32x32xf32> to vector<32x32xf32>
    %44 = vector.extract_strided_slice %39 {offsets = [0, 0], sizes = [8, 8], strides = [1, 1]} : vector<8x32xf32> to vector<8x8xf32>
    %45 = vector.extract_strided_slice %40 {offsets = [0, 0], sizes = [8, 8], strides = [1, 1]} : vector<8x32xf32> to vector<8x8xf32>
    %46 = vector.extract_strided_slice %41 {offsets = [0, 0], sizes = [8, 8], strides = [1, 1]} : vector<8x32xf32> to vector<8x8xf32>
    %47 = tpu.transpose %45, [1, 0] : vector<8x8xf32> -> vector<8x8xf32>
    %cst_24 = arith.constant dense<0.000000e+00> : vector<8x8xf32>
    %48 = tpu.matmul %44, %47, %cst_24 {dimension_numbers = #tpu.dot_dimension_numbers<[1], [0], [0], [1], [0, 0, 1, 1], [], []>} : vector<8x8xf32>, vector<8x8xf32>, vector<8x8xf32> -> vector<8x8xf32>
    %cst_25 = arith.constant 0.353553385 : f32
    %49 = vector.broadcast %cst_25 : f32 to vector<8x8xf32>
    %50 = arith.mulf %48, %49 : vector<8x8xf32>
    %51 = vector.broadcast %30 : vector<1x8xf32> to vector<8x8xf32>
    %52 = arith.addf %50, %51 : vector<8x8xf32>
    %cst_26 = arith.constant dense<0xFF800000> : vector<8xf32>
    %53 = vector.multi_reduction <maximumf>, %52, %cst_26 [1] : vector<8x8xf32> to vector<8xf32>
    %54 = vector.shape_cast %53 : vector<8xf32> to vector<8x1xf32>
    %55 = vector.broadcast %54 : vector<8x1xf32> to vector<8x8xf32>
    %56 = arith.subf %52, %55 : vector<8x8xf32>
    %57 = math.exp %56 : vector<8x8xf32>
    %cst_27 = arith.constant dense<0.000000e+00> : vector<8xf32>
    %58 = vector.multi_reduction <add>, %57, %cst_27 [1] : vector<8x8xf32> to vector<8xf32>
    %59 = vector.shape_cast %58 : vector<8xf32> to vector<8x1xf32>
    %60 = tpu.reciprocal %59 {approx = true} : vector<8x1xf32> -> vector<8x1xf32>
    %61 = vector.broadcast %60 : vector<8x1xf32> to vector<8x8xf32>
    %62 = arith.mulf %57, %61 : vector<8x8xf32>
    %cst_28 = arith.constant dense<0.000000e+00> : vector<8x8xf32>
    %63 = tpu.matmul %62, %46, %cst_28 {dimension_numbers = #tpu.dot_dimension_numbers<[1], [0], [0], [1], [0, 0, 1, 1], [], []>} : vector<8x8xf32>, vector<8x8xf32>, vector<8x8xf32> -> vector<8x8xf32>
    %64 = vector.extract_strided_slice %43 {offsets = [0, 0], sizes = [8, 32], strides = [1, 1]} : vector<32x32xf32> to vector<8x32xf32>
    %cst_29 = arith.constant dense<0.000000e+00> : vector<8x32xf32>
    %65 = tpu.matmul %63, %64, %cst_29 {dimension_numbers = #tpu.dot_dimension_numbers<[1], [0], [0], [1], [0, 0, 1, 1], [], []>} : vector<8x8xf32>, vector<8x32xf32>, vector<8x32xf32> -> vector<8x32xf32>
    %66 = vector.extract_strided_slice %39 {offsets = [0, 8], sizes = [8, 8], strides = [1, 1]} : vector<8x32xf32> to vector<8x8xf32>
    %67 = vector.extract_strided_slice %40 {offsets = [0, 8], sizes = [8, 8], strides = [1, 1]} : vector<8x32xf32> to vector<8x8xf32>
    %68 = vector.extract_strided_slice %41 {offsets = [0, 8], sizes = [8, 8], strides = [1, 1]} : vector<8x32xf32> to vector<8x8xf32>
    %69 = tpu.transpose %67, [1, 0] : vector<8x8xf32> -> vector<8x8xf32>
    %cst_30 = arith.constant dense<0.000000e+00> : vector<8x8xf32>
    %70 = tpu.matmul %66, %69, %cst_30 {dimension_numbers = #tpu.dot_dimension_numbers<[1], [0], [0], [1], [0, 0, 1, 1], [], []>} : vector<8x8xf32>, vector<8x8xf32>, vector<8x8xf32> -> vector<8x8xf32>
    %cst_31 = arith.constant 0.353553385 : f32
    %71 = vector.broadcast %cst_31 : f32 to vector<8x8xf32>
    %72 = arith.mulf %70, %71 : vector<8x8xf32>
    %73 = vector.broadcast %30 : vector<1x8xf32> to vector<8x8xf32>
    %74 = arith.addf %72, %73 : vector<8x8xf32>
    %cst_32 = arith.constant dense<0xFF800000> : vector<8xf32>
    %75 = vector.multi_reduction <maximumf>, %74, %cst_32 [1] : vector<8x8xf32> to vector<8xf32>
    %76 = vector.shape_cast %75 : vector<8xf32> to vector<8x1xf32>
    %77 = vector.broadcast %76 : vector<8x1xf32> to vector<8x8xf32>
    %78 = arith.subf %74, %77 : vector<8x8xf32>
    %79 = math.exp %78 : vector<8x8xf32>
    %cst_33 = arith.constant dense<0.000000e+00> : vector<8xf32>
    %80 = vector.multi_reduction <add>, %79, %cst_33 [1] : vector<8x8xf32> to vector<8xf32>
    %81 = vector.shape_cast %80 : vector<8xf32> to vector<8x1xf32>
    %82 = tpu.reciprocal %81 {approx = true} : vector<8x1xf32> -> vector<8x1xf32>
    %83 = vector.broadcast %82 : vector<8x1xf32> to vector<8x8xf32>
    %84 = arith.mulf %79, %83 : vector<8x8xf32>
    %cst_34 = arith.constant dense<0.000000e+00> : vector<8x8xf32>
    %85 = tpu.matmul %84, %68, %cst_34 {dimension_numbers = #tpu.dot_dimension_numbers<[1], [0], [0], [1], [0, 0, 1, 1], [], []>} : vector<8x8xf32>, vector<8x8xf32>, vector<8x8xf32> -> vector<8x8xf32>
    %86 = vector.extract_strided_slice %43 {offsets = [8, 0], sizes = [8, 32], strides = [1, 1]} : vector<32x32xf32> to vector<8x32xf32>
    %cst_35 = arith.constant dense<0.000000e+00> : vector<8x32xf32>
    %87 = tpu.matmul %85, %86, %cst_35 {dimension_numbers = #tpu.dot_dimension_numbers<[1], [0], [0], [1], [0, 0, 1, 1], [], []>} : vector<8x8xf32>, vector<8x32xf32>, vector<8x32xf32> -> vector<8x32xf32>
    %88 = arith.addf %65, %87 : vector<8x32xf32>
    %89 = vector.extract_strided_slice %39 {offsets = [0, 16], sizes = [8, 8], strides = [1, 1]} : vector<8x32xf32> to vector<8x8xf32>
    %90 = vector.extract_strided_slice %40 {offsets = [0, 16], sizes = [8, 8], strides = [1, 1]} : vector<8x32xf32> to vector<8x8xf32>
    %91 = vector.extract_strided_slice %41 {offsets = [0, 16], sizes = [8, 8], strides = [1, 1]} : vector<8x32xf32> to vector<8x8xf32>
    %92 = tpu.transpose %90, [1, 0] : vector<8x8xf32> -> vector<8x8xf32>
    %cst_36 = arith.constant dense<0.000000e+00> : vector<8x8xf32>
    %93 = tpu.matmul %89, %92, %cst_36 {dimension_numbers = #tpu.dot_dimension_numbers<[1], [0], [0], [1], [0, 0, 1, 1], [], []>} : vector<8x8xf32>, vector<8x8xf32>, vector<8x8xf32> -> vector<8x8xf32>
    %cst_37 = arith.constant 0.353553385 : f32
    %94 = vector.broadcast %cst_37 : f32 to vector<8x8xf32>
    %95 = arith.mulf %93, %94 : vector<8x8xf32>
    %96 = vector.broadcast %30 : vector<1x8xf32> to vector<8x8xf32>
    %97 = arith.addf %95, %96 : vector<8x8xf32>
    %cst_38 = arith.constant dense<0xFF800000> : vector<8xf32>
    %98 = vector.multi_reduction <maximumf>, %97, %cst_38 [1] : vector<8x8xf32> to vector<8xf32>
    %99 = vector.shape_cast %98 : vector<8xf32> to vector<8x1xf32>
    %100 = vector.broadcast %99 : vector<8x1xf32> to vector<8x8xf32>
    %101 = arith.subf %97, %100 : vector<8x8xf32>
    %102 = math.exp %101 : vector<8x8xf32>
    %cst_39 = arith.constant dense<0.000000e+00> : vector<8xf32>
    %103 = vector.multi_reduction <add>, %102, %cst_39 [1] : vector<8x8xf32> to vector<8xf32>
    %104 = vector.shape_cast %103 : vector<8xf32> to vector<8x1xf32>
    %105 = tpu.reciprocal %104 {approx = true} : vector<8x1xf32> -> vector<8x1xf32>
    %106 = vector.broadcast %105 : vector<8x1xf32> to vector<8x8xf32>
    %107 = arith.mulf %102, %106 : vector<8x8xf32>
    %cst_40 = arith.constant dense<0.000000e+00> : vector<8x8xf32>
    %108 = tpu.matmul %107, %91, %cst_40 {dimension_numbers = #tpu.dot_dimension_numbers<[1], [0], [0], [1], [0, 0, 1, 1], [], []>} : vector<8x8xf32>, vector<8x8xf32>, vector<8x8xf32> -> vector<8x8xf32>
    %109 = vector.extract_strided_slice %43 {offsets = [16, 0], sizes = [8, 32], strides = [1, 1]} : vector<32x32xf32> to vector<8x32xf32>
    %cst_41 = arith.constant dense<0.000000e+00> : vector<8x32xf32>
    %110 = tpu.matmul %108, %109, %cst_41 {dimension_numbers = #tpu.dot_dimension_numbers<[1], [0], [0], [1], [0, 0, 1, 1], [], []>} : vector<8x8xf32>, vector<8x32xf32>, vector<8x32xf32> -> vector<8x32xf32>
    %111 = arith.addf %88, %110 : vector<8x32xf32>
    %112 = vector.extract_strided_slice %39 {offsets = [0, 24], sizes = [8, 8], strides = [1, 1]} : vector<8x32xf32> to vector<8x8xf32>
    %113 = vector.extract_strided_slice %40 {offsets = [0, 24], sizes = [8, 8], strides = [1, 1]} : vector<8x32xf32> to vector<8x8xf32>
    %114 = vector.extract_strided_slice %41 {offsets = [0, 24], sizes = [8, 8], strides = [1, 1]} : vector<8x32xf32> to vector<8x8xf32>
    %115 = tpu.transpose %113, [1, 0] : vector<8x8xf32> -> vector<8x8xf32>
    %cst_42 = arith.constant dense<0.000000e+00> : vector<8x8xf32>
    %116 = tpu.matmul %112, %115, %cst_42 {dimension_numbers = #tpu.dot_dimension_numbers<[1], [0], [0], [1], [0, 0, 1, 1], [], []>} : vector<8x8xf32>, vector<8x8xf32>, vector<8x8xf32> -> vector<8x8xf32>
    %cst_43 = arith.constant 0.353553385 : f32
    %117 = vector.broadcast %cst_43 : f32 to vector<8x8xf32>
    %118 = arith.mulf %116, %117 : vector<8x8xf32>
    %119 = vector.broadcast %30 : vector<1x8xf32> to vector<8x8xf32>
    %120 = arith.addf %118, %119 : vector<8x8xf32>
    %cst_44 = arith.constant dense<0xFF800000> : vector<8xf32>
    %121 = vector.multi_reduction <maximumf>, %120, %cst_44 [1] : vector<8x8xf32> to vector<8xf32>
    %122 = vector.shape_cast %121 : vector<8xf32> to vector<8x1xf32>
    %123 = vector.broadcast %122 : vector<8x1xf32> to vector<8x8xf32>
    %124 = arith.subf %120, %123 : vector<8x8xf32>
    %125 = math.exp %124 : vector<8x8xf32>
    %cst_45 = arith.constant dense<0.000000e+00> : vector<8xf32>
    %126 = vector.multi_reduction <add>, %125, %cst_45 [1] : vector<8x8xf32> to vector<8xf32>
    %127 = vector.shape_cast %126 : vector<8xf32> to vector<8x1xf32>
    %128 = tpu.reciprocal %127 {approx = true} : vector<8x1xf32> -> vector<8x1xf32>
    %129 = vector.broadcast %128 : vector<8x1xf32> to vector<8x8xf32>
    %130 = arith.mulf %125, %129 : vector<8x8xf32>
    %cst_46 = arith.constant dense<0.000000e+00> : vector<8x8xf32>
    %131 = tpu.matmul %130, %114, %cst_46 {dimension_numbers = #tpu.dot_dimension_numbers<[1], [0], [0], [1], [0, 0, 1, 1], [], []>} : vector<8x8xf32>, vector<8x8xf32>, vector<8x8xf32> -> vector<8x8xf32>
    %132 = vector.extract_strided_slice %43 {offsets = [24, 0], sizes = [8, 32], strides = [1, 1]} : vector<32x32xf32> to vector<8x32xf32>
    %cst_47 = arith.constant dense<0.000000e+00> : vector<8x32xf32>
    %133 = tpu.matmul %131, %132, %cst_47 {dimension_numbers = #tpu.dot_dimension_numbers<[1], [0], [0], [1], [0, 0, 1, 1], [], []>} : vector<8x8xf32>, vector<8x32xf32>, vector<8x32xf32> -> vector<8x32xf32>
    %134 = arith.addf %111, %133 : vector<8x32xf32>
    %c0_48 = arith.constant 0 : index
    %c0_49 = arith.constant 0 : index
    %c0_50 = arith.constant 0 : index
    %135 = vector.load %arg8[%c0_48, %c0_49, %c0_50] : memref<2x1x32xf32, #tpu.memory_space<vmem>>, vector<1x1x32xf32>
    %136 = vector.shape_cast %135 : vector<1x1x32xf32> to vector<1x32xf32>
    %137 = vector.broadcast %136 : vector<1x32xf32> to vector<8x32xf32>
    %138 = arith.addf %134, %137 : vector<8x32xf32>
    %139 = arith.addf %138, %24 : vector<8x32xf32>
    %c0_51 = arith.constant 0 : index
    %c0_52 = arith.constant 0 : index
    %c0_53 = arith.constant 0 : index
    %140 = vector.load %arg9[%c0_51, %c0_52, %c0_53] : memref<2x1x32xf32, #tpu.memory_space<vmem>>, vector<1x1x32xf32>
    %141 = vector.shape_cast %140 : vector<1x1x32xf32> to vector<1x32xf32>
    %c0_54 = arith.constant 0 : index
    %c0_55 = arith.constant 0 : index
    %c0_56 = arith.constant 0 : index
    %142 = vector.load %arg10[%c0_54, %c0_55, %c0_56] : memref<2x1x32xf32, #tpu.memory_space<vmem>>, vector<1x1x32xf32>
    %143 = vector.shape_cast %142 : vector<1x1x32xf32> to vector<1x32xf32>
    %cst_57 = arith.constant dense<0.000000e+00> : vector<8xf32>
    %144 = vector.multi_reduction <add>, %139, %cst_57 [1] : vector<8x32xf32> to vector<8xf32>
    %145 = vector.shape_cast %144 : vector<8xf32> to vector<8x1xf32>
    %cst_58 = arith.constant 3.200000e+01 : f32
    %146 = vector.broadcast %cst_58 : f32 to vector<8x1xf32>
    %147 = arith.divf %145, %146 : vector<8x1xf32>
    %148 = vector.broadcast %147 : vector<8x1xf32> to vector<8x32xf32>
    %149 = arith.subf %139, %148 : vector<8x32xf32>
    %150 = arith.mulf %149, %149 : vector<8x32xf32>
    %cst_59 = arith.constant dense<0.000000e+00> : vector<8xf32>
    %151 = vector.multi_reduction <add>, %150, %cst_59 [1] : vector<8x32xf32> to vector<8xf32>
    %152 = vector.shape_cast %151 : vector<8xf32> to vector<8x1xf32>
    %cst_60 = arith.constant 3.200000e+01 : f32
    %153 = vector.broadcast %cst_60 : f32 to vector<8x1xf32>
    %154 = arith.divf %152, %153 : vector<8x1xf32>
    %155 = vector.broadcast %147 : vector<8x1xf32> to vector<8x32xf32>
    %156 = arith.subf %139, %155 : vector<8x32xf32>
    %cst_61 = arith.constant 9.99999996E-13 : f32
    %157 = vector.broadcast %cst_61 : f32 to vector<8x1xf32>
    %158 = arith.addf %154, %157 : vector<8x1xf32>
    %159 = math.rsqrt %158 : vector<8x1xf32>
    %160 = vector.broadcast %159 : vector<8x1xf32> to vector<8x32xf32>
    %161 = arith.mulf %156, %160 : vector<8x32xf32>
    %162 = vector.broadcast %141 : vector<1x32xf32> to vector<8x32xf32>
    %163 = arith.mulf %161, %162 : vector<8x32xf32>
    %164 = vector.broadcast %143 : vector<1x32xf32> to vector<8x32xf32>
    %165 = arith.addf %163, %164 : vector<8x32xf32>
    %166 = arith.truncf %165 : vector<8x32xf32> to vector<8x32xbf16>
    %c0_62 = arith.constant 0 : index
    %c0_63 = arith.constant 0 : index
    %c0_64 = arith.constant 0 : index
    %167 = vector.load %arg11[%c0_62, %c0_63, %c0_64] : memref<2x32x64xbf16, #tpu.memory_space<vmem>>, vector<1x32x64xbf16>
    %168 = vector.shape_cast %167 : vector<1x32x64xbf16> to vector<32x64xbf16>
    %cst_65 = arith.constant dense<0.000000e+00> : vector<8x64xf32>
    %169 = tpu.matmul %166, %168, %cst_65 {dimension_numbers = #tpu.dot_dimension_numbers<[1], [0], [0], [1], [0, 0, 1, 1], [], []>} : vector<8x32xbf16>, vector<32x64xbf16>, vector<8x64xf32> -> vector<8x64xf32>
    %c0_66 = arith.constant 0 : index
    %c0_67 = arith.constant 0 : index
    %c0_68 = arith.constant 0 : index
    %170 = vector.load %arg12[%c0_66, %c0_67, %c0_68] : memref<2x1x64xf32, #tpu.memory_space<vmem>>, vector<1x1x64xf32>
    %171 = vector.shape_cast %170 : vector<1x1x64xf32> to vector<1x64xf32>
    %172 = vector.broadcast %171 : vector<1x64xf32> to vector<8x64xf32>
    %173 = arith.addf %169, %172 : vector<8x64xf32>
    %174 = arith.mulf %173, %173 : vector<8x64xf32>
    %175 = arith.mulf %173, %174 : vector<8x64xf32>
    %cst_69 = arith.constant 4.471500e-02 : f32
    %176 = vector.broadcast %cst_69 : f32 to vector<8x64xf32>
    %177 = arith.mulf %176, %175 : vector<8x64xf32>
    %178 = arith.addf %173, %177 : vector<8x64xf32>
    %cst_70 = arith.constant 0.797884583 : f32
    %179 = vector.broadcast %cst_70 : f32 to vector<8x64xf32>
    %180 = arith.mulf %179, %178 : vector<8x64xf32>
    %181 = math.tanh %180 : vector<8x64xf32>
    %cst_71 = arith.constant 1.000000e+00 : f32
    %182 = vector.broadcast %cst_71 : f32 to vector<8x64xf32>
    %183 = arith.addf %182, %181 : vector<8x64xf32>
    %cst_72 = arith.constant 5.000000e-01 : f32
    %184 = vector.broadcast %cst_72 : f32 to vector<8x64xf32>
    %185 = arith.mulf %184, %183 : vector<8x64xf32>
    %186 = arith.mulf %173, %185 : vector<8x64xf32>
    %187 = arith.truncf %186 : vector<8x64xf32> to vector<8x64xbf16>
    %c0_73 = arith.constant 0 : index
    %c0_74 = arith.constant 0 : index
    %c0_75 = arith.constant 0 : index
    %188 = vector.load %arg13[%c0_73, %c0_74, %c0_75] : memref<2x64x32xbf16, #tpu.memory_space<vmem>>, vector<1x64x32xbf16>
    %189 = vector.shape_cast %188 : vector<1x64x32xbf16> to vector<64x32xbf16>
    %cst_76 = arith.constant dense<0.000000e+00> : vector<8x32xf32>
    %190 = tpu.matmul %187, %189, %cst_76 {dimension_numbers = #tpu.dot_dimension_numbers<[1], [0], [0], [1], [0, 0, 1, 1], [], []>} : vector<8x64xbf16>, vector<64x32xbf16>, vector<8x32xf32> -> vector<8x32xf32>
    %c0_77 = arith.constant 0 : index
    %c0_78 = arith.constant 0 : index
    %c0_79 = arith.constant 0 : index
    %191 = vector.load %arg14[%c0_77, %c0_78, %c0_79] : memref<2x1x32xf32, #tpu.memory_space<vmem>>, vector<1x1x32xf32>
    %192 = vector.shape_cast %191 : vector<1x1x32xf32> to vector<1x32xf32>
    %193 = vector.broadcast %192 : vector<1x32xf32> to vector<8x32xf32>
    %194 = arith.addf %190, %193 : vector<8x32xf32>
    %195 = arith.addf %194, %165 : vector<8x32xf32>
    %c0_80 = arith.constant 0 : index
    %c0_81 = arith.constant 0 : index
    %c0_82 = arith.constant 0 : index
    %196 = vector.load %arg15[%c0_80, %c0_81, %c0_82] : memref<2x1x32xf32, #tpu.memory_space<vmem>>, vector<1x1x32xf32>
    %197 = vector.shape_cast %196 : vector<1x1x32xf32> to vector<1x32xf32>
    %c0_83 = arith.constant 0 : index
    %c0_84 = arith.constant 0 : index
    %c0_85 = arith.constant 0 : index
    %198 = vector.load %arg16[%c0_83, %c0_84, %c0_85] : memref<2x1x32xf32, #tpu.memory_space<vmem>>, vector<1x1x32xf32>
    %199 = vector.shape_cast %198 : vector<1x1x32xf32> to vector<1x32xf32>
    %cst_86 = arith.constant dense<0.000000e+00> : vector<8xf32>
    %200 = vector.multi_reduction <add>, %195, %cst_86 [1] : vector<8x32xf32> to vector<8xf32>
    %201 = vector.shape_cast %200 : vector<8xf32> to vector<8x1xf32>
    %cst_87 = arith.constant 3.200000e+01 : f32
    %202 = vector.broadcast %cst_87 : f32 to vector<8x1xf32>
    %203 = arith.divf %201, %202 : vector<8x1xf32>
    %204 = vector.broadcast %203 : vector<8x1xf32> to vector<8x32xf32>
    %205 = arith.subf %195, %204 : vector<8x32xf32>
    %206 = arith.mulf %205, %205 : vector<8x32xf32>
    %cst_88 = arith.constant dense<0.000000e+00> : vector<8xf32>
    %207 = vector.multi_reduction <add>, %206, %cst_88 [1] : vector<8x32xf32> to vector<8xf32>
    %208 = vector.shape_cast %207 : vector<8xf32> to vector<8x1xf32>
    %cst_89 = arith.constant 3.200000e+01 : f32
    %209 = vector.broadcast %cst_89 : f32 to vector<8x1xf32>
    %210 = arith.divf %208, %209 : vector<8x1xf32>
    %211 = vector.broadcast %203 : vector<8x1xf32> to vector<8x32xf32>
    %212 = arith.subf %195, %211 : vector<8x32xf32>
    %cst_90 = arith.constant 9.99999996E-13 : f32
    %213 = vector.broadcast %cst_90 : f32 to vector<8x1xf32>
    %214 = arith.addf %210, %213 : vector<8x1xf32>
    %215 = math.rsqrt %214 : vector<8x1xf32>
    %216 = vector.broadcast %215 : vector<8x1xf32> to vector<8x32xf32>
    %217 = arith.mulf %212, %216 : vector<8x32xf32>
    %218 = vector.broadcast %197 : vector<1x32xf32> to vector<8x32xf32>
    %219 = arith.mulf %217, %218 : vector<8x32xf32>
    %220 = vector.broadcast %199 : vector<1x32xf32> to vector<8x32xf32>
    %221 = arith.addf %219, %220 : vector<8x32xf32>
    %222 = arith.truncf %221 : vector<8x32xf32> to vector<8x32xbf16>
    %c1 = arith.constant 1 : index
    %c0_91 = arith.constant 0 : index
    %c0_92 = arith.constant 0 : index
    %223 = vector.load %arg5[%c1, %c0_91, %c0_92] : memref<2x32x96xbf16, #tpu.memory_space<vmem>>, vector<1x32x96xbf16>
    %224 = vector.shape_cast %223 : vector<1x32x96xbf16> to vector<32x96xbf16>
    %cst_93 = arith.constant dense<0.000000e+00> : vector<8x96xf32>
    %225 = tpu.matmul %222, %224, %cst_93 {dimension_numbers = #tpu.dot_dimension_numbers<[1], [0], [0], [1], [0, 0, 1, 1], [], []>} : vector<8x32xbf16>, vector<32x96xbf16>, vector<8x96xf32> -> vector<8x96xf32>
    %c1_94 = arith.constant 1 : index
    %c0_95 = arith.constant 0 : index
    %c0_96 = arith.constant 0 : index
    %226 = vector.load %arg6[%c1_94, %c0_95, %c0_96] : memref<2x1x96xf32, #tpu.memory_space<vmem>>, vector<1x1x96xf32>
    %227 = vector.shape_cast %226 : vector<1x1x96xf32> to vector<1x96xf32>
    %228 = vector.broadcast %227 : vector<1x96xf32> to vector<8x96xf32>
    %229 = arith.addf %225, %228 : vector<8x96xf32>
    %230 = vector.extract_strided_slice %229 {offsets = [0, 0], sizes = [8, 32], strides = [1, 1]} : vector<8x96xf32> to vector<8x32xf32>
    %231 = vector.extract_strided_slice %229 {offsets = [0, 32], sizes = [8, 32], strides = [1, 1]} : vector<8x96xf32> to vector<8x32xf32>
    %232 = vector.extract_strided_slice %229 {offsets = [0, 64], sizes = [8, 32], strides = [1, 1]} : vector<8x96xf32> to vector<8x32xf32>
    %c1_97 = arith.constant 1 : index
    %c0_98 = arith.constant 0 : index
    %c0_99 = arith.constant 0 : index
    %233 = vector.load %arg7[%c1_97, %c0_98, %c0_99] : memref<2x32x32xf32, #tpu.memory_space<vmem>>, vector<1x32x32xf32>
    %234 = vector.shape_cast %233 : vector<1x32x32xf32> to vector<32x32xf32>
    %235 = vector.extract_strided_slice %230 {offsets = [0, 0], sizes = [8, 8], strides = [1, 1]} : vector<8x32xf32> to vector<8x8xf32>
    %236 = vector.extract_strided_slice %231 {offsets = [0, 0], sizes = [8, 8], strides = [1, 1]} : vector<8x32xf32> to vector<8x8xf32>
    %237 = vector.extract_strided_slice %232 {offsets = [0, 0], sizes = [8, 8], strides = [1, 1]} : vector<8x32xf32> to vector<8x8xf32>
    %238 = tpu.transpose %236, [1, 0] : vector<8x8xf32> -> vector<8x8xf32>
    %cst_100 = arith.constant dense<0.000000e+00> : vector<8x8xf32>
    %239 = tpu.matmul %235, %238, %cst_100 {dimension_numbers = #tpu.dot_dimension_numbers<[1], [0], [0], [1], [0, 0, 1, 1], [], []>} : vector<8x8xf32>, vector<8x8xf32>, vector<8x8xf32> -> vector<8x8xf32>
    %cst_101 = arith.constant 0.353553385 : f32
    %240 = vector.broadcast %cst_101 : f32 to vector<8x8xf32>
    %241 = arith.mulf %239, %240 : vector<8x8xf32>
    %242 = vector.broadcast %30 : vector<1x8xf32> to vector<8x8xf32>
    %243 = arith.addf %241, %242 : vector<8x8xf32>
    %cst_102 = arith.constant dense<0xFF800000> : vector<8xf32>
    %244 = vector.multi_reduction <maximumf>, %243, %cst_102 [1] : vector<8x8xf32> to vector<8xf32>
    %245 = vector.shape_cast %244 : vector<8xf32> to vector<8x1xf32>
    %246 = vector.broadcast %245 : vector<8x1xf32> to vector<8x8xf32>
    %247 = arith.subf %243, %246 : vector<8x8xf32>
    %248 = math.exp %247 : vector<8x8xf32>
    %cst_103 = arith.constant dense<0.000000e+00> : vector<8xf32>
    %249 = vector.multi_reduction <add>, %248, %cst_103 [1] : vector<8x8xf32> to vector<8xf32>
    %250 = vector.shape_cast %249 : vector<8xf32> to vector<8x1xf32>
    %251 = tpu.reciprocal %250 {approx = true} : vector<8x1xf32> -> vector<8x1xf32>
    %252 = vector.broadcast %251 : vector<8x1xf32> to vector<8x8xf32>
    %253 = arith.mulf %248, %252 : vector<8x8xf32>
    %cst_104 = arith.constant dense<0.000000e+00> : vector<8x8xf32>
    %254 = tpu.matmul %253, %237, %cst_104 {dimension_numbers = #tpu.dot_dimension_numbers<[1], [0], [0], [1], [0, 0, 1, 1], [], []>} : vector<8x8xf32>, vector<8x8xf32>, vector<8x8xf32> -> vector<8x8xf32>
    %255 = vector.extract_strided_slice %234 {offsets = [0, 0], sizes = [8, 32], strides = [1, 1]} : vector<32x32xf32> to vector<8x32xf32>
    %cst_105 = arith.constant dense<0.000000e+00> : vector<8x32xf32>
    %256 = tpu.matmul %254, %255, %cst_105 {dimension_numbers = #tpu.dot_dimension_numbers<[1], [0], [0], [1], [0, 0, 1, 1], [], []>} : vector<8x8xf32>, vector<8x32xf32>, vector<8x32xf32> -> vector<8x32xf32>
    %257 = vector.extract_strided_slice %230 {offsets = [0, 8], sizes = [8, 8], strides = [1, 1]} : vector<8x32xf32> to vector<8x8xf32>
    %258 = vector.extract_strided_slice %231 {offsets = [0, 8], sizes = [8, 8], strides = [1, 1]} : vector<8x32xf32> to vector<8x8xf32>
    %259 = vector.extract_strided_slice %232 {offsets = [0, 8], sizes = [8, 8], strides = [1, 1]} : vector<8x32xf32> to vector<8x8xf32>
    %260 = tpu.transpose %258, [1, 0] : vector<8x8xf32> -> vector<8x8xf32>
    %cst_106 = arith.constant dense<0.000000e+00> : vector<8x8xf32>
    %261 = tpu.matmul %257, %260, %cst_106 {dimension_numbers = #tpu.dot_dimension_numbers<[1], [0], [0], [1], [0, 0, 1, 1], [], []>} : vector<8x8xf32>, vector<8x8xf32>, vector<8x8xf32> -> vector<8x8xf32>
    %cst_107 = arith.constant 0.353553385 : f32
    %262 = vector.broadcast %cst_107 : f32 to vector<8x8xf32>
    %263 = arith.mulf %261, %262 : vector<8x8xf32>
    %264 = vector.broadcast %30 : vector<1x8xf32> to vector<8x8xf32>
    %265 = arith.addf %263, %264 : vector<8x8xf32>
    %cst_108 = arith.constant dense<0xFF800000> : vector<8xf32>
    %266 = vector.multi_reduction <maximumf>, %265, %cst_108 [1] : vector<8x8xf32> to vector<8xf32>
    %267 = vector.shape_cast %266 : vector<8xf32> to vector<8x1xf32>
    %268 = vector.broadcast %267 : vector<8x1xf32> to vector<8x8xf32>
    %269 = arith.subf %265, %268 : vector<8x8xf32>
    %270 = math.exp %269 : vector<8x8xf32>
    %cst_109 = arith.constant dense<0.000000e+00> : vector<8xf32>
    %271 = vector.multi_reduction <add>, %270, %cst_109 [1] : vector<8x8xf32> to vector<8xf32>
    %272 = vector.shape_cast %271 : vector<8xf32> to vector<8x1xf32>
    %273 = tpu.reciprocal %272 {approx = true} : vector<8x1xf32> -> vector<8x1xf32>
    %274 = vector.broadcast %273 : vector<8x1xf32> to vector<8x8xf32>
    %275 = arith.mulf %270, %274 : vector<8x8xf32>
    %cst_110 = arith.constant dense<0.000000e+00> : vector<8x8xf32>
    %276 = tpu.matmul %275, %259, %cst_110 {dimension_numbers = #tpu.dot_dimension_numbers<[1], [0], [0], [1], [0, 0, 1, 1], [], []>} : vector<8x8xf32>, vector<8x8xf32>, vector<8x8xf32> -> vector<8x8xf32>
    %277 = vector.extract_strided_slice %234 {offsets = [8, 0], sizes = [8, 32], strides = [1, 1]} : vector<32x32xf32> to vector<8x32xf32>
    %cst_111 = arith.constant dense<0.000000e+00> : vector<8x32xf32>
    %278 = tpu.matmul %276, %277, %cst_111 {dimension_numbers = #tpu.dot_dimension_numbers<[1], [0], [0], [1], [0, 0, 1, 1], [], []>} : vector<8x8xf32>, vector<8x32xf32>, vector<8x32xf32> -> vector<8x32xf32>
    %279 = arith.addf %256, %278 : vector<8x32xf32>
    %280 = vector.extract_strided_slice %230 {offsets = [0, 16], sizes = [8, 8], strides = [1, 1]} : vector<8x32xf32> to vector<8x8xf32>
    %281 = vector.extract_strided_slice %231 {offsets = [0, 16], sizes = [8, 8], strides = [1, 1]} : vector<8x32xf32> to vector<8x8xf32>
    %282 = vector.extract_strided_slice %232 {offsets = [0, 16], sizes = [8, 8], strides = [1, 1]} : vector<8x32xf32> to vector<8x8xf32>
    %283 = tpu.transpose %281, [1, 0] : vector<8x8xf32> -> vector<8x8xf32>
    %cst_112 = arith.constant dense<0.000000e+00> : vector<8x8xf32>
    %284 = tpu.matmul %280, %283, %cst_112 {dimension_numbers = #tpu.dot_dimension_numbers<[1], [0], [0], [1], [0, 0, 1, 1], [], []>} : vector<8x8xf32>, vector<8x8xf32>, vector<8x8xf32> -> vector<8x8xf32>
    %cst_113 = arith.constant 0.353553385 : f32
    %285 = vector.broadcast %cst_113 : f32 to vector<8x8xf32>
    %286 = arith.mulf %284, %285 : vector<8x8xf32>
    %287 = vector.broadcast %30 : vector<1x8xf32> to vector<8x8xf32>
    %288 = arith.addf %286, %287 : vector<8x8xf32>
    %cst_114 = arith.constant dense<0xFF800000> : vector<8xf32>
    %289 = vector.multi_reduction <maximumf>, %288, %cst_114 [1] : vector<8x8xf32> to vector<8xf32>
    %290 = vector.shape_cast %289 : vector<8xf32> to vector<8x1xf32>
    %291 = vector.broadcast %290 : vector<8x1xf32> to vector<8x8xf32>
    %292 = arith.subf %288, %291 : vector<8x8xf32>
    %293 = math.exp %292 : vector<8x8xf32>
    %cst_115 = arith.constant dense<0.000000e+00> : vector<8xf32>
    %294 = vector.multi_reduction <add>, %293, %cst_115 [1] : vector<8x8xf32> to vector<8xf32>
    %295 = vector.shape_cast %294 : vector<8xf32> to vector<8x1xf32>
    %296 = tpu.reciprocal %295 {approx = true} : vector<8x1xf32> -> vector<8x1xf32>
    %297 = vector.broadcast %296 : vector<8x1xf32> to vector<8x8xf32>
    %298 = arith.mulf %293, %297 : vector<8x8xf32>
    %cst_116 = arith.constant dense<0.000000e+00> : vector<8x8xf32>
    %299 = tpu.matmul %298, %282, %cst_116 {dimension_numbers = #tpu.dot_dimension_numbers<[1], [0], [0], [1], [0, 0, 1, 1], [], []>} : vector<8x8xf32>, vector<8x8xf32>, vector<8x8xf32> -> vector<8x8xf32>
    %300 = vector.extract_strided_slice %234 {offsets = [16, 0], sizes = [8, 32], strides = [1, 1]} : vector<32x32xf32> to vector<8x32xf32>
    %cst_117 = arith.constant dense<0.000000e+00> : vector<8x32xf32>
    %301 = tpu.matmul %299, %300, %cst_117 {dimension_numbers = #tpu.dot_dimension_numbers<[1], [0], [0], [1], [0, 0, 1, 1], [], []>} : vector<8x8xf32>, vector<8x32xf32>, vector<8x32xf32> -> vector<8x32xf32>
    %302 = arith.addf %279, %301 : vector<8x32xf32>
    %303 = vector.extract_strided_slice %230 {offsets = [0, 24], sizes = [8, 8], strides = [1, 1]} : vector<8x32xf32> to vector<8x8xf32>
    %304 = vector.extract_strided_slice %231 {offsets = [0, 24], sizes = [8, 8], strides = [1, 1]} : vector<8x32xf32> to vector<8x8xf32>
    %305 = vector.extract_strided_slice %232 {offsets = [0, 24], sizes = [8, 8], strides = [1, 1]} : vector<8x32xf32> to vector<8x8xf32>
    %306 = tpu.transpose %304, [1, 0] : vector<8x8xf32> -> vector<8x8xf32>
    %cst_118 = arith.constant dense<0.000000e+00> : vector<8x8xf32>
    %307 = tpu.matmul %303, %306, %cst_118 {dimension_numbers = #tpu.dot_dimension_numbers<[1], [0], [0], [1], [0, 0, 1, 1], [], []>} : vector<8x8xf32>, vector<8x8xf32>, vector<8x8xf32> -> vector<8x8xf32>
    %cst_119 = arith.constant 0.353553385 : f32
    %308 = vector.broadcast %cst_119 : f32 to vector<8x8xf32>
    %309 = arith.mulf %307, %308 : vector<8x8xf32>
    %310 = vector.broadcast %30 : vector<1x8xf32> to vector<8x8xf32>
    %311 = arith.addf %309, %310 : vector<8x8xf32>
    %cst_120 = arith.constant dense<0xFF800000> : vector<8xf32>
    %312 = vector.multi_reduction <maximumf>, %311, %cst_120 [1] : vector<8x8xf32> to vector<8xf32>
    %313 = vector.shape_cast %312 : vector<8xf32> to vector<8x1xf32>
    %314 = vector.broadcast %313 : vector<8x1xf32> to vector<8x8xf32>
    %315 = arith.subf %311, %314 : vector<8x8xf32>
    %316 = math.exp %315 : vector<8x8xf32>
    %cst_121 = arith.constant dense<0.000000e+00> : vector<8xf32>
    %317 = vector.multi_reduction <add>, %316, %cst_121 [1] : vector<8x8xf32> to vector<8xf32>
    %318 = vector.shape_cast %317 : vector<8xf32> to vector<8x1xf32>
    %319 = tpu.reciprocal %318 {approx = true} : vector<8x1xf32> -> vector<8x1xf32>
    %320 = vector.broadcast %319 : vector<8x1xf32> to vector<8x8xf32>
    %321 = arith.mulf %316, %320 : vector<8x8xf32>
    %cst_122 = arith.constant dense<0.000000e+00> : vector<8x8xf32>
    %322 = tpu.matmul %321, %305, %cst_122 {dimension_numbers = #tpu.dot_dimension_numbers<[1], [0], [0], [1], [0, 0, 1, 1], [], []>} : vector<8x8xf32>, vector<8x8xf32>, vector<8x8xf32> -> vector<8x8xf32>
    %323 = vector.extract_strided_slice %234 {offsets = [24, 0], sizes = [8, 32], strides = [1, 1]} : vector<32x32xf32> to vector<8x32xf32>
    %cst_123 = arith.constant dense<0.000000e+00> : vector<8x32xf32>
    %324 = tpu.matmul %322, %323, %cst_123 {dimension_numbers = #tpu.dot_dimension_numbers<[1], [0], [0], [1], [0, 0, 1, 1], [], []>} : vector<8x8xf32>, vector<8x32xf32>, vector<8x32xf32> -> vector<8x32xf32>
    %325 = arith.addf %302, %324 : vector<8x32xf32>
    %c1_124 = arith.constant 1 : index
    %c0_125 = arith.constant 0 : index
    %c0_126 = arith.constant 0 : index
    %326 = vector.load %arg8[%c1_124, %c0_125, %c0_126] : memref<2x1x32xf32, #tpu.memory_space<vmem>>, vector<1x1x32xf32>
    %327 = vector.shape_cast %326 : vector<1x1x32xf32> to vector<1x32xf32>
    %328 = vector.broadcast %327 : vector<1x32xf32> to vector<8x32xf32>
    %329 = arith.addf %325, %328 : vector<8x32xf32>
    %330 = arith.addf %329, %221 : vector<8x32xf32>
    %c1_127 = arith.constant 1 : index
    %c0_128 = arith.constant 0 : index
    %c0_129 = arith.constant 0 : index
    %331 = vector.load %arg9[%c1_127, %c0_128, %c0_129] : memref<2x1x32xf32, #tpu.memory_space<vmem>>, vector<1x1x32xf32>
    %332 = vector.shape_cast %331 : vector<1x1x32xf32> to vector<1x32xf32>
    %c1_130 = arith.constant 1 : index
    %c0_131 = arith.constant 0 : index
    %c0_132 = arith.constant 0 : index
    %333 = vector.load %arg10[%c1_130, %c0_131, %c0_132] : memref<2x1x32xf32, #tpu.memory_space<vmem>>, vector<1x1x32xf32>
    %334 = vector.shape_cast %333 : vector<1x1x32xf32> to vector<1x32xf32>
    %cst_133 = arith.constant dense<0.000000e+00> : vector<8xf32>
    %335 = vector.multi_reduction <add>, %330, %cst_133 [1] : vector<8x32xf32> to vector<8xf32>
    %336 = vector.shape_cast %335 : vector<8xf32> to vector<8x1xf32>
    %cst_134 = arith.constant 3.200000e+01 : f32
    %337 = vector.broadcast %cst_134 : f32 to vector<8x1xf32>
    %338 = arith.divf %336, %337 : vector<8x1xf32>
    %339 = vector.broadcast %338 : vector<8x1xf32> to vector<8x32xf32>
    %340 = arith.subf %330, %339 : vector<8x32xf32>
    %341 = arith.mulf %340, %340 : vector<8x32xf32>
    %cst_135 = arith.constant dense<0.000000e+00> : vector<8xf32>
    %342 = vector.multi_reduction <add>, %341, %cst_135 [1] : vector<8x32xf32> to vector<8xf32>
    %343 = vector.shape_cast %342 : vector<8xf32> to vector<8x1xf32>
    %cst_136 = arith.constant 3.200000e+01 : f32
    %344 = vector.broadcast %cst_136 : f32 to vector<8x1xf32>
    %345 = arith.divf %343, %344 : vector<8x1xf32>
    %346 = vector.broadcast %338 : vector<8x1xf32> to vector<8x32xf32>
    %347 = arith.subf %330, %346 : vector<8x32xf32>
    %cst_137 = arith.constant 9.99999996E-13 : f32
    %348 = vector.broadcast %cst_137 : f32 to vector<8x1xf32>
    %349 = arith.addf %345, %348 : vector<8x1xf32>
    %350 = math.rsqrt %349 : vector<8x1xf32>
    %351 = vector.broadcast %350 : vector<8x1xf32> to vector<8x32xf32>
    %352 = arith.mulf %347, %351 : vector<8x32xf32>
    %353 = vector.broadcast %332 : vector<1x32xf32> to vector<8x32xf32>
    %354 = arith.mulf %352, %353 : vector<8x32xf32>
    %355 = vector.broadcast %334 : vector<1x32xf32> to vector<8x32xf32>
    %356 = arith.addf %354, %355 : vector<8x32xf32>
    %357 = arith.truncf %356 : vector<8x32xf32> to vector<8x32xbf16>
    %c1_138 = arith.constant 1 : index
    %c0_139 = arith.constant 0 : index
    %c0_140 = arith.constant 0 : index
    %358 = vector.load %arg11[%c1_138, %c0_139, %c0_140] : memref<2x32x64xbf16, #tpu.memory_space<vmem>>, vector<1x32x64xbf16>
    %359 = vector.shape_cast %358 : vector<1x32x64xbf16> to vector<32x64xbf16>
    %cst_141 = arith.constant dense<0.000000e+00> : vector<8x64xf32>
    %360 = tpu.matmul %357, %359, %cst_141 {dimension_numbers = #tpu.dot_dimension_numbers<[1], [0], [0], [1], [0, 0, 1, 1], [], []>} : vector<8x32xbf16>, vector<32x64xbf16>, vector<8x64xf32> -> vector<8x64xf32>
    %c1_142 = arith.constant 1 : index
    %c0_143 = arith.constant 0 : index
    %c0_144 = arith.constant 0 : index
    %361 = vector.load %arg12[%c1_142, %c0_143, %c0_144] : memref<2x1x64xf32, #tpu.memory_space<vmem>>, vector<1x1x64xf32>
    %362 = vector.shape_cast %361 : vector<1x1x64xf32> to vector<1x64xf32>
    %363 = vector.broadcast %362 : vector<1x64xf32> to vector<8x64xf32>
    %364 = arith.addf %360, %363 : vector<8x64xf32>
    %365 = arith.mulf %364, %364 : vector<8x64xf32>
    %366 = arith.mulf %364, %365 : vector<8x64xf32>
    %cst_145 = arith.constant 4.471500e-02 : f32
    %367 = vector.broadcast %cst_145 : f32 to vector<8x64xf32>
    %368 = arith.mulf %367, %366 : vector<8x64xf32>
    %369 = arith.addf %364, %368 : vector<8x64xf32>
    %cst_146 = arith.constant 0.797884583 : f32
    %370 = vector.broadcast %cst_146 : f32 to vector<8x64xf32>
    %371 = arith.mulf %370, %369 : vector<8x64xf32>
    %372 = math.tanh %371 : vector<8x64xf32>
    %cst_147 = arith.constant 1.000000e+00 : f32
    %373 = vector.broadcast %cst_147 : f32 to vector<8x64xf32>
    %374 = arith.addf %373, %372 : vector<8x64xf32>
    %cst_148 = arith.constant 5.000000e-01 : f32
    %375 = vector.broadcast %cst_148 : f32 to vector<8x64xf32>
    %376 = arith.mulf %375, %374 : vector<8x64xf32>
    %377 = arith.mulf %364, %376 : vector<8x64xf32>
    %378 = arith.truncf %377 : vector<8x64xf32> to vector<8x64xbf16>
    %c1_149 = arith.constant 1 : index
    %c0_150 = arith.constant 0 : index
    %c0_151 = arith.constant 0 : index
    %379 = vector.load %arg13[%c1_149, %c0_150, %c0_151] : memref<2x64x32xbf16, #tpu.memory_space<vmem>>, vector<1x64x32xbf16>
    %380 = vector.shape_cast %379 : vector<1x64x32xbf16> to vector<64x32xbf16>
    %cst_152 = arith.constant dense<0.000000e+00> : vector<8x32xf32>
    %381 = tpu.matmul %378, %380, %cst_152 {dimension_numbers = #tpu.dot_dimension_numbers<[1], [0], [0], [1], [0, 0, 1, 1], [], []>} : vector<8x64xbf16>, vector<64x32xbf16>, vector<8x32xf32> -> vector<8x32xf32>
    %c1_153 = arith.constant 1 : index
    %c0_154 = arith.constant 0 : index
    %c0_155 = arith.constant 0 : index
    %382 = vector.load %arg14[%c1_153, %c0_154, %c0_155] : memref<2x1x32xf32, #tpu.memory_space<vmem>>, vector<1x1x32xf32>
    %383 = vector.shape_cast %382 : vector<1x1x32xf32> to vector<1x32xf32>
    %384 = vector.broadcast %383 : vector<1x32xf32> to vector<8x32xf32>
    %385 = arith.addf %381, %384 : vector<8x32xf32>
    %386 = arith.addf %385, %356 : vector<8x32xf32>
    %c1_156 = arith.constant 1 : index
    %c0_157 = arith.constant 0 : index
    %c0_158 = arith.constant 0 : index
    %387 = vector.load %arg15[%c1_156, %c0_157, %c0_158] : memref<2x1x32xf32, #tpu.memory_space<vmem>>, vector<1x1x32xf32>
    %388 = vector.shape_cast %387 : vector<1x1x32xf32> to vector<1x32xf32>
    %c1_159 = arith.constant 1 : index
    %c0_160 = arith.constant 0 : index
    %c0_161 = arith.constant 0 : index
    %389 = vector.load %arg16[%c1_159, %c0_160, %c0_161] : memref<2x1x32xf32, #tpu.memory_space<vmem>>, vector<1x1x32xf32>
    %390 = vector.shape_cast %389 : vector<1x1x32xf32> to vector<1x32xf32>
    %cst_162 = arith.constant dense<0.000000e+00> : vector<8xf32>
    %391 = vector.multi_reduction <add>, %386, %cst_162 [1] : vector<8x32xf32> to vector<8xf32>
    %392 = vector.shape_cast %391 : vector<8xf32> to vector<8x1xf32>
    %cst_163 = arith.constant 3.200000e+01 : f32
    %393 = vector.broadcast %cst_163 : f32 to vector<8x1xf32>
    %394 = arith.divf %392, %393 : vector<8x1xf32>
    %395 = vector.broadcast %394 : vector<8x1xf32> to vector<8x32xf32>
    %396 = arith.subf %386, %395 : vector<8x32xf32>
    %397 = arith.mulf %396, %396 : vector<8x32xf32>
    %cst_164 = arith.constant dense<0.000000e+00> : vector<8xf32>
    %398 = vector.multi_reduction <add>, %397, %cst_164 [1] : vector<8x32xf32> to vector<8xf32>
    %399 = vector.shape_cast %398 : vector<8xf32> to vector<8x1xf32>
    %cst_165 = arith.constant 3.200000e+01 : f32
    %400 = vector.broadcast %cst_165 : f32 to vector<8x1xf32>
    %401 = arith.divf %399, %400 : vector<8x1xf32>
    %402 = vector.broadcast %394 : vector<8x1xf32> to vector<8x32xf32>
    %403 = arith.subf %386, %402 : vector<8x32xf32>
    %cst_166 = arith.constant 9.99999996E-13 : f32
    %404 = vector.broadcast %cst_166 : f32 to vector<8x1xf32>
    %405 = arith.addf %401, %404 : vector<8x1xf32>
    %406 = math.rsqrt %405 : vector<8x1xf32>
    %407 = vector.broadcast %406 : vector<8x1xf32> to vector<8x32xf32>
    %408 = arith.mulf %403, %407 : vector<8x32xf32>
    %409 = vector.broadcast %388 : vector<1x32xf32> to vector<8x32xf32>
    %410 = arith.mulf %408, %409 : vector<8x32xf32>
    %411 = vector.broadcast %390 : vector<1x32xf32> to vector<8x32xf32>
    %412 = arith.addf %410, %411 : vector<8x32xf32>
    %cst_167 = arith.constant dense<0.000000e+00> : vector<32xf32>
    %413 = vector.multi_reduction <add>, %412, %cst_167 [0] : vector<8x32xf32> to vector<32xf32>
    %414 = vector.shape_cast %413 : vector<32xf32> to vector<1x32xf32>
    %cst_168 = arith.constant 8.000000e+00 : f32
    %415 = vector.broadcast %cst_168 : f32 to vector<1x32xf32>
    %416 = arith.divf %414, %415 : vector<1x32xf32>
    %cst_169 = arith.constant dense<0xFF800000> : vector<32xf32>
    %417 = vector.multi_reduction <maximumf>, %412, %cst_169 [0] : vector<8x32xf32> to vector<32xf32>
    %418 = vector.shape_cast %417 : vector<32xf32> to vector<1x32xf32>
    %c0_170 = arith.constant 0 : index
    %c0_171 = arith.constant 0 : index
    %419 = vector.load %arg17[%c0_170, %c0_171] : memref<32x1xf32, #tpu.memory_space<vmem>>, vector<32x1xf32>
    %cst_172 = arith.constant dense<0.000000e+00> : vector<1x1xf32>
    %420 = tpu.matmul %416, %419, %cst_172 {dimension_numbers = #tpu.dot_dimension_numbers<[1], [0], [0], [1], [0, 0, 1, 1], [], []>} : vector<1x32xf32>, vector<32x1xf32>, vector<1x1xf32> -> vector<1x1xf32>
    %c0_173 = arith.constant 0 : index
    %c0_174 = arith.constant 0 : index
    %421 = vector.load %arg18[%c0_173, %c0_174] : memref<32x1xf32, #tpu.memory_space<vmem>>, vector<32x1xf32>
    %cst_175 = arith.constant dense<0.000000e+00> : vector<1x1xf32>
    %422 = tpu.matmul %418, %421, %cst_175 {dimension_numbers = #tpu.dot_dimension_numbers<[1], [0], [0], [1], [0, 0, 1, 1], [], []>} : vector<1x32xf32>, vector<32x1xf32>, vector<1x1xf32> -> vector<1x1xf32>
    %423 = arith.addf %420, %422 : vector<1x1xf32>
    %c0_176 = arith.constant 0 : index
    %c0_177 = arith.constant 0 : index
    %424 = vector.load %arg19[%c0_176, %c0_177] : memref<1x1xf32, #tpu.memory_space<vmem>>, vector<1x1xf32>
    %425 = arith.addf %423, %424 : vector<1x1xf32>
    %c0_178 = arith.constant 0 : index
    %c0_179 = arith.constant 0 : index
    %c0_180 = arith.constant 0 : index
    %426 = vector.load %arg20[%c0_178, %c0_179, %c0_180] : memref<1x1x1xf32, #tpu.memory_space<vmem>>, vector<1x1x1xf32>
    %427 = vector.shape_cast %426 : vector<1x1x1xf32> to vector<1x1xf32>
    %428 = vector.shape_cast %425 : vector<1x1xf32> to vector<1x1x1xf32>
    tpu.vector_store %arg20[%c0_178, %c0_179, %c0_180], %428 {strides = array<i32>} : memref<1x1x1xf32, #tpu.memory_space<vmem>>, vector<1x1x1xf32>,
    return
  }
  func.func @transform_0(%arg0: i32) -> (i32, i32) {
    %c0_i32 = arith.constant 0 : i32
    %c0_i32_0 = arith.constant 0 : i32
    return %arg0, %c0_i32 : i32, i32
  }
  func.func @transform_1(%arg0: i32) -> (i32, i32, i32) {
    %c0_i32 = arith.constant 0 : i32
    %c0_i32_0 = arith.constant 0 : i32
    %c0_i32_1 = arith.constant 0 : i32
    return %arg0, %c0_i32, %c0_i32_0 : i32, i32, i32
  }
  func.func @transform_2(%arg0: i32) -> (i32, i32) {
    %c0_i32 = arith.constant 0 : i32
    %c0_i32_0 = arith.constant 0 : i32
    %c0_i32_1 = arith.constant 0 : i32
    return %c0_i32, %c0_i32_0 : i32, i32
  }
  func.func @transform_3(%arg0: i32) -> (i32, i32) {
    %c0_i32 = arith.constant 0 : i32
    %c0_i32_0 = arith.constant 0 : i32
    %c0_i32_1 = arith.constant 0 : i32
    return %c0_i32, %c0_i32_0 : i32, i32
  }
  func.func @transform_4(%arg0: i32) -> (i32, i32, i32) {
    %c0_i32 = arith.constant 0 : i32
    %c0_i32_0 = arith.constant 0 : i32
    %c0_i32_1 = arith.constant 0 : i32
    %c0_i32_2 = arith.constant 0 : i32
    return %c0_i32, %c0_i32_0, %c0_i32_1 : i32, i32, i32
  }
  func.func @transform_5(%arg0: i32) -> (i32, i32, i32) {
    %c0_i32 = arith.constant 0 : i32
    %c0_i32_0 = arith.constant 0 : i32
    %c0_i32_1 = arith.constant 0 : i32
    %c0_i32_2 = arith.constant 0 : i32
    return %c0_i32, %c0_i32_0, %c0_i32_1 : i32, i32, i32
  }
  func.func @transform_6(%arg0: i32) -> (i32, i32, i32) {
    %c0_i32 = arith.constant 0 : i32
    %c0_i32_0 = arith.constant 0 : i32
    %c0_i32_1 = arith.constant 0 : i32
    %c0_i32_2 = arith.constant 0 : i32
    return %c0_i32, %c0_i32_0, %c0_i32_1 : i32, i32, i32
  }
  func.func @transform_7(%arg0: i32) -> (i32, i32, i32) {
    %c0_i32 = arith.constant 0 : i32
    %c0_i32_0 = arith.constant 0 : i32
    %c0_i32_1 = arith.constant 0 : i32
    %c0_i32_2 = arith.constant 0 : i32
    return %c0_i32, %c0_i32_0, %c0_i32_1 : i32, i32, i32
  }
  func.func @transform_8(%arg0: i32) -> (i32, i32, i32) {
    %c0_i32 = arith.constant 0 : i32
    %c0_i32_0 = arith.constant 0 : i32
    %c0_i32_1 = arith.constant 0 : i32
    %c0_i32_2 = arith.constant 0 : i32
    return %c0_i32, %c0_i32_0, %c0_i32_1 : i32, i32, i32
  }
  func.func @transform_9(%arg0: i32) -> (i32, i32, i32) {
    %c0_i32 = arith.constant 0 : i32
    %c0_i32_0 = arith.constant 0 : i32
    %c0_i32_1 = arith.constant 0 : i32
    %c0_i32_2 = arith.constant 0 : i32
    return %c0_i32, %c0_i32_0, %c0_i32_1 : i32, i32, i32
  }
  func.func @transform_10(%arg0: i32) -> (i32, i32, i32) {
    %c0_i32 = arith.constant 0 : i32
    %c0_i32_0 = arith.constant 0 : i32
    %c0_i32_1 = arith.constant 0 : i32
    %c0_i32_2 = arith.constant 0 : i32
    return %c0_i32, %c0_i32_0, %c0_i32_1 : i32, i32, i32
  }
  func.func @transform_11(%arg0: i32) -> (i32, i32, i32) {
    %c0_i32 = arith.constant 0 : i32
    %c0_i32_0 = arith.constant 0 : i32
    %c0_i32_1 = arith.constant 0 : i32
    %c0_i32_2 = arith.constant 0 : i32
    return %c0_i32, %c0_i32_0, %c0_i32_1 : i32, i32, i32
  }
  func.func @transform_12(%arg0: i32) -> (i32, i32, i32) {
    %c0_i32 = arith.constant 0 : i32
    %c0_i32_0 = arith.constant 0 : i32
    %c0_i32_1 = arith.constant 0 : i32
    %c0_i32_2 = arith.constant 0 : i32
    return %c0_i32, %c0_i32_0, %c0_i32_1 : i32, i32, i32
  }
  func.func @transform_13(%arg0: i32) -> (i32, i32, i32) {
    %c0_i32 = arith.constant 0 : i32
    %c0_i32_0 = arith.constant 0 : i32
    %c0_i32_1 = arith.constant 0 : i32
    %c0_i32_2 = arith.constant 0 : i32
    return %c0_i32, %c0_i32_0, %c0_i32_1 : i32, i32, i32
  }
  func.func @transform_14(%arg0: i32) -> (i32, i32, i32) {
    %c0_i32 = arith.constant 0 : i32
    %c0_i32_0 = arith.constant 0 : i32
    %c0_i32_1 = arith.constant 0 : i32
    %c0_i32_2 = arith.constant 0 : i32
    return %c0_i32, %c0_i32_0, %c0_i32_1 : i32, i32, i32
  }
  func.func @transform_15(%arg0: i32) -> (i32, i32, i32) {
    %c0_i32 = arith.constant 0 : i32
    %c0_i32_0 = arith.constant 0 : i32
    %c0_i32_1 = arith.constant 0 : i32
    %c0_i32_2 = arith.constant 0 : i32
    return %c0_i32, %c0_i32_0, %c0_i32_1 : i32, i32, i32
  }
  func.func @transform_16(%arg0: i32) -> (i32, i32) {
    %c0_i32 = arith.constant 0 : i32
    %c0_i32_0 = arith.constant 0 : i32
    %c0_i32_1 = arith.constant 0 : i32
    return %c0_i32, %c0_i32_0 : i32, i32
  }
  func.func @transform_17(%arg0: i32) -> (i32, i32) {
    %c0_i32 = arith.constant 0 : i32
    %c0_i32_0 = arith.constant 0 : i32
    %c0_i32_1 = arith.constant 0 : i32
    return %c0_i32, %c0_i32_0 : i32, i32
  }
  func.func @transform_18(%arg0: i32) -> (i32, i32) {
    %c0_i32 = arith.constant 0 : i32
    %c0_i32_0 = arith.constant 0 : i32
    %c0_i32_1 = arith.constant 0 : i32
    return %c0_i32, %c0_i32_0 : i32, i32
  }
  func.func @transform_19(%arg0: i32) -> (i32, i32, i32) {
    %c0_i32 = arith.constant 0 : i32
    %c0_i32_0 = arith.constant 0 : i32
    %c0_i32_1 = arith.constant 0 : i32
    return %arg0, %c0_i32, %c0_i32_0 : i32, i32, i32
  }
}

</mosaic_0001>

<llo_original>
// kernel: bert_base_uncased_forward.1
$region0: #{bert_base_uncased_forward.1}
  #allocation0 [shape = 'u32[]', space=smem, size = 0x4, offset = 0x4, fixed_abs, tag = 'smem constant byte address 0x4 - core index']
  #allocation1 [shape = 'u32[144,128]{1,0:T(1,128)}', space=vmem, size = 0x12000, scoped, tag = 'internal scratch']
  #allocation2 [shape = 'f32[1,1]{1,0:T(1,128)S(1)}', space=vmem, size = 0x200, scoped, tag = 'scoped memory for bert_base_uncased_forward.1']
  %s0 = inlined_call_operand.vmem [shape: f32[16,32], index: 0, kind: input, shape index: {}]
  %s1 = inlined_call_operand.vmem [shape: f32[2,1,8], index: 1, kind: input, shape index: {}]
  %s2 = inlined_call_operand.vmem [shape: f32[1,32], index: 2, kind: input, shape index: {}]
  %s3 = inlined_call_operand.vmem [shape: f32[1,32], index: 3, kind: input, shape index: {}]
  %s4 = inlined_call_operand.vmem [shape: bf16[2,32,96], index: 4, kind: input, shape index: {}]
  %s5 = inlined_call_operand.vmem [shape: f32[2,1,96], index: 5, kind: input, shape index: {}]
  %s6 = inlined_call_operand.vmem [shape: f32[2,32,32], index: 6, kind: input, shape index: {}]
  %s7 = inlined_call_operand.vmem [shape: f32[2,1,32], index: 7, kind: input, shape index: {}]
  %s8 = inlined_call_operand.vmem [shape: f32[2,1,32], index: 8, kind: input, shape index: {}]
  %s9 = inlined_call_operand.vmem [shape: f32[2,1,32], index: 9, kind: input, shape index: {}]
  %s10 = inlined_call_operand.vmem [shape: bf16[2,32,64], index: 10, kind: input, shape index: {}]
  %s11 = inlined_call_operand.vmem [shape: f32[2,1,64], index: 11, kind: input, shape index: {}]
  %s12 = inlined_call_operand.vmem [shape: bf16[2,64,32], index: 12, kind: input, shape index: {}]
  %s13 = inlined_call_operand.vmem [shape: f32[2,1,32], index: 13, kind: input, shape index: {}]
  %s14 = inlined_call_operand.vmem [shape: f32[2,1,32], index: 14, kind: input, shape index: {}]
  %s15 = inlined_call_operand.vmem [shape: f32[2,1,32], index: 15, kind: input, shape index: {}]
  %s16 = inlined_call_operand.vmem [shape: f32[32,1], index: 16, kind: input, shape index: {}]
  %s17 = inlined_call_operand.vmem [shape: f32[32,1], index: 17, kind: input, shape index: {}]
  %s18 = inlined_call_operand.<no memory space> [shape: f32[1,1], index: 18, kind: input, shape index: {}]
  %s19 = inlined_call_operand.vmem [shape: f32[2,1,1], index: 19, kind: output, shape index: {}]
  %s20 = sld [smem:[#allocation0]]
  $region109: #{bert_base_uncased_forward.1} parent=0
    _
  %s22 = ssub.s32 1, %s20
  %s23 = scalar_select 0, %s22, %s20
  %v24 = vstv %s18
  %25 = vst [vmem:[#allocation2] sm:$0x1] %v24
  loop: start=0, step=1, limit=4
  $region2: #{bert_base_uncased_forward.1} parent=0 // loop_pre_header
    _
  $region3: #{bert_base_uncased_forward.1} parent=0 // loop_header
    %s27 = sphi 0, %s31
    %p28 = scmp.ge.s32.totalorder %s27, 4
    %s37 = sphi 0, %s39
    %s40 = sphi 0, %s37
    %s41 = sphi 0, %s40
    %s57 = sphi 0, %s41
    %s63 = sphi 0, %s65
    %s66 = sphi 0, %s63
    %s67 = sphi 0, %s66
    %s83 = sphi 0, %s67
    %s87 = sphi 0, %s87
    %s89 = sphi 0, %s87
    %s90 = sphi 0, %s89
    %s104 = sphi 0, %s90
    %s108 = sphi 0, %s108
    %s110 = sphi 0, %s108
    %s111 = sphi 0, %s110
    %s125 = sphi 0, %s111
    %s129 = sphi 0, %s129
    %s131 = sphi 0, %s129
    %s132 = sphi 0, %s131
    %s146 = sphi 0, %s132
    %s150 = sphi 0, %s150
    %s152 = sphi 0, %s150
    %s153 = sphi 0, %s152
    %s167 = sphi 0, %s153
    %s171 = sphi 0, %s171
    %s173 = sphi 0, %s171
    %s174 = sphi 0, %s173
    %s188 = sphi 0, %s174
    %s192 = sphi 0, %s192
    %s194 = sphi 0, %s192
    %s195 = sphi 0, %s194
    %s209 = sphi 0, %s195
    %s213 = sphi 0, %s213
    %s215 = sphi 0, %s213
    %s216 = sphi 0, %s215
    %s230 = sphi 0, %s216
    %s234 = sphi 0, %s234
    %s236 = sphi 0, %s234
    %s237 = sphi 0, %s236
    %s251 = sphi 0, %s237
    %s255 = sphi 0, %s255
    %s257 = sphi 0, %s255
    %s258 = sphi 0, %s257
    %s272 = sphi 0, %s258
    %s276 = sphi 0, %s276
    %s278 = sphi 0, %s276
    %s279 = sphi 0, %s278
    %s293 = sphi 0, %s279
    %s297 = sphi 0, %s297
    %s299 = sphi 0, %s297
    %s300 = sphi 0, %s299
    %s314 = sphi 0, %s300
    %s318 = sphi 0, %s318
    %s320 = sphi 0, %s318
    %s321 = sphi 0, %s320
    %s335 = sphi 0, %s321
    %s339 = sphi 0, %s339
    %s341 = sphi 0, %s339
    %s342 = sphi 0, %s341
    %s356 = sphi 0, %s342
    %s360 = sphi 0, %s360
    %s362 = sphi 0, %s360
    %s363 = sphi 0, %s362
    %s377 = sphi 0, %s363
    %s381 = sphi 0, %s381
    %s383 = sphi 0, %s381
    %s384 = sphi 0, %s383
    %s398 = sphi 0, %s384
    %s402 = sphi 0, %s402
    %s404 = sphi 0, %s402
    %s405 = sphi 0, %s404
    %s419 = sphi 0, %s405
    %s423 = sphi 0, %s423
    %s425 = sphi 0, %s423
    %s426 = sphi 0, %s425
    %s440 = sphi 0, %s426
    %s446 = sphi 0, %s448
    %s449 = sphi 0, %s446
    %s450 = sphi 0, %s449
    %s466 = sphi 0, %s450
  $region4: #{bert_base_uncased_forward.1} parent=0 // loop_header_branch
    %30 = sbr.rel (%p28) target = $region8
  $region5: #{bert_base_uncased_forward.1} parent=0 // loop_body
    %s32 = ssub.s32 %s27, 1
    %s33 = ssub.s32 %s27, 2
    %s34 = sadd.s32 %s27, 1
    %s35 = ssub.s32 %s27, %s34
    %p36 = scmp.eq.s32.totalorder %s35, 0
    %s38 = sadd.s32 %s37, 1
    %s39 = scalar_select %p36, %s37, %s38
    %p42 = pneg %p36
    %p43 = scmp.eq.s32.totalorder %s27, 1
    %p44 = por %p42, %p43
    %p45 = scmp.ne.s32.totalorder %s37, %s40
    %p46 = scmp.eq.s32.totalorder %s27, 0
    %p47 = por %p45, %p46
    %p48 = scmp.ne.s32.totalorder %s37, %s40
    %p49 = scmp.eq.s32.totalorder %s32, 1
    %p50 = por %p48, %p49
    %p51 = scmp.ne.s32.totalorder %s40, %s41
    %p52 = scmp.eq.s32.totalorder %s32, 0
    %p53 = por %p51, %p52
    %p54 = scmp.ne.s32.totalorder %s40, %s41
    %p55 = scmp.eq.s32.totalorder %s33, 1
    %p56 = por %p54, %p55
    %p58 = scmp.ne.s32.totalorder %s41, %s57
    %p59 = scmp.eq.s32.totalorder %s33, 0
    %p60 = por %p58, %p59
    %s61 = ssub.s32 %s27, %s34
    %p62 = scmp.eq.s32.totalorder %s61, 0
    %s64 = sadd.s32 %s63, 1
    %s65 = scalar_select %p62, %s63, %s64
    %p68 = pneg %p62
    %p69 = scmp.eq.s32.totalorder %s27, 1
    %p70 = por %p68, %p69
    %p71 = scmp.ne.s32.totalorder %s63, %s66
    %p72 = scmp.eq.s32.totalorder %s27, 0
    %p73 = por %p71, %p72
    %p74 = scmp.ne.s32.totalorder %s63, %s66
    %p75 = scmp.eq.s32.totalorder %s32, 1
    %p76 = por %p74, %p75
    %p77 = scmp.ne.s32.totalorder %s66, %s67
    %p78 = scmp.eq.s32.totalorder %s32, 0
    %p79 = por %p77, %p78
    %p80 = scmp.ne.s32.totalorder %s66, %s67
    %p81 = scmp.eq.s32.totalorder %s33, 1
    %p82 = por %p80, %p81
    %p84 = scmp.ne.s32.totalorder %s67, %s83
    %p85 = scmp.eq.s32.totalorder %s33, 0
    %p86 = por %p84, %p85
    %s88 = sadd.s32 %s87, 1
    %p91 = scmp.eq.s32.totalorder %s27, 1
    %p92 = scmp.ne.s32.totalorder %s87, %s89
    %p93 = scmp.eq.s32.totalorder %s27, 0
    %p94 = por %p92, %p93
    %p95 = scmp.ne.s32.totalorder %s87, %s89
    %p96 = scmp.eq.s32.totalorder %s32, 1
    %p97 = por %p95, %p96
    %p98 = scmp.ne.s32.totalorder %s89, %s90
    %p99 = scmp.eq.s32.totalorder %s32, 0
    %p100 = por %p98, %p99
    %p101 = scmp.ne.s32.totalorder %s89, %s90
    %p102 = scmp.eq.s32.totalorder %s33, 1
    %p103 = por %p101, %p102
    %p105 = scmp.ne.s32.totalorder %s90, %s104
    %p106 = scmp.eq.s32.totalorder %s33, 0
    %p107 = por %p105, %p106
    %s109 = sadd.s32 %s108, 1
    %p112 = scmp.eq.s32.totalorder %s27, 1
    %p113 = scmp.ne.s32.totalorder %s108, %s110
    %p114 = scmp.eq.s32.totalorder %s27, 0
    %p115 = por %p113, %p114
    %p116 = scmp.ne.s32.totalorder %s108, %s110
    %p117 = scmp.eq.s32.totalorder %s32, 1
    %p118 = por %p116, %p117
    %p119 = scmp.ne.s32.totalorder %s110, %s111
    %p120 = scmp.eq.s32.totalorder %s32, 0
    %p121 = por %p119, %p120
    %p122 = scmp.ne.s32.totalorder %s110, %s111
    %p123 = scmp.eq.s32.totalorder %s33, 1
    %p124 = por %p122, %p123
    %p126 = scmp.ne.s32.totalorder %s111, %s125
    %p127 = scmp.eq.s32.totalorder %s33, 0
    %p128 = por %p126, %p127
    %s130 = sadd.s32 %s129, 1
    %p133 = scmp.eq.s32.totalorder %s27, 1
    %p134 = scmp.ne.s32.totalorder %s129, %s131
    %p135 = scmp.eq.s32.totalorder %s27, 0
    %p136 = por %p134, %p135
    %p137 = scmp.ne.s32.totalorder %s129, %s131
    %p138 = scmp.eq.s32.totalorder %s32, 1
    %p139 = por %p137, %p138
    %p140 = scmp.ne.s32.totalorder %s131, %s132
    %p141 = scmp.eq.s32.totalorder %s32, 0
    %p142 = por %p140, %p141
    %p143 = scmp.ne.s32.totalorder %s131, %s132
    %p144 = scmp.eq.s32.totalorder %s33, 1
    %p145 = por %p143, %p144
    %p147 = scmp.ne.s32.totalorder %s132, %s146
    %p148 = scmp.eq.s32.totalorder %s33, 0
    %p149 = por %p147, %p148
    %s151 = sadd.s32 %s150, 1
    %p154 = scmp.eq.s32.totalorder %s27, 1
    %p155 = scmp.ne.s32.totalorder %s150, %s152
    %p156 = scmp.eq.s32.totalorder %s27, 0
    %p157 = por %p155, %p156
    %p158 = scmp.ne.s32.totalorder %s150, %s152
    %p159 = scmp.eq.s32.totalorder %s32, 1
    %p160 = por %p158, %p159
    %p161 = scmp.ne.s32.totalorder %s152, %s153
    %p162 = scmp.eq.s32.totalorder %s32, 0
    %p163 = por %p161, %p162
    %p164 = scmp.ne.s32.totalorder %s152, %s153
    %p165 = scmp.eq.s32.totalorder %s33, 1
    %p166 = por %p164, %p165
    %p168 = scmp.ne.s32.totalorder %s153, %s167
    %p169 = scmp.eq.s32.totalorder %s33, 0
    %p170 = por %p168, %p169
    %s172 = sadd.s32 %s171, 1
    %p175 = scmp.eq.s32.totalorder %s27, 1
    %p176 = scmp.ne.s32.totalorder %s171, %s173
    %p177 = scmp.eq.s32.totalorder %s27, 0
    %p178 = por %p176, %p177
    %p179 = scmp.ne.s32.totalorder %s171, %s173
    %p180 = scmp.eq.s32.totalorder %s32, 1
    %p181 = por %p179, %p180
    %p182 = scmp.ne.s32.totalorder %s173, %s174
    %p183 = scmp.eq.s32.totalorder %s32, 0
    %p184 = por %p182, %p183
    %p185 = scmp.ne.s32.totalorder %s173, %s174
    %p186 = scmp.eq.s32.totalorder %s33, 1
    %p187 = por %p185, %p186
    %p189 = scmp.ne.s32.totalorder %s174, %s188
    %p190 = scmp.eq.s32.totalorder %s33, 0
    %p191 = por %p189, %p190
    %s193 = sadd.s32 %s192, 1
    %p196 = scmp.eq.s32.totalorder %s27, 1
    %p197 = scmp.ne.s32.totalorder %s192, %s194
    %p198 = scmp.eq.s32.totalorder %s27, 0
    %p199 = por %p197, %p198
    %p200 = scmp.ne.s32.totalorder %s192, %s194
    %p201 = scmp.eq.s32.totalorder %s32, 1
    %p202 = por %p200, %p201
    %p203 = scmp.ne.s32.totalorder %s194, %s195
    %p204 = scmp.eq.s32.totalorder %s32, 0
    %p205 = por %p203, %p204
    %p206 = scmp.ne.s32.totalorder %s194, %s195
    %p207 = scmp.eq.s32.totalorder %s33, 1
    %p208 = por %p206, %p207
    %p210 = scmp.ne.s32.totalorder %s195, %s209
    %p211 = scmp.eq.s32.totalorder %s33, 0
    %p212 = por %p210, %p211
    %s214 = sadd.s32 %s213, 1
    %p217 = scmp.eq.s32.totalorder %s27, 1
    %p218 = scmp.ne.s32.totalorder %s213, %s215
    %p219 = scmp.eq.s32.totalorder %s27, 0
    %p220 = por %p218, %p219
    %p221 = scmp.ne.s32.totalorder %s213, %s215
    %p222 = scmp.eq.s32.totalorder %s32, 1
    %p223 = por %p221, %p222
    %p224 = scmp.ne.s32.totalorder %s215, %s216
    %p225 = scmp.eq.s32.totalorder %s32, 0
    %p226 = por %p224, %p225
    %p227 = scmp.ne.s32.totalorder %s215, %s216
    %p228 = scmp.eq.s32.totalorder %s33, 1
    %p229 = por %p227, %p228
    %p231 = scmp.ne.s32.totalorder %s216, %s230
    %p232 = scmp.eq.s32.totalorder %s33, 0
    %p233 = por %p231, %p232
    %s235 = sadd.s32 %s234, 1
    %p238 = scmp.eq.s32.totalorder %s27, 1
    %p239 = scmp.ne.s32.totalorder %s234, %s236
    %p240 = scmp.eq.s32.totalorder %s27, 0
    %p241 = por %p239, %p240
    %p242 = scmp.ne.s32.totalorder %s234, %s236
    %p243 = scmp.eq.s32.totalorder %s32, 1
    %p244 = por %p242, %p243
    %p245 = scmp.ne.s32.totalorder %s236, %s237
    %p246 = scmp.eq.s32.totalorder %s32, 0
    %p247 = por %p245, %p246
    %p248 = scmp.ne.s32.totalorder %s236, %s237
    %p249 = scmp.eq.s32.totalorder %s33, 1
    %p250 = por %p248, %p249
    %p252 = scmp.ne.s32.totalorder %s237, %s251
    %p253 = scmp.eq.s32.totalorder %s33, 0
    %p254 = por %p252, %p253
    %s256 = sadd.s32 %s255, 1
    %p259 = scmp.eq.s32.totalorder %s27, 1
    %p260 = scmp.ne.s32.totalorder %s255, %s257
    %p261 = scmp.eq.s32.totalorder %s27, 0
    %p262 = por %p260, %p261
    %p263 = scmp.ne.s32.totalorder %s255, %s257
    %p264 = scmp.eq.s32.totalorder %s32, 1
    %p265 = por %p263, %p264
    %p266 = scmp.ne.s32.totalorder %s257, %s258
    %p267 = scmp.eq.s32.totalorder %s32, 0
    %p268 = por %p266, %p267
    %p269 = scmp.ne.s32.totalorder %s257, %s258
    %p270 = scmp.eq.s32.totalorder %s33, 1
    %p271 = por %p269, %p270
    %p273 = scmp.ne.s32.totalorder %s258, %s272
    %p274 = scmp.eq.s32.totalorder %s33, 0
    %p275 = por %p273, %p274
    %s277 = sadd.s32 %s276, 1
    %p280 = scmp.eq.s32.totalorder %s27, 1
    %p281 = scmp.ne.s32.totalorder %s276, %s278
    %p282 = scmp.eq.s32.totalorder %s27, 0
    %p283 = por %p281, %p282
    %p284 = scmp.ne.s32.totalorder %s276, %s278
    %p285 = scmp.eq.s32.totalorder %s32, 1
    %p286 = por %p284, %p285
    %p287 = scmp.ne.s32.totalorder %s278, %s279
    %p288 = scmp.eq.s32.totalorder %s32, 0
    %p289 = por %p287, %p288
    %p290 = scmp.ne.s32.totalorder %s278, %s279
    %p291 = scmp.eq.s32.totalorder %s33, 1
    %p292 = por %p290, %p291
    %p294 = scmp.ne.s32.totalorder %s279, %s293
    %p295 = scmp.eq.s32.totalorder %s33, 0
    %p296 = por %p294, %p295
    %s298 = sadd.s32 %s297, 1
    %p301 = scmp.eq.s32.totalorder %s27, 1
    %p302 = scmp.ne.s32.totalorder %s297, %s299
    %p303 = scmp.eq.s32.totalorder %s27, 0
    %p304 = por %p302, %p303
    %p305 = scmp.ne.s32.totalorder %s297, %s299
    %p306 = scmp.eq.s32.totalorder %s32, 1
    %p307 = por %p305, %p306
    %p308 = scmp.ne.s32.totalorder %s299, %s300
    %p309 = scmp.eq.s32.totalorder %s32, 0
    %p310 = por %p308, %p309
    %p311 = scmp.ne.s32.totalorder %s299, %s300
    %p312 = scmp.eq.s32.totalorder %s33, 1
    %p313 = por %p311, %p312
    %p315 = scmp.ne.s32.totalorder %s300, %s314
    %p316 = scmp.eq.s32.totalorder %s33, 0
    %p317 = por %p315, %p316
    %s319 = sadd.s32 %s318, 1
    %p322 = scmp.eq.s32.totalorder %s27, 1
    %p323 = scmp.ne.s32.totalorder %s318, %s320
    %p324 = scmp.eq.s32.totalorder %s27, 0
    %p325 = por %p323, %p324
    %p326 = scmp.ne.s32.totalorder %s318, %s320
    %p327 = scmp.eq.s32.totalorder %s32, 1
    %p328 = por %p326, %p327
    %p329 = scmp.ne.s32.totalorder %s320, %s321
    %p330 = scmp.eq.s32.totalorder %s32, 0
    %p331 = por %p329, %p330
    %p332 = scmp.ne.s32.totalorder %s320, %s321
    %p333 = scmp.eq.s32.totalorder %s33, 1
    %p334 = por %p332, %p333
    %p336 = scmp.ne.s32.totalorder %s321, %s335
    %p337 = scmp.eq.s32.totalorder %s33, 0
    %p338 = por %p336, %p337
    %s340 = sadd.s32 %s339, 1
    %p343 = scmp.eq.s32.totalorder %s27, 1
    %p344 = scmp.ne.s32.totalorder %s339, %s341
    %p345 = scmp.eq.s32.totalorder %s27, 0
    %p346 = por %p344, %p345
    %p347 = scmp.ne.s32.totalorder %s339, %s341
    %p348 = scmp.eq.s32.totalorder %s32, 1
    %p349 = por %p347, %p348
    %p350 = scmp.ne.s32.totalorder %s341, %s342
    %p351 = scmp.eq.s32.totalorder %s32, 0
    %p352 = por %p350, %p351
    %p353 = scmp.ne.s32.totalorder %s341, %s342
    %p354 = scmp.eq.s32.totalorder %s33, 1
    %p355 = por %p353, %p354
    %p357 = scmp.ne.s32.totalorder %s342, %s356
    %p358 = scmp.eq.s32.totalorder %s33, 0
    %p359 = por %p357, %p358
    %s361 = sadd.s32 %s360, 1
    %p364 = scmp.eq.s32.totalorder %s27, 1
    %p365 = scmp.ne.s32.totalorder %s360, %s362
    %p366 = scmp.eq.s32.totalorder %s27, 0
    %p367 = por %p365, %p366
    %p368 = scmp.ne.s32.totalorder %s360, %s362
    %p369 = scmp.eq.s32.totalorder %s32, 1
    %p370 = por %p368, %p369
    %p371 = scmp.ne.s32.totalorder %s362, %s363
    %p372 = scmp.eq.s32.totalorder %s32, 0
    %p373 = por %p371, %p372
    %p374 = scmp.ne.s32.totalorder %s362, %s363
    %p375 = scmp.eq.s32.totalorder %s33, 1
    %p376 = por %p374, %p375
    %p378 = scmp.ne.s32.totalorder %s363, %s377
    %p379 = scmp.eq.s32.totalorder %s33, 0
    %p380 = por %p378, %p379
    %s382 = sadd.s32 %s381, 1
    %p385 = scmp.eq.s32.totalorder %s27, 1
    %p386 = scmp.ne.s32.totalorder %s381, %s383
    %p387 = scmp.eq.s32.totalorder %s27, 0
    %p388 = por %p386, %p387
    %p389 = scmp.ne.s32.totalorder %s381, %s383
    %p390 = scmp.eq.s32.totalorder %s32, 1
    %p391 = por %p389, %p390
    %p392 = scmp.ne.s32.totalorder %s383, %s384
    %p393 = scmp.eq.s32.totalorder %s32, 0
    %p394 = por %p392, %p393
    %p395 = scmp.ne.s32.totalorder %s383, %s384
    %p396 = scmp.eq.s32.totalorder %s33, 1
    %p397 = por %p395, %p396
    %p399 = scmp.ne.s32.totalorder %s384, %s398
    %p400 = scmp.eq.s32.totalorder %s33, 0
    %p401 = por %p399, %p400
    %s403 = sadd.s32 %s402, 1
    %p406 = scmp.eq.s32.totalorder %s27, 1
    %p407 = scmp.ne.s32.totalorder %s402, %s404
    %p408 = scmp.eq.s32.totalorder %s27, 0
    %p409 = por %p407, %p408
    %p410 = scmp.ne.s32.totalorder %s402, %s404
    %p411 = scmp.eq.s32.totalorder %s32, 1
    %p412 = por %p410, %p411
    %p413 = scmp.ne.s32.totalorder %s404, %s405
    %p414 = scmp.eq.s32.totalorder %s32, 0
    %p415 = por %p413, %p414
    %p416 = scmp.ne.s32.totalorder %s404, %s405
    %p417 = scmp.eq.s32.totalorder %s33, 1
    %p418 = por %p416, %p417
    %p420 = scmp.ne.s32.totalorder %s405, %s419
    %p421 = scmp.eq.s32.totalorder %s33, 0
    %p422 = por %p420, %p421
    %s424 = sadd.s32 %s423, 1
    %p427 = scmp.eq.s32.totalorder %s27, 1
    %p428 = scmp.ne.s32.totalorder %s423, %s425
    %p429 = scmp.eq.s32.totalorder %s27, 0
    %p430 = por %p428, %p429
    %p431 = scmp.ne.s32.totalorder %s423, %s425
    %p432 = scmp.eq.s32.totalorder %s32, 1
    %p433 = por %p431, %p432
    %p434 = scmp.ne.s32.totalorder %s425, %s426
    %p435 = scmp.eq.s32.totalorder %s32, 0
    %p436 = por %p434, %p435
    %p437 = scmp.ne.s32.totalorder %s425, %s426
    %p438 = scmp.eq.s32.totalorder %s33, 1
    %p439 = por %p437, %p438
    %p441 = scmp.ne.s32.totalorder %s426, %s440
    %p442 = scmp.eq.s32.totalorder %s33, 0
    %p443 = por %p441, %p442
    %s444 = ssub.s32 %s27, %s34
    %p445 = scmp.eq.s32.totalorder %s444, 0
    %s447 = sadd.s32 %s446, 1
    %s448 = scalar_select %p445, %s446, %s447
    %p451 = pneg %p445
    %p452 = scmp.eq.s32.totalorder %s27, 1
    %p453 = por %p451, %p452
    %p454 = scmp.ne.s32.totalorder %s446, %s449
    %p455 = scmp.eq.s32.totalorder %s27, 0
    %p456 = por %p454, %p455
    %p457 = scmp.ne.s32.totalorder %s446, %s449
    %p458 = scmp.eq.s32.totalorder %s32, 1
    %p459 = por %p457, %p458
    %p460 = scmp.ne.s32.totalorder %s449, %s450
    %p461 = scmp.eq.s32.totalorder %s32, 0
    %p462 = por %p460, %p461
    %p463 = scmp.ne.s32.totalorder %s449, %s450
    %p464 = scmp.eq.s32.totalorder %s33, 1
    %p465 = por %p463, %p464
    %p467 = scmp.ne.s32.totalorder %s450, %s466
    %p468 = scmp.eq.s32.totalorder %s33, 0
    %p469 = por %p467, %p468
    %p470 = scmp.le.s32.totalorder 1, %s27
    %p471 = scmp.lt.s32.totalorder %s27, 3
    %p472 = pnand %p470, %p471
    %p473 = pneg %p472
    // Predicated region
    $region9: #{bert_base_uncased_forward.1} parent=5 // pred_check
      _
    $region10: #{bert_base_uncased_forward.1} parent=5 // pred_check_branch
      %475 = sbr.rel (%p472) target = $region12
    $region11: #{bert_base_uncased_forward.1} parent=5 // pred_region
      %s476 = ssub.s32 %s27, 1
      // Predicated region
      $region13: #{bert_base_uncased_forward.1} parent=11 // pred_check
        %p477 = pneg %p100
      $region14: #{bert_base_uncased_forward.1} parent=11 // pred_check_branch
        %479 = sbr.rel (%p477) target = $region16
      $region15: #{bert_base_uncased_forward.1} parent=11 // pred_region
        _
      $region16: #{bert_base_uncased_forward.1} parent=11 // pred_fallthru
        _
      // Predicated region
      $region17: #{bert_base_uncased_forward.1} parent=11 // pred_check
        %p480 = pneg %p121
      $region18: #{bert_base_uncased_forward.1} parent=11 // pred_check_branch
        %482 = sbr.rel (%p480) target = $region20
      $region19: #{bert_base_uncased_forward.1} parent=11 // pred_region
        _
      $region20: #{bert_base_uncased_forward.1} parent=11 // pred_fallthru
        _
      // Predicated region
      $region21: #{bert_base_uncased_forward.1} parent=11 // pred_check
        %p483 = pneg %p142
      $region22: #{bert_base_uncased_forward.1} parent=11 // pred_check_branch
        %485 = sbr.rel (%p483) target = $region24
      $region23: #{bert_base_uncased_forward.1} parent=11 // pred_region
        _
      $region24: #{bert_base_uncased_forward.1} parent=11 // pred_fallthru
        _
      // Predicated region
      $region25: #{bert_base_uncased_forward.1} parent=11 // pred_check
        %p486 = pneg %p163
      $region26: #{bert_base_uncased_forward.1} parent=11 // pred_check_branch
        %488 = sbr.rel (%p486) target = $region28
      $region27: #{bert_base_uncased_forward.1} parent=11 // pred_region
        _
      $region28: #{bert_base_uncased_forward.1} parent=11 // pred_fallthru
        _
      // Predicated region
      $region29: #{bert_base_uncased_forward.1} parent=11 // pred_check
        %p489 = pneg %p184
      $region30: #{bert_base_uncased_forward.1} parent=11 // pred_check_branch
        %491 = sbr.rel (%p489) target = $region32
      $region31: #{bert_base_uncased_forward.1} parent=11 // pred_region
        _
      $region32: #{bert_base_uncased_forward.1} parent=11 // pred_fallthru
        _
      // Predicated region
      $region33: #{bert_base_uncased_forward.1} parent=11 // pred_check
        %p492 = pneg %p205
      $region34: #{bert_base_uncased_forward.1} parent=11 // pred_check_branch
        %494 = sbr.rel (%p492) target = $region36
      $region35: #{bert_base_uncased_forward.1} parent=11 // pred_region
        _
      $region36: #{bert_base_uncased_forward.1} parent=11 // pred_fallthru
        _
      // Predicated region
      $region37: #{bert_base_uncased_forward.1} parent=11 // pred_check
        %p495 = pneg %p226
      $region38: #{bert_base_uncased_forward.1} parent=11 // pred_check_branch
        %497 = sbr.rel (%p495) target = $region40
      $region39: #{bert_base_uncased_forward.1} parent=11 // pred_region
        _
      $region40: #{bert_base_uncased_forward.1} parent=11 // pred_fallthru
        _
      // Predicated region
      $region41: #{bert_base_uncased_forward.1} parent=11 // pred_check
        %p498 = pneg %p247
      $region42: #{bert_base_uncased_forward.1} parent=11 // pred_check_branch
        %500 = sbr.rel (%p498) target = $region44
      $region43: #{bert_base_uncased_forward.1} parent=11 // pred_region
        _
      $region44: #{bert_base_uncased_forward.1} parent=11 // pred_fallthru
        _
      // Predicated region
      $region45: #{bert_base_uncased_forward.1} parent=11 // pred_check
        %p501 = pneg %p268
      $region46: #{bert_base_uncased_forward.1} parent=11 // pred_check_branch
        %503 = sbr.rel (%p501) target = $region48
      $region47: #{bert_base_uncased_forward.1} parent=11 // pred_region
        _
      $region48: #{bert_base_uncased_forward.1} parent=11 // pred_fallthru
        _
      // Predicated region
      $region49: #{bert_base_uncased_forward.1} parent=11 // pred_check
        %p504 = pneg %p289
      $region50: #{bert_base_uncased_forward.1} parent=11 // pred_check_branch
        %506 = sbr.rel (%p504) target = $region52
      $region51: #{bert_base_uncased_forward.1} parent=11 // pred_region
        _
      $region52: #{bert_base_uncased_forward.1} parent=11 // pred_fallthru
        _
      // Predicated region
      $region53: #{bert_base_uncased_forward.1} parent=11 // pred_check
        %p507 = pneg %p310
      $region54: #{bert_base_uncased_forward.1} parent=11 // pred_check_branch
        %509 = sbr.rel (%p507) target = $region56
      $region55: #{bert_base_uncased_forward.1} parent=11 // pred_region
        _
      $region56: #{bert_base_uncased_forward.1} parent=11 // pred_fallthru
        _
      // Predicated region
      $region57: #{bert_base_uncased_forward.1} parent=11 // pred_check
        %p510 = pneg %p331
      $region58: #{bert_base_uncased_forward.1} parent=11 // pred_check_branch
        %512 = sbr.rel (%p510) target = $region60
      $region59: #{bert_base_uncased_forward.1} parent=11 // pred_region
        _
      $region60: #{bert_base_uncased_forward.1} parent=11 // pred_fallthru
        _
      // Predicated region
      $region61: #{bert_base_uncased_forward.1} parent=11 // pred_check
        %p513 = pneg %p352
      $region62: #{bert_base_uncased_forward.1} parent=11 // pred_check_branch
        %515 = sbr.rel (%p513) target = $region64
      $region63: #{bert_base_uncased_forward.1} parent=11 // pred_region
        _
      $region64: #{bert_base_uncased_forward.1} parent=11 // pred_fallthru
        _
      // Predicated region
      $region65: #{bert_base_uncased_forward.1} parent=11 // pred_check
        %p516 = pneg %p373
      $region66: #{bert_base_uncased_forward.1} parent=11 // pred_check_branch
        %518 = sbr.rel (%p516) target = $region68
      $region67: #{bert_base_uncased_forward.1} parent=11 // pred_region
        _
      $region68: #{bert_base_uncased_forward.1} parent=11 // pred_fallthru
        _
      // Predicated region
      $region69: #{bert_base_uncased_forward.1} parent=11 // pred_check
        %p519 = pneg %p394
      $region70: #{bert_base_uncased_forward.1} parent=11 // pred_check_branch
        %521 = sbr.rel (%p519) target = $region72
      $region71: #{bert_base_uncased_forward.1} parent=11 // pred_region
        _
      $region72: #{bert_base_uncased_forward.1} parent=11 // pred_fallthru
        _
      // Predicated region
      $region73: #{bert_base_uncased_forward.1} parent=11 // pred_check
        %p522 = pneg %p415
      $region74: #{bert_base_uncased_forward.1} parent=11 // pred_check_branch
        %524 = sbr.rel (%p522) target = $region76
      $region75: #{bert_base_uncased_forward.1} parent=11 // pred_region
        _
      $region76: #{bert_base_uncased_forward.1} parent=11 // pred_fallthru
        _
      // Predicated region
      $region77: #{bert_base_uncased_forward.1} parent=11 // pred_check
        %p525 = pneg %p436
      $region78: #{bert_base_uncased_forward.1} parent=11 // pred_check_branch
        %527 = sbr.rel (%p525) target = $region80
      $region79: #{bert_base_uncased_forward.1} parent=11 // pred_region
        _
      $region80: #{bert_base_uncased_forward.1} parent=11 // pred_fallthru
        _
    $region12: #{bert_base_uncased_forward.1} parent=5 // pred_fallthru
      _
    %p528 = scmp.lt.s32.totalorder %s27, 2
    // Predicated region
    $region81: #{bert_base_uncased_forward.1} parent=5 // pred_check
      %p529 = pneg %p528
    $region82: #{bert_base_uncased_forward.1} parent=5 // pred_check_branch
      %531 = sbr.rel (%p529) target = $region84
    $region83: #{bert_base_uncased_forward.1} parent=5 // pred_region
      // Predicated region
      $region85: #{bert_base_uncased_forward.1} parent=83 // pred_check
        %p532 = pneg %p47
      $region86: #{bert_base_uncased_forward.1} parent=83 // pred_check_branch
        %534 = sbr.rel (%p532) target = $region88
      $region87: #{bert_base_uncased_forward.1} parent=83 // pred_region
        %p535 = scmp.lt.s32.totalorder %s27, 1
        %s536 = scalar_select %p535, %s27, 1
        %s537 = smul.addr %s536, 8
        %s538 = scalar_lea.vmem %s0, %s537
      $region88: #{bert_base_uncased_forward.1} parent=83 // pred_fallthru
        _
      // Predicated region
      $region89: #{bert_base_uncased_forward.1} parent=83 // pred_check
        %p539 = pneg %p73
      $region90: #{bert_base_uncased_forward.1} parent=83 // pred_check_branch
        %541 = sbr.rel (%p539) target = $region92
      $region91: #{bert_base_uncased_forward.1} parent=83 // pred_region
        %p542 = scmp.lt.s32.totalorder %s27, 1
        %s543 = scalar_select %p542, %s27, 1
        %s544 = scalar_lea.vmem %s1, %s543
      $region92: #{bert_base_uncased_forward.1} parent=83 // pred_fallthru
        _
    $region84: #{bert_base_uncased_forward.1} parent=5 // pred_fallthru
      _
    %p545 = scmp.le.s32.totalorder 1, %s27
    %p546 = scmp.lt.s32.totalorder %s27, 3
    %p547 = pnand %p545, %p546
    %p548 = pneg %p547
    // Predicated region
    $region93: #{bert_base_uncased_forward.1} parent=5 // pred_check
      _
    $region94: #{bert_base_uncased_forward.1} parent=5 // pred_check_branch
      %550 = sbr.rel (%p547) target = $region96
    $region95: #{bert_base_uncased_forward.1} parent=5 // pred_region
      %s551 = ssub.s32 %s27, 1
      %p552 = scmp.lt.s32.totalorder %s32, 1
      %s553 = scalar_select %p552, %s32, 1
      %s554 = smul.addr %s553, 8
      %s555 = scalar_lea.vmem %s0, %s554
      %p556 = pneg %p53
      %p557 = pneg %p50
      %p558 = scmp.lt.s32.totalorder %s32, 1
      %s559 = scalar_select %p558, %s32, 1
      %s560 = scalar_lea.vmem %s1, %s559
      %p561 = pneg %p79
      %p562 = pneg %p76
      %p563 = pneg %p100
      %p564 = pneg %p97
      %p565 = pneg %p121
      %p566 = pneg %p118
      %p567 = pneg %p142
      %p568 = pneg %p139
      %p569 = pneg %p163
      %p570 = pneg %p160
      %p571 = pneg %p184
      %p572 = pneg %p181
      %p573 = pneg %p205
      %p574 = pneg %p202
      %p575 = pneg %p226
      %p576 = pneg %p223
      %p577 = pneg %p247
      %p578 = pneg %p244
      %p579 = pneg %p268
      %p580 = pneg %p265
      %p581 = pneg %p289
      %p582 = pneg %p286
      %p583 = pneg %p310
      %p584 = pneg %p307
      %p585 = pneg %p331
      %p586 = pneg %p328
      %p587 = pneg %p352
      %p588 = pneg %p349
      %p589 = pneg %p373
      %p590 = pneg %p370
      %p591 = pneg %p394
      %p592 = pneg %p391
      %p593 = pneg %p415
      %p594 = pneg %p412
      %p595 = pneg %p436
      %p596 = pneg %p433
      %p597 = pneg %p462
      %p598 = pneg %p459
      %p599 = scmp.lt.s32.totalorder %s32, 1
      %s600 = scalar_select %p599, %s32, 1
      %s601 = scalar_lea.vmem %s19, %s600
      %p602 = scmp.lt.s32.totalorder %s32, 1
      %s603 = scalar_select %p602, %s32, 1
      %s604 = smul.addr %s603, 8
      %s605 = scalar_lea.vmem %s0, %s604
      %p606 = scmp.lt.s32.totalorder %s32, 1
      %s607 = scalar_select %p606, %s32, 1
      %s608 = scalar_lea.vmem %s1, %s607
      %p609 = scmp.lt.s32.totalorder %s32, 1
      %s610 = scalar_select %p609, %s32, 1
      %s611 = scalar_lea.vmem %s19, %s610
      %v613 = vld [vmem:[%s605] sm:$0xff]
      %v614 = vld [vmem:[%s2] sm:$0x1]
      %v615 = vld [vmem:[%s3] sm:$0x1]
      %vm616 = vcmask 261120
      %v617 = vsel %vm616, %v613, 0.0
      %618 = vadd.xlane.f32.xlu0 %v617
      %v619 = vpop.xlane.xlu0 %618
      %v620 = vrcp.pop 32.0
      %v621 = vmul.f32 %v619, %v620
      %v622 = vsub.f32 %v613, %v621
      %v623 = vmul.f32 %v622, %v622
      %v624 = vsel %vm616, %v623, 0.0
      %625 = vadd.xlane.f32.xlu0 %v624
      %v626 = vpop.xlane.xlu0 %625
      %v627 = vmul.f32 %v626, %v620
      %v628 = vadd.f32 %v627, 1e-12
      %v629 = vrsqrt.pop %v628
      %v630 = vmul.f32 %v622, %v629
      %v632 = vlaneseq
      %v633 = vshrl.u32 %v632, 7
      %v634 = vsub.s32 0, %v633
      %v635 = vrot.slane %v614, %v634
      %v637 = vmul.f32 %v630, %v635
      %v639 = vlaneseq
      %v640 = vshrl.u32 %v639, 7
      %v641 = vsub.s32 0, %v640
      %v642 = vrot.slane %v615, %v641
      %v644 = vadd.f32 %v637, %v642
      %v645 = vld [vmem:[%s608] sm:$0x1]
      %v646 = vsub.f32 1.0, %v645
      %v647 = vmul.f32 %v646, -10000.0
      %v648 = vpack.c.bf16 %v644, %v644
      %v649 = vld [vmem:[%s4] sm:$0xf]
      %v650 = vld [vmem:[%s4 + $0x4] sm:$0xf]
      %v651 = vld [vmem:[%s4 + $0x8] sm:$0xf]
      %v652 = vld [vmem:[%s4 + $0xc] sm:$0xf]
      %v653 = vld [vmem:[%s5] sm:$0x1]
      %v655 = vlaneseq
      %v656 = vshrl.u32 %v655, 7
      %v657 = vsub.s32 0, %v656
      %v658 = vrot.slane %v653, %v657
      %v664 = vunpack.c.l.b16 %v649
      %v665 = vunpack.c.l.b16 %v650
      %v666 = vunpack.c.l.b16 %v651
      %v667 = vunpack.c.l.b16 %v652
      %v668 = vpack.c.b16 %v665, %v664
      %v669 = vpack.c.b16 %v667, %v666
      %v673 = vsel %vm616, %v648, 0
      %675 = vmatprep.subr.bf16.mxu0 0
      %676 = vmatpush1.bf16.msra.mxu0 0
      %677 = vmatprep.subr.bf16.mxu0 0
      %678 = vmatpush1.bf16.msra.mxu0 0
      %679 = vmatprep.subr.bf16.mxu0 0
      %680 = vmatpush1.bf16.msra.mxu0 0
      %681 = vmatprep.subr.bf16.mxu0 0
      %682 = vmatpush1.bf16.msra.mxu0 0
      %683 = vmatprep.subr.bf16.mxu0 0
      %684 = vmatpush1.bf16.msra.mxu0 0
      %685 = vmatprep.subr.bf16.mxu0 0
      %686 = vmatpush1.bf16.msra.mxu0 0
      %687 = vmatprep.subr.bf16.mxu0 0
      %688 = vmatpush1.bf16.msra.mxu0 %v669
      %689 = vmatprep.subr.bf16.mxu0 0
      %690 = vmatpush1.bf16.msra.mxu0 %v668
      %691 = vmatprep.subr.bf16.mxu0 0
      %692 = vmatpush2.bf16.msra.mxu0 0
      %693 = vmatprep.subr.bf16.mxu0 0
      %694 = vmatpush2.bf16.msra.mxu0 0
      %695 = vmatprep.subr.bf16.mxu0 0
      %696 = vmatpush2.bf16.msra.mxu0 0
      %697 = vmatprep.subr.bf16.mxu0 0
      %698 = vmatpush2.bf16.msra.mxu0 0
      %699 = vmatprep.subr.bf16.mxu0 0
      %700 = vmatpush2.bf16.msra.mxu0 0
      %701 = vmatprep.subr.bf16.mxu0 0
      %702 = vmatpush2.bf16.msra.mxu0 0
      %703 = vmatprep.subr.bf16.mxu0 0
      %704 = vmatpush2.bf16.msra.mxu0 0
      %705 = vmatprep.subr.bf16.mxu0 0
      %706 = vmatpush2.bf16.msra.mxu0 0
      %707 = vmatprep.mubr.bf16.mxu0 0
      %708 = vmatmul.mubr.bf16.gmra.mxu0 %v673
      %v709 = vpop.f32.mrf.mxu0
      %v710 = vadd.f32 %v658, %v709
      %v711 = vpop.f32.mrf.mxu0
      %v712 = vpop.f32.mrf.mxu0
      %v713 = vpop.f32.mrf.mxu0
      %714 = vdwg.mxu0
      %v715 = vld [vmem:[%s6] sm:$0xff]
      %v716 = vld [vmem:[%s6 + $0x8] sm:$0xff]
      %v717 = vld [vmem:[%s6 + $0x10] sm:$0xff]
      %v718 = vld [vmem:[%s6 + $0x18] sm:$0xff]
      %720 = vrot.lane.b32.xlu0 %v710, 96
      %v721 = vpop.permute.xlu0 %720
      %vm722 = vcmask 64512
      %v723 = vsel %vm722, %v710, 0
      %v725 = vsel %vm722, %v721, 0
      %727 = vmatprep.subr.mxu0 0.0
      %728 = vmatpush1.xpose.msra.mxu0 0.0
      %729 = vmatprep.subr.mxu0 0.0
      %730 = vmatpush1.xpose.msra.mxu0 0.0
      %731 = vmatprep.subr.mxu0 0.0
      %732 = vmatpush1.xpose.msra.mxu0 0.0
      %733 = vmatprep.subr.mxu0 0.0
      %734 = vmatpush1.xpose.msra.mxu0 0.0
      %735 = vmatprep.subr.mxu0 0.0
      %736 = vmatpush1.xpose.msra.mxu0 0.0
      %737 = vmatprep.subr.mxu0 0.0
      %738 = vmatpush1.xpose.msra.mxu0 0.0
      %739 = vmatprep.subr.mxu0 0.0
      %740 = vmatpush1.xpose.msra.mxu0 0.0
      %741 = vmatprep.subr.mxu0 0.0
      %742 = vmatpush1.xpose.msra.mxu0 0.0
      %743 = vmatprep.subr.mxu0 0.0
      %744 = vmatpush1.xpose.msra.mxu0 0.0
      %745 = vmatprep.subr.mxu0 0.0
      %746 = vmatpush1.xpose.msra.mxu0 0.0
      %747 = vmatprep.subr.mxu0 0.0
      %748 = vmatpush1.xpose.msra.mxu0 0.0
      %749 = vmatprep.subr.mxu0 0.0
      %750 = vmatpush1.xpose.msra.mxu0 0.0
      %751 = vmatprep.subr.mxu0 0.0
      %752 = vmatpush1.xpose.msra.mxu0 0.0
      %753 = vmatprep.subr.mxu0 0.0
      %754 = vmatpush1.xpose.msra.mxu0 0.0
      %755 = vmatprep.subr.mxu0 0.0
      %756 = vmatpush1.xpose.msra.mxu0 0.0
      %757 = vmatprep.subr.mxu0 0.0
      %758 = vmatpush1.xpose.msra.mxu0 %v725
      %759 = vmatprep.subr.mxu0 0.0
      %760 = vmatpush2.xpose.msra.mxu0 0.0
      %761 = vmatprep.subr.mxu0 0.0
      %762 = vmatpush2.xpose.msra.mxu0 0.0
      %763 = vmatprep.subr.mxu0 0.0
      %764 = vmatpush2.xpose.msra.mxu0 0.0
      %765 = vmatprep.subr.mxu0 0.0
      %766 = vmatpush2.xpose.msra.mxu0 0.0
      %767 = vmatprep.subr.mxu0 0.0
      %768 = vmatpush2.xpose.msra.mxu0 0.0
      %769 = vmatprep.subr.mxu0 0.0
      %770 = vmatpush2.xpose.msra.mxu0 0.0
      %771 = vmatprep.subr.mxu0 0.0
      %772 = vmatpush2.xpose.msra.mxu0 0.0
      %773 = vmatprep.subr.mxu0 0.0
      %774 = vmatpush2.xpose.msra.mxu0 0.0
      %775 = vmatprep.subr.mxu0 0.0
      %776 = vmatpush2.xpose.msra.mxu0 0.0
      %777 = vmatprep.subr.mxu0 0.0
      %778 = vmatpush2.xpose.msra.mxu0 0.0
      %779 = vmatprep.subr.mxu0 0.0
      %780 = vmatpush2.xpose.msra.mxu0 0.0
      %781 = vmatprep.subr.mxu0 0.0
      %782 = vmatpush2.xpose.msra.mxu0 0.0
      %783 = vmatprep.subr.mxu0 0.0
      %784 = vmatpush2.xpose.msra.mxu0 0.0
      %785 = vmatprep.subr.mxu0 0.0
      %786 = vmatpush2.xpose.msra.mxu0 0.0
      %787 = vmatprep.subr.mxu0 0.0
      %788 = vmatpush2.xpose.msra.mxu0 0.0
      %789 = vmatprep.subr.mxu0 0.0
      %790 = vmatpush2.xpose.msra.mxu0 0.0
      %791 = vmatprep.mubr.f32.mxu0 0.0
      %792 = vmatmul.mubr.f32.gmra.mxu0 %v723
      %v793 = vpop.f32.mrf.mxu0
      %v794 = vadd.f32 0.0, %v793
      %v795 = vpop.f32.mrf.mxu0
      %796 = vdwg.mxu0
      %v797 = vmul.f32 %v794, 0.35355338
      %v799 = vlaneseq
      %v800 = vshrl.u32 %v799, 7
      %v801 = vsub.s32 0, %v800
      %v802 = vrot.slane %v647, %v801
      %v804 = vadd.f32 %v797, %v802
      %v805 = vsel %vm722, %v804, -inf
      %806 = vmax.xlane.f32.xlu0 %v805
      %v807 = vpop.xlane.xlu0 %806
      %v808 = vsub.f32 %v804, %v807
      %v809 = vmul.f32 %v808, 1.442695
      %v810 = vpow.pop %v809
      %v811 = vsel %vm722, %v810, 0.0
      %812 = vadd.xlane.f32.xlu0 %v811
      %v813 = vpop.xlane.xlu0 %812
      %v814 = vrcp.pop %v813
      %v815 = vmul.f32 %v810, %v814
      %816 = vrot.lane.b32.xlu0 %v710, 64
      %v817 = vpop.permute.xlu0 %816
      %v820 = vsel %vm722, %v815, 0
      %822 = vmatprep.subr.mxu0 0.0
      %823 = vmatpush1.msra.mxu0 0.0
      %824 = vmatprep.subr.mxu0 0.0
      %825 = vmatpush1.msra.mxu0 0.0
      %826 = vmatprep.subr.mxu0 0.0
      %827 = vmatpush1.msra.mxu0 0.0
      %828 = vmatprep.subr.mxu0 0.0
      %829 = vmatpush1.msra.mxu0 0.0
      %830 = vmatprep.subr.mxu0 0.0
      %831 = vmatpush1.msra.mxu0 0.0
      %832 = vmatprep.subr.mxu0 0.0
      %833 = vmatpush1.msra.mxu0 0.0
      %834 = vmatprep.subr.mxu0 0.0
      %835 = vmatpush1.msra.mxu0 0.0
      %836 = vmatprep.subr.mxu0 0.0
      %837 = vmatpush1.msra.mxu0 0.0
      %838 = vmatprep.subr.mxu0 0.0
      %839 = vmatpush1.msra.mxu0 0.0
      %840 = vmatprep.subr.mxu0 0.0
      %841 = vmatpush1.msra.mxu0 0.0
      %842 = vmatprep.subr.mxu0 0.0
      %843 = vmatpush1.msra.mxu0 0.0
      %844 = vmatprep.subr.mxu0 0.0
      %845 = vmatpush1.msra.mxu0 0.0
      %846 = vmatprep.subr.mxu0 0.0
      %847 = vmatpush1.msra.mxu0 0.0
      %848 = vmatprep.subr.mxu0 0.0
      %849 = vmatpush1.msra.mxu0 0.0
      %850 = vmatprep.subr.mxu0 0.0
      %851 = vmatpush1.msra.mxu0 0.0
      %852 = vmatprep.subr.mxu0 0.0
      %853 = vmatpush1.msra.mxu0 %v817
      %854 = vmatprep.subr.mxu0 0.0
      %855 = vmatpush2.msra.mxu0 0.0
      %856 = vmatprep.subr.mxu0 0.0
      %857 = vmatpush2.msra.mxu0 0.0
      %858 = vmatprep.subr.mxu0 0.0
      %859 = vmatpush2.msra.mxu0 0.0
      %860 = vmatprep.subr.mxu0 0.0
      %861 = vmatpush2.msra.mxu0 0.0
      %862 = vmatprep.subr.mxu0 0.0
      %863 = vmatpush2.msra.mxu0 0.0
      %864 = vmatprep.subr.mxu0 0.0
      %865 = vmatpush2.msra.mxu0 0.0
      %866 = vmatprep.subr.mxu0 0.0
      %867 = vmatpush2.msra.mxu0 0.0
      %868 = vmatprep.subr.mxu0 0.0
      %869 = vmatpush2.msra.mxu0 0.0
      %870 = vmatprep.subr.mxu0 0.0
      %871 = vmatpush2.msra.mxu0 0.0
      %872 = vmatprep.subr.mxu0 0.0
      %873 = vmatpush2.msra.mxu0 0.0
      %874 = vmatprep.subr.mxu0 0.0
      %875 = vmatpush2.msra.mxu0 0.0
      %876 = vmatprep.subr.mxu0 0.0
      %877 = vmatpush2.msra.mxu0 0.0
      %878 = vmatprep.subr.mxu0 0.0
      %879 = vmatpush2.msra.mxu0 0.0
      %880 = vmatprep.subr.mxu0 0.0
      %881 = vmatpush2.msra.mxu0 0.0
      %882 = vmatprep.subr.mxu0 0.0
      %883 = vmatpush2.msra.mxu0 0.0
      %884 = vmatprep.subr.mxu0 0.0
      %885 = vmatpush2.msra.mxu0 0.0
      %886 = vmatprep.mubr.f32.mxu0 0.0
      %887 = vmatmul.mubr.f32.gmra.mxu0 %v820
      %v888 = vpop.f32.mrf.mxu0
      %v889 = vadd.f32 0.0, %v888
      %v890 = vpop.f32.mrf.mxu0
      %891 = vdwg.mxu0
      %892 = vrot.lane.b32.xlu0 %v710, 120
      %v893 = vpop.permute.xlu0 %892
      %894 = vrot.lane.b32.xlu0 %v710, 88
      %v895 = vpop.permute.xlu0 %894
      %v896 = vsel %vm722, %v893, 0
      %v898 = vsel %vm722, %v895, 0
      %900 = vmatprep.subr.mxu0 0.0
      %901 = vmatpush1.xpose.msra.mxu0 0.0
      %902 = vmatprep.subr.mxu0 0.0
      %903 = vmatpush1.xpose.msra.mxu0 0.0
      %904 = vmatprep.subr.mxu0 0.0
      %905 = vmatpush1.xpose.msra.mxu0 0.0
      %906 = vmatprep.subr.mxu0 0.0
      %907 = vmatpush1.xpose.msra.mxu0 0.0
      %908 = vmatprep.subr.mxu0 0.0
      %909 = vmatpush1.xpose.msra.mxu0 0.0
      %910 = vmatprep.subr.mxu0 0.0
      %911 = vmatpush1.xpose.msra.mxu0 0.0
      %912 = vmatprep.subr.mxu0 0.0
      %913 = vmatpush1.xpose.msra.mxu0 0.0
      %914 = vmatprep.subr.mxu0 0.0
      %915 = vmatpush1.xpose.msra.mxu0 0.0
      %916 = vmatprep.subr.mxu0 0.0
      %917 = vmatpush1.xpose.msra.mxu0 0.0
      %918 = vmatprep.subr.mxu0 0.0
      %919 = vmatpush1.xpose.msra.mxu0 0.0
      %920 = vmatprep.subr.mxu0 0.0
      %921 = vmatpush1.xpose.msra.mxu0 0.0
      %922 = vmatprep.subr.mxu0 0.0
      %923 = vmatpush1.xpose.msra.mxu0 0.0
      %924 = vmatprep.subr.mxu0 0.0
      %925 = vmatpush1.xpose.msra.mxu0 0.0
      %926 = vmatprep.subr.mxu0 0.0
      %927 = vmatpush1.xpose.msra.mxu0 0.0
      %928 = vmatprep.subr.mxu0 0.0
      %929 = vmatpush1.xpose.msra.mxu0 0.0
      %930 = vmatprep.subr.mxu0 0.0
      %931 = vmatpush1.xpose.msra.mxu0 %v898
      %932 = vmatprep.subr.mxu0 0.0
      %933 = vmatpush2.xpose.msra.mxu0 0.0
      %934 = vmatprep.subr.mxu0 0.0
      %935 = vmatpush2.xpose.msra.mxu0 0.0
      %936 = vmatprep.subr.mxu0 0.0
      %937 = vmatpush2.xpose.msra.mxu0 0.0
      %938 = vmatprep.subr.mxu0 0.0
      %939 = vmatpush2.xpose.msra.mxu0 0.0
      %940 = vmatprep.subr.mxu0 0.0
      %941 = vmatpush2.xpose.msra.mxu0 0.0
      %942 = vmatprep.subr.mxu0 0.0
      %943 = vmatpush2.xpose.msra.mxu0 0.0
      %944 = vmatprep.subr.mxu0 0.0
      %945 = vmatpush2.xpose.msra.mxu0 0.0
      %946 = vmatprep.subr.mxu0 0.0
      %947 = vmatpush2.xpose.msra.mxu0 0.0
      %948 = vmatprep.subr.mxu0 0.0
      %949 = vmatpush2.xpose.msra.mxu0 0.0
      %950 = vmatprep.subr.mxu0 0.0
      %951 = vmatpush2.xpose.msra.mxu0 0.0
      %952 = vmatprep.subr.mxu0 0.0
      %953 = vmatpush2.xpose.msra.mxu0 0.0
      %954 = vmatprep.subr.mxu0 0.0
      %955 = vmatpush2.xpose.msra.mxu0 0.0
      %956 = vmatprep.subr.mxu0 0.0
      %957 = vmatpush2.xpose.msra.mxu0 0.0
      %958 = vmatprep.subr.mxu0 0.0
      %959 = vmatpush2.xpose.msra.mxu0 0.0
      %960 = vmatprep.subr.mxu0 0.0
      %961 = vmatpush2.xpose.msra.mxu0 0.0
      %962 = vmatprep.subr.mxu0 0.0
      %963 = vmatpush2.xpose.msra.mxu0 0.0
      %964 = vmatprep.mubr.f32.mxu0 0.0
      %965 = vmatmul.mubr.f32.gmra.mxu0 %v896
      %v966 = vpop.f32.mrf.mxu0
      %v967 = vadd.f32 0.0, %v966
      %v968 = vpop.f32.mrf.mxu0
      %969 = vdwg.mxu0
      %v970 = vmul.f32 %v967, 0.35355338
      %v971 = vadd.f32 %v970, %v802
      %v972 = vsel %vm722, %v971, -inf
      %973 = vmax.xlane.f32.xlu0 %v972
      %v974 = vpop.xlane.xlu0 %973
      %v975 = vsub.f32 %v971, %v974
      %v976 = vmul.f32 %v975, 1.442695
      %v977 = vpow.pop %v976
      %v978 = vsel %vm722, %v977, 0.0
      %979 = vadd.xlane.f32.xlu0 %v978
      %v980 = vpop.xlane.xlu0 %979
      %v981 = vrcp.pop %v980
      %v982 = vmul.f32 %v977, %v981
      %983 = vrot.lane.b32.xlu0 %v710, 56
      %v984 = vpop.permute.xlu0 %983
      %v987 = vsel %vm722, %v982, 0
      %989 = vmatprep.subr.mxu0 0.0
      %990 = vmatpush1.msra.mxu0 0.0
      %991 = vmatprep.subr.mxu0 0.0
      %992 = vmatpush1.msra.mxu0 0.0
      %993 = vmatprep.subr.mxu0 0.0
      %994 = vmatpush1.msra.mxu0 0.0
      %995 = vmatprep.subr.mxu0 0.0
      %996 = vmatpush1.msra.mxu0 0.0
      %997 = vmatprep.subr.mxu0 0.0
      %998 = vmatpush1.msra.mxu0 0.0
      %999 = vmatprep.subr.mxu0 0.0
      %1000 = vmatpush1.msra.mxu0 0.0
      %1001 = vmatprep.subr.mxu0 0.0
      %1002 = vmatpush1.msra.mxu0 0.0
      %1003 = vmatprep.subr.mxu0 0.0
      %1004 = vmatpush1.msra.mxu0 0.0
      %1005 = vmatprep.subr.mxu0 0.0
      %1006 = vmatpush1.msra.mxu0 0.0
      %1007 = vmatprep.subr.mxu0 0.0
      %1008 = vmatpush1.msra.mxu0 0.0
      %1009 = vmatprep.subr.mxu0 0.0
      %1010 = vmatpush1.msra.mxu0 0.0
      %1011 = vmatprep.subr.mxu0 0.0
      %1012 = vmatpush1.msra.mxu0 0.0
      %1013 = vmatprep.subr.mxu0 0.0
      %1014 = vmatpush1.msra.mxu0 0.0
      %1015 = vmatprep.subr.mxu0 0.0
      %1016 = vmatpush1.msra.mxu0 0.0
      %1017 = vmatprep.subr.mxu0 0.0
      %1018 = vmatpush1.msra.mxu0 0.0
      %1019 = vmatprep.subr.mxu0 0.0
      %1020 = vmatpush1.msra.mxu0 %v984
      %1021 = vmatprep.subr.mxu0 0.0
      %1022 = vmatpush2.msra.mxu0 0.0
      %1023 = vmatprep.subr.mxu0 0.0
      %1024 = vmatpush2.msra.mxu0 0.0
      %1025 = vmatprep.subr.mxu0 0.0
      %1026 = vmatpush2.msra.mxu0 0.0
      %1027 = vmatprep.subr.mxu0 0.0
      %1028 = vmatpush2.msra.mxu0 0.0
      %1029 = vmatprep.subr.mxu0 0.0
      %1030 = vmatpush2.msra.mxu0 0.0
      %1031 = vmatprep.subr.mxu0 0.0
      %1032 = vmatpush2.msra.mxu0 0.0
      %1033 = vmatprep.subr.mxu0 0.0
      %1034 = vmatpush2.msra.mxu0 0.0
      %1035 = vmatprep.subr.mxu0 0.0
      %1036 = vmatpush2.msra.mxu0 0.0
      %1037 = vmatprep.subr.mxu0 0.0
      %1038 = vmatpush2.msra.mxu0 0.0
      %1039 = vmatprep.subr.mxu0 0.0
      %1040 = vmatpush2.msra.mxu0 0.0
      %1041 = vmatprep.subr.mxu0 0.0
      %1042 = vmatpush2.msra.mxu0 0.0
      %1043 = vmatprep.subr.mxu0 0.0
      %1044 = vmatpush2.msra.mxu0 0.0
      %1045 = vmatprep.subr.mxu0 0.0
      %1046 = vmatpush2.msra.mxu0 0.0
      %1047 = vmatprep.subr.mxu0 0.0
      %1048 = vmatpush2.msra.mxu0 0.0
      %1049 = vmatprep.subr.mxu0 0.0
      %1050 = vmatpush2.msra.mxu0 0.0
      %1051 = vmatprep.subr.mxu0 0.0
      %1052 = vmatpush2.msra.mxu0 0.0
      %1053 = vmatprep.mubr.f32.mxu0 0.0
      %1054 = vmatmul.mubr.f32.gmra.mxu0 %v987
      %v1055 = vpop.f32.mrf.mxu0
      %v1056 = vadd.f32 0.0, %v1055
      %v1057 = vpop.f32.mrf.mxu0
      %1058 = vdwg.mxu0
      %v1060 = vsel %vm722, %v1056, 0
      %1062 = vmatprep.subr.mxu0 0.0
      %1063 = vmatpush1.msra.mxu0 0.0
      %1064 = vmatprep.subr.mxu0 0.0
      %1065 = vmatpush1.msra.mxu0 0.0
      %1066 = vmatprep.subr.mxu0 0.0
      %1067 = vmatpush1.msra.mxu0 0.0
      %1068 = vmatprep.subr.mxu0 0.0
      %1069 = vmatpush1.msra.mxu0 0.0
      %1070 = vmatprep.subr.mxu0 0.0
      %1071 = vmatpush1.msra.mxu0 0.0
      %1072 = vmatprep.subr.mxu0 0.0
      %1073 = vmatpush1.msra.mxu0 0.0
      %1074 = vmatprep.subr.mxu0 0.0
      %1075 = vmatpush1.msra.mxu0 0.0
      %1076 = vmatprep.subr.mxu0 0.0
      %1077 = vmatpush1.msra.mxu0 0.0
      %1078 = vmatprep.subr.mxu0 0.0
      %1079 = vmatpush1.msra.mxu0 0.0
      %1080 = vmatprep.subr.mxu0 0.0
      %1081 = vmatpush1.msra.mxu0 0.0
      %1082 = vmatprep.subr.mxu0 0.0
      %1083 = vmatpush1.msra.mxu0 0.0
      %1084 = vmatprep.subr.mxu0 0.0
      %1085 = vmatpush1.msra.mxu0 0.0
      %1086 = vmatprep.subr.mxu0 0.0
      %1087 = vmatpush1.msra.mxu0 0.0
      %1088 = vmatprep.subr.mxu0 0.0
      %1089 = vmatpush1.msra.mxu0 0.0
      %1090 = vmatprep.subr.mxu0 0.0
      %1091 = vmatpush1.msra.mxu0 0.0
      %1092 = vmatprep.subr.mxu0 0.0
      %1093 = vmatpush1.msra.mxu0 %v716
      %1094 = vmatprep.subr.mxu0 0.0
      %1095 = vmatpush2.msra.mxu0 0.0
      %1096 = vmatprep.subr.mxu0 0.0
      %1097 = vmatpush2.msra.mxu0 0.0
      %1098 = vmatprep.subr.mxu0 0.0
      %1099 = vmatpush2.msra.mxu0 0.0
      %1100 = vmatprep.subr.mxu0 0.0
      %1101 = vmatpush2.msra.mxu0 0.0
      %1102 = vmatprep.subr.mxu0 0.0
      %1103 = vmatpush2.msra.mxu0 0.0
      %1104 = vmatprep.subr.mxu0 0.0
      %1105 = vmatpush2.msra.mxu0 0.0
      %1106 = vmatprep.subr.mxu0 0.0
      %1107 = vmatpush2.msra.mxu0 0.0
      %1108 = vmatprep.subr.mxu0 0.0
      %1109 = vmatpush2.msra.mxu0 0.0
      %1110 = vmatprep.subr.mxu0 0.0
      %1111 = vmatpush2.msra.mxu0 0.0
      %1112 = vmatprep.subr.mxu0 0.0
      %1113 = vmatpush2.msra.mxu0 0.0
      %1114 = vmatprep.subr.mxu0 0.0
      %1115 = vmatpush2.msra.mxu0 0.0
      %1116 = vmatprep.subr.mxu0 0.0
      %1117 = vmatpush2.msra.mxu0 0.0
      %1118 = vmatprep.subr.mxu0 0.0
      %1119 = vmatpush2.msra.mxu0 0.0
      %1120 = vmatprep.subr.mxu0 0.0
      %1121 = vmatpush2.msra.mxu0 0.0
      %1122 = vmatprep.subr.mxu0 0.0
      %1123 = vmatpush2.msra.mxu0 0.0
      %1124 = vmatprep.subr.mxu0 0.0
      %1125 = vmatpush2.msra.mxu0 0.0
      %1126 = vmatprep.mubr.f32.mxu0 0.0
      %1127 = vmatmul.mubr.f32.gmra.mxu0 %v1060
      %v1128 = vpop.f32.mrf.mxu0
      %v1129 = vadd.f32 0.0, %v1128
      %v1130 = vpop.f32.mrf.mxu0
      %1131 = vdwg.mxu0
      %v1133 = vsel %vm722, %v889, 0
      %1135 = vmatprep.subr.mxu0 0.0
      %1136 = vmatpush1.msra.mxu0 0.0
      %1137 = vmatprep.subr.mxu0 0.0
      %1138 = vmatpush1.msra.mxu0 0.0
      %1139 = vmatprep.subr.mxu0 0.0
      %1140 = vmatpush1.msra.mxu0 0.0
      %1141 = vmatprep.subr.mxu0 0.0
      %1142 = vmatpush1.msra.mxu0 0.0
      %1143 = vmatprep.subr.mxu0 0.0
      %1144 = vmatpush1.msra.mxu0 0.0
      %1145 = vmatprep.subr.mxu0 0.0
      %1146 = vmatpush1.msra.mxu0 0.0
      %1147 = vmatprep.subr.mxu0 0.0
      %1148 = vmatpush1.msra.mxu0 0.0
      %1149 = vmatprep.subr.mxu0 0.0
      %1150 = vmatpush1.msra.mxu0 0.0
      %1151 = vmatprep.subr.mxu0 0.0
      %1152 = vmatpush1.msra.mxu0 0.0
      %1153 = vmatprep.subr.mxu0 0.0
      %1154 = vmatpush1.msra.mxu0 0.0
      %1155 = vmatprep.subr.mxu0 0.0
      %1156 = vmatpush1.msra.mxu0 0.0
      %1157 = vmatprep.subr.mxu0 0.0
      %1158 = vmatpush1.msra.mxu0 0.0
      %1159 = vmatprep.subr.mxu0 0.0
      %1160 = vmatpush1.msra.mxu0 0.0
      %1161 = vmatprep.subr.mxu0 0.0
      %1162 = vmatpush1.msra.mxu0 0.0
      %1163 = vmatprep.subr.mxu0 0.0
      %1164 = vmatpush1.msra.mxu0 0.0
      %1165 = vmatprep.subr.mxu0 0.0
      %1166 = vmatpush1.msra.mxu0 %v715
      %1167 = vmatprep.subr.mxu0 0.0
      %1168 = vmatpush2.msra.mxu0 0.0
      %1169 = vmatprep.subr.mxu0 0.0
      %1170 = vmatpush2.msra.mxu0 0.0
      %1171 = vmatprep.subr.mxu0 0.0
      %1172 = vmatpush2.msra.mxu0 0.0
      %1173 = vmatprep.subr.mxu0 0.0
      %1174 = vmatpush2.msra.mxu0 0.0
      %1175 = vmatprep.subr.mxu0 0.0
      %1176 = vmatpush2.msra.mxu0 0.0
      %1177 = vmatprep.subr.mxu0 0.0
      %1178 = vmatpush2.msra.mxu0 0.0
      %1179 = vmatprep.subr.mxu0 0.0
      %1180 = vmatpush2.msra.mxu0 0.0
      %1181 = vmatprep.subr.mxu0 0.0
      %1182 = vmatpush2.msra.mxu0 0.0
      %1183 = vmatprep.subr.mxu0 0.0
      %1184 = vmatpush2.msra.mxu0 0.0
      %1185 = vmatprep.subr.mxu0 0.0
      %1186 = vmatpush2.msra.mxu0 0.0
      %1187 = vmatprep.subr.mxu0 0.0
      %1188 = vmatpush2.msra.mxu0 0.0
      %1189 = vmatprep.subr.mxu0 0.0
      %1190 = vmatpush2.msra.mxu0 0.0
      %1191 = vmatprep.subr.mxu0 0.0
      %1192 = vmatpush2.msra.mxu0 0.0
      %1193 = vmatprep.subr.mxu0 0.0
      %1194 = vmatpush2.msra.mxu0 0.0
      %1195 = vmatprep.subr.mxu0 0.0
      %1196 = vmatpush2.msra.mxu0 0.0
      %1197 = vmatprep.subr.mxu0 0.0
      %1198 = vmatpush2.msra.mxu0 0.0
      %1199 = vmatprep.mubr.f32.mxu0 0.0
      %1200 = vmatmul.mubr.f32.gmra.mxu0 %v1133
      %v1201 = vpop.f32.mrf.mxu0
      %v1202 = vadd.f32 %v1129, %v1201
      %v1203 = vpop.f32.mrf.mxu0
      %1204 = vdwg.mxu0
      %1205 = vrot.lane.b32.xlu0 %v710, 112
      %v1206 = vpop.permute.xlu0 %1205
      %1207 = vrot.lane.b32.xlu0 %v710, 80
      %v1208 = vpop.permute.xlu0 %1207
      %v1209 = vsel %vm722, %v1206, 0
      %v1211 = vsel %vm722, %v1208, 0
      %1213 = vmatprep.subr.mxu0 0.0
      %1214 = vmatpush1.xpose.msra.mxu0 0.0
      %1215 = vmatprep.subr.mxu0 0.0
      %1216 = vmatpush1.xpose.msra.mxu0 0.0
      %1217 = vmatprep.subr.mxu0 0.0
      %1218 = vmatpush1.xpose.msra.mxu0 0.0
      %1219 = vmatprep.subr.mxu0 0.0
      %1220 = vmatpush1.xpose.msra.mxu0 0.0
      %1221 = vmatprep.subr.mxu0 0.0
      %1222 = vmatpush1.xpose.msra.mxu0 0.0
      %1223 = vmatprep.subr.mxu0 0.0
      %1224 = vmatpush1.xpose.msra.mxu0 0.0
      %1225 = vmatprep.subr.mxu0 0.0
      %1226 = vmatpush1.xpose.msra.mxu0 0.0
      %1227 = vmatprep.subr.mxu0 0.0
      %1228 = vmatpush1.xpose.msra.mxu0 0.0
      %1229 = vmatprep.subr.mxu0 0.0
      %1230 = vmatpush1.xpose.msra.mxu0 0.0
      %1231 = vmatprep.subr.mxu0 0.0
      %1232 = vmatpush1.xpose.msra.mxu0 0.0
      %1233 = vmatprep.subr.mxu0 0.0
      %1234 = vmatpush1.xpose.msra.mxu0 0.0
      %1235 = vmatprep.subr.mxu0 0.0
      %1236 = vmatpush1.xpose.msra.mxu0 0.0
      %1237 = vmatprep.subr.mxu0 0.0
      %1238 = vmatpush1.xpose.msra.mxu0 0.0
      %1239 = vmatprep.subr.mxu0 0.0
      %1240 = vmatpush1.xpose.msra.mxu0 0.0
      %1241 = vmatprep.subr.mxu0 0.0
      %1242 = vmatpush1.xpose.msra.mxu0 0.0
      %1243 = vmatprep.subr.mxu0 0.0
      %1244 = vmatpush1.xpose.msra.mxu0 %v1211
      %1245 = vmatprep.subr.mxu0 0.0
      %1246 = vmatpush2.xpose.msra.mxu0 0.0
      %1247 = vmatprep.subr.mxu0 0.0
      %1248 = vmatpush2.xpose.msra.mxu0 0.0
      %1249 = vmatprep.subr.mxu0 0.0
      %1250 = vmatpush2.xpose.msra.mxu0 0.0
      %1251 = vmatprep.subr.mxu0 0.0
      %1252 = vmatpush2.xpose.msra.mxu0 0.0
      %1253 = vmatprep.subr.mxu0 0.0
      %1254 = vmatpush2.xpose.msra.mxu0 0.0
      %1255 = vmatprep.subr.mxu0 0.0
      %1256 = vmatpush2.xpose.msra.mxu0 0.0
      %1257 = vmatprep.subr.mxu0 0.0
      %1258 = vmatpush2.xpose.msra.mxu0 0.0
      %1259 = vmatprep.subr.mxu0 0.0
      %1260 = vmatpush2.xpose.msra.mxu0 0.0
      %1261 = vmatprep.subr.mxu0 0.0
      %1262 = vmatpush2.xpose.msra.mxu0 0.0
      %1263 = vmatprep.subr.mxu0 0.0
      %1264 = vmatpush2.xpose.msra.mxu0 0.0
      %1265 = vmatprep.subr.mxu0 0.0
      %1266 = vmatpush2.xpose.msra.mxu0 0.0
      %1267 = vmatprep.subr.mxu0 0.0
      %1268 = vmatpush2.xpose.msra.mxu0 0.0
      %1269 = vmatprep.subr.mxu0 0.0
      %1270 = vmatpush2.xpose.msra.mxu0 0.0
      %1271 = vmatprep.subr.mxu0 0.0
      %1272 = vmatpush2.xpose.msra.mxu0 0.0
      %1273 = vmatprep.subr.mxu0 0.0
      %1274 = vmatpush2.xpose.msra.mxu0 0.0
      %1275 = vmatprep.subr.mxu0 0.0
      %1276 = vmatpush2.xpose.msra.mxu0 0.0
      %1277 = vmatprep.mubr.f32.mxu0 0.0
      %1278 = vmatmul.mubr.f32.gmra.mxu0 %v1209
      %v1279 = vpop.f32.mrf.mxu0
      %v1280 = vadd.f32 0.0, %v1279
      %v1281 = vpop.f32.mrf.mxu0
      %1282 = vdwg.mxu0
      %v1283 = vmul.f32 %v1280, 0.35355338
      %v1284 = vadd.f32 %v1283, %v802
      %v1285 = vsel %vm722, %v1284, -inf
      %1286 = vmax.xlane.f32.xlu0 %v1285
      %v1287 = vpop.xlane.xlu0 %1286
      %v1288 = vsub.f32 %v1284, %v1287
      %v1289 = vmul.f32 %v1288, 1.442695
      %v1290 = vpow.pop %v1289
      %v1291 = vsel %vm722, %v1290, 0.0
      %1292 = vadd.xlane.f32.xlu0 %v1291
      %v1293 = vpop.xlane.xlu0 %1292
      %v1294 = vrcp.pop %v1293
      %v1295 = vmul.f32 %v1290, %v1294
      %1296 = vrot.lane.b32.xlu0 %v710, 48
      %v1297 = vpop.permute.xlu0 %1296
      %v1300 = vsel %vm722, %v1295, 0
      %1302 = vmatprep.subr.mxu0 0.0
      %1303 = vmatpush1.msra.mxu0 0.0
      %1304 = vmatprep.subr.mxu0 0.0
      %1305 = vmatpush1.msra.mxu0 0.0
      %1306 = vmatprep.subr.mxu0 0.0
      %1307 = vmatpush1.msra.mxu0 0.0
      %1308 = vmatprep.subr.mxu0 0.0
      %1309 = vmatpush1.msra.mxu0 0.0
      %1310 = vmatprep.subr.mxu0 0.0
      %1311 = vmatpush1.msra.mxu0 0.0
      %1312 = vmatprep.subr.mxu0 0.0
      %1313 = vmatpush1.msra.mxu0 0.0
      %1314 = vmatprep.subr.mxu0 0.0
      %1315 = vmatpush1.msra.mxu0 0.0
      %1316 = vmatprep.subr.mxu0 0.0
      %1317 = vmatpush1.msra.mxu0 0.0
      %1318 = vmatprep.subr.mxu0 0.0
      %1319 = vmatpush1.msra.mxu0 0.0
      %1320 = vmatprep.subr.mxu0 0.0
      %1321 = vmatpush1.msra.mxu0 0.0
      %1322 = vmatprep.subr.mxu0 0.0
      %1323 = vmatpush1.msra.mxu0 0.0
      %1324 = vmatprep.subr.mxu0 0.0
      %1325 = vmatpush1.msra.mxu0 0.0
      %1326 = vmatprep.subr.mxu0 0.0
      %1327 = vmatpush1.msra.mxu0 0.0
      %1328 = vmatprep.subr.mxu0 0.0
      %1329 = vmatpush1.msra.mxu0 0.0
      %1330 = vmatprep.subr.mxu0 0.0
      %1331 = vmatpush1.msra.mxu0 0.0
      %1332 = vmatprep.subr.mxu0 0.0
      %1333 = vmatpush1.msra.mxu0 %v1297
      %1334 = vmatprep.subr.mxu0 0.0
      %1335 = vmatpush2.msra.mxu0 0.0
      %1336 = vmatprep.subr.mxu0 0.0
      %1337 = vmatpush2.msra.mxu0 0.0
      %1338 = vmatprep.subr.mxu0 0.0
      %1339 = vmatpush2.msra.mxu0 0.0
      %1340 = vmatprep.subr.mxu0 0.0
      %1341 = vmatpush2.msra.mxu0 0.0
      %1342 = vmatprep.subr.mxu0 0.0
      %1343 = vmatpush2.msra.mxu0 0.0
      %1344 = vmatprep.subr.mxu0 0.0
      %1345 = vmatpush2.msra.mxu0 0.0
      %1346 = vmatprep.subr.mxu0 0.0
      %1347 = vmatpush2.msra.mxu0 0.0
      %1348 = vmatprep.subr.mxu0 0.0
      %1349 = vmatpush2.msra.mxu0 0.0
      %1350 = vmatprep.subr.mxu0 0.0
      %1351 = vmatpush2.msra.mxu0 0.0
      %1352 = vmatprep.subr.mxu0 0.0
      %1353 = vmatpush2.msra.mxu0 0.0
      %1354 = vmatprep.subr.mxu0 0.0
      %1355 = vmatpush2.msra.mxu0 0.0
      %1356 = vmatprep.subr.mxu0 0.0
      %1357 = vmatpush2.msra.mxu0 0.0
      %1358 = vmatprep.subr.mxu0 0.0
      %1359 = vmatpush2.msra.mxu0 0.0
      %1360 = vmatprep.subr.mxu0 0.0
      %1361 = vmatpush2.msra.mxu0 0.0
      %1362 = vmatprep.subr.mxu0 0.0
      %1363 = vmatpush2.msra.mxu0 0.0
      %1364 = vmatprep.subr.mxu0 0.0
      %1365 = vmatpush2.msra.mxu0 0.0
      %1366 = vmatprep.mubr.f32.mxu0 0.0
      %1367 = vmatmul.mubr.f32.gmra.mxu0 %v1300
      %v1368 = vpop.f32.mrf.mxu0
      %v1369 = vadd.f32 0.0, %v1368
      %v1370 = vpop.f32.mrf.mxu0
      %1371 = vdwg.mxu0
      %v1373 = vsel %vm722, %v1369, 0
      %1375 = vmatprep.subr.mxu0 0.0
      %1376 = vmatpush1.msra.mxu0 0.0
      %1377 = vmatprep.subr.mxu0 0.0
      %1378 = vmatpush1.msra.mxu0 0.0
      %1379 = vmatprep.subr.mxu0 0.0
      %1380 = vmatpush1.msra.mxu0 0.0
      %1381 = vmatprep.subr.mxu0 0.0
      %1382 = vmatpush1.msra.mxu0 0.0
      %1383 = vmatprep.subr.mxu0 0.0
      %1384 = vmatpush1.msra.mxu0 0.0
      %1385 = vmatprep.subr.mxu0 0.0
      %1386 = vmatpush1.msra.mxu0 0.0
      %1387 = vmatprep.subr.mxu0 0.0
      %1388 = vmatpush1.msra.mxu0 0.0
      %1389 = vmatprep.subr.mxu0 0.0
      %1390 = vmatpush1.msra.mxu0 0.0
      %1391 = vmatprep.subr.mxu0 0.0
      %1392 = vmatpush1.msra.mxu0 0.0
      %1393 = vmatprep.subr.mxu0 0.0
      %1394 = vmatpush1.msra.mxu0 0.0
      %1395 = vmatprep.subr.mxu0 0.0
      %1396 = vmatpush1.msra.mxu0 0.0
      %1397 = vmatprep.subr.mxu0 0.0
      %1398 = vmatpush1.msra.mxu0 0.0
      %1399 = vmatprep.subr.mxu0 0.0
      %1400 = vmatpush1.msra.mxu0 0.0
      %1401 = vmatprep.subr.mxu0 0.0
      %1402 = vmatpush1.msra.mxu0 0.0
      %1403 = vmatprep.subr.mxu0 0.0
      %1404 = vmatpush1.msra.mxu0 0.0
      %1405 = vmatprep.subr.mxu0 0.0
      %1406 = vmatpush1.msra.mxu0 %v717
      %1407 = vmatprep.subr.mxu0 0.0
      %1408 = vmatpush2.msra.mxu0 0.0
      %1409 = vmatprep.subr.mxu0 0.0
      %1410 = vmatpush2.msra.mxu0 0.0
      %1411 = vmatprep.subr.mxu0 0.0
      %1412 = vmatpush2.msra.mxu0 0.0
      %1413 = vmatprep.subr.mxu0 0.0
      %1414 = vmatpush2.msra.mxu0 0.0
      %1415 = vmatprep.subr.mxu0 0.0
      %1416 = vmatpush2.msra.mxu0 0.0
      %1417 = vmatprep.subr.mxu0 0.0
      %1418 = vmatpush2.msra.mxu0 0.0
      %1419 = vmatprep.subr.mxu0 0.0
      %1420 = vmatpush2.msra.mxu0 0.0
      %1421 = vmatprep.subr.mxu0 0.0
      %1422 = vmatpush2.msra.mxu0 0.0
      %1423 = vmatprep.subr.mxu0 0.0
      %1424 = vmatpush2.msra.mxu0 0.0
      %1425 = vmatprep.subr.mxu0 0.0
      %1426 = vmatpush2.msra.mxu0 0.0
      %1427 = vmatprep.subr.mxu0 0.0
      %1428 = vmatpush2.msra.mxu0 0.0
      %1429 = vmatprep.subr.mxu0 0.0
      %1430 = vmatpush2.msra.mxu0 0.0
      %1431 = vmatprep.subr.mxu0 0.0
      %1432 = vmatpush2.msra.mxu0 0.0
      %1433 = vmatprep.subr.mxu0 0.0
      %1434 = vmatpush2.msra.mxu0 0.0
      %1435 = vmatprep.subr.mxu0 0.0
      %1436 = vmatpush2.msra.mxu0 0.0
      %1437 = vmatprep.subr.mxu0 0.0
      %1438 = vmatpush2.msra.mxu0 0.0
      %1439 = vmatprep.mubr.f32.mxu0 0.0
      %1440 = vmatmul.mubr.f32.gmra.mxu0 %v1373
      %v1441 = vpop.f32.mrf.mxu0
      %v1442 = vadd.f32 0.0, %v1441
      %v1443 = vpop.f32.mrf.mxu0
      %1444 = vdwg.mxu0
      %v1445 = vadd.f32 %v1202, %v1442
      %1446 = vrot.lane.b32.xlu0 %v710, 104
      %v1447 = vpop.permute.xlu0 %1446
      %1448 = vrot.lane.b32.xlu0 %v710, 72
      %v1449 = vpop.permute.xlu0 %1448
      %v1450 = vsel %vm722, %v1447, 0
      %v1452 = vsel %vm722, %v1449, 0
      %1454 = vmatprep.subr.mxu0 0.0
      %1455 = vmatpush1.xpose.msra.mxu0 0.0
      %1456 = vmatprep.subr.mxu0 0.0
      %1457 = vmatpush1.xpose.msra.mxu0 0.0
      %1458 = vmatprep.subr.mxu0 0.0
      %1459 = vmatpush1.xpose.msra.mxu0 0.0
      %1460 = vmatprep.subr.mxu0 0.0
      %1461 = vmatpush1.xpose.msra.mxu0 0.0
      %1462 = vmatprep.subr.mxu0 0.0
      %1463 = vmatpush1.xpose.msra.mxu0 0.0
      %1464 = vmatprep.subr.mxu0 0.0
      %1465 = vmatpush1.xpose.msra.mxu0 0.0
      %1466 = vmatprep.subr.mxu0 0.0
      %1467 = vmatpush1.xpose.msra.mxu0 0.0
      %1468 = vmatprep.subr.mxu0 0.0
      %1469 = vmatpush1.xpose.msra.mxu0 0.0
      %1470 = vmatprep.subr.mxu0 0.0
      %1471 = vmatpush1.xpose.msra.mxu0 0.0
      %1472 = vmatprep.subr.mxu0 0.0
      %1473 = vmatpush1.xpose.msra.mxu0 0.0
      %1474 = vmatprep.subr.mxu0 0.0
      %1475 = vmatpush1.xpose.msra.mxu0 0.0
      %1476 = vmatprep.subr.mxu0 0.0
      %1477 = vmatpush1.xpose.msra.mxu0 0.0
      %1478 = vmatprep.subr.mxu0 0.0
      %1479 = vmatpush1.xpose.msra.mxu0 0.0
      %1480 = vmatprep.subr.mxu0 0.0
      %1481 = vmatpush1.xpose.msra.mxu0 0.0
      %1482 = vmatprep.subr.mxu0 0.0
      %1483 = vmatpush1.xpose.msra.mxu0 0.0
      %1484 = vmatprep.subr.mxu0 0.0
      %1485 = vmatpush1.xpose.msra.mxu0 %v1452
      %1486 = vmatprep.subr.mxu0 0.0
      %1487 = vmatpush2.xpose.msra.mxu0 0.0
      %1488 = vmatprep.subr.mxu0 0.0
      %1489 = vmatpush2.xpose.msra.mxu0 0.0
      %1490 = vmatprep.subr.mxu0 0.0
      %1491 = vmatpush2.xpose.msra.mxu0 0.0
      %1492 = vmatprep.subr.mxu0 0.0
      %1493 = vmatpush2.xpose.msra.mxu0 0.0
      %1494 = vmatprep.subr.mxu0 0.0
      %1495 = vmatpush2.xpose.msra.mxu0 0.0
      %1496 = vmatprep.subr.mxu0 0.0
      %1497 = vmatpush2.xpose.msra.mxu0 0.0
      %1498 = vmatprep.subr.mxu0 0.0
      %1499 = vmatpush2.xpose.msra.mxu0 0.0
      %1500 = vmatprep.subr.mxu0 0.0
      %1501 = vmatpush2.xpose.msra.mxu0 0.0
      %1502 = vmatprep.subr.mxu0 0.0
      %1503 = vmatpush2.xpose.msra.mxu0 0.0
      %1504 = vmatprep.subr.mxu0 0.0
      %1505 = vmatpush2.xpose.msra.mxu0 0.0
      %1506 = vmatprep.subr.mxu0 0.0
      %1507 = vmatpush2.xpose.msra.mxu0 0.0
      %1508 = vmatprep.subr.mxu0 0.0
      %1509 = vmatpush2.xpose.msra.mxu0 0.0
      %1510 = vmatprep.subr.mxu0 0.0
      %1511 = vmatpush2.xpose.msra.mxu0 0.0
      %1512 = vmatprep.subr.mxu0 0.0
      %1513 = vmatpush2.xpose.msra.mxu0 0.0
      %1514 = vmatprep.subr.mxu0 0.0
      %1515 = vmatpush2.xpose.msra.mxu0 0.0
      %1516 = vmatprep.subr.mxu0 0.0
      %1517 = vmatpush2.xpose.msra.mxu0 0.0
      %1518 = vmatprep.mubr.f32.mxu0 0.0
      %1519 = vmatmul.mubr.f32.gmra.mxu0 %v1450
      %v1520 = vpop.f32.mrf.mxu0
      %v1521 = vadd.f32 0.0, %v1520
      %v1522 = vpop.f32.mrf.mxu0
      %1523 = vdwg.mxu0
      %v1524 = vmul.f32 %v1521, 0.35355338
      %v1525 = vadd.f32 %v1524, %v802
      %v1526 = vsel %vm722, %v1525, -inf
      %1527 = vmax.xlane.f32.xlu0 %v1526
      %v1528 = vpop.xlane.xlu0 %1527
      %v1529 = vsub.f32 %v1525, %v1528
      %v1530 = vmul.f32 %v1529, 1.442695
      %v1531 = vpow.pop %v1530
      %v1532 = vsel %vm722, %v1531, 0.0
      %1533 = vadd.xlane.f32.xlu0 %v1532
      %v1534 = vpop.xlane.xlu0 %1533
      %v1535 = vrcp.pop %v1534
      %v1536 = vmul.f32 %v1531, %v1535
      %1537 = vrot.lane.b32.xlu0 %v710, 40
      %v1538 = vpop.permute.xlu0 %1537
      %v1541 = vsel %vm722, %v1536, 0
      %1543 = vmatprep.subr.mxu0 0.0
      %1544 = vmatpush1.msra.mxu0 0.0
      %1545 = vmatprep.subr.mxu0 0.0
      %1546 = vmatpush1.msra.mxu0 0.0
      %1547 = vmatprep.subr.mxu0 0.0
      %1548 = vmatpush1.msra.mxu0 0.0
      %1549 = vmatprep.subr.mxu0 0.0
      %1550 = vmatpush1.msra.mxu0 0.0
      %1551 = vmatprep.subr.mxu0 0.0
      %1552 = vmatpush1.msra.mxu0 0.0
      %1553 = vmatprep.subr.mxu0 0.0
      %1554 = vmatpush1.msra.mxu0 0.0
      %1555 = vmatprep.subr.mxu0 0.0
      %1556 = vmatpush1.msra.mxu0 0.0
      %1557 = vmatprep.subr.mxu0 0.0
      %1558 = vmatpush1.msra.mxu0 0.0
      %1559 = vmatprep.subr.mxu0 0.0
      %1560 = vmatpush1.msra.mxu0 0.0
      %1561 = vmatprep.subr.mxu0 0.0
      %1562 = vmatpush1.msra.mxu0 0.0
      %1563 = vmatprep.subr.mxu0 0.0
      %1564 = vmatpush1.msra.mxu0 0.0
      %1565 = vmatprep.subr.mxu0 0.0
      %1566 = vmatpush1.msra.mxu0 0.0
      %1567 = vmatprep.subr.mxu0 0.0
      %1568 = vmatpush1.msra.mxu0 0.0
      %1569 = vmatprep.subr.mxu0 0.0
      %1570 = vmatpush1.msra.mxu0 0.0
      %1571 = vmatprep.subr.mxu0 0.0
      %1572 = vmatpush1.msra.mxu0 0.0
      %1573 = vmatprep.subr.mxu0 0.0
      %1574 = vmatpush1.msra.mxu0 %v1538
      %1575 = vmatprep.subr.mxu0 0.0
      %1576 = vmatpush2.msra.mxu0 0.0
      %1577 = vmatprep.subr.mxu0 0.0
      %1578 = vmatpush2.msra.mxu0 0.0
      %1579 = vmatprep.subr.mxu0 0.0
      %1580 = vmatpush2.msra.mxu0 0.0
      %1581 = vmatprep.subr.mxu0 0.0
      %1582 = vmatpush2.msra.mxu0 0.0
      %1583 = vmatprep.subr.mxu0 0.0
      %1584 = vmatpush2.msra.mxu0 0.0
      %1585 = vmatprep.subr.mxu0 0.0
      %1586 = vmatpush2.msra.mxu0 0.0
      %1587 = vmatprep.subr.mxu0 0.0
      %1588 = vmatpush2.msra.mxu0 0.0
      %1589 = vmatprep.subr.mxu0 0.0
      %1590 = vmatpush2.msra.mxu0 0.0
      %1591 = vmatprep.subr.mxu0 0.0
      %1592 = vmatpush2.msra.mxu0 0.0
      %1593 = vmatprep.subr.mxu0 0.0
      %1594 = vmatpush2.msra.mxu0 0.0
      %1595 = vmatprep.subr.mxu0 0.0
      %1596 = vmatpush2.msra.mxu0 0.0
      %1597 = vmatprep.subr.mxu0 0.0
      %1598 = vmatpush2.msra.mxu0 0.0
      %1599 = vmatprep.subr.mxu0 0.0
      %1600 = vmatpush2.msra.mxu0 0.0
      %1601 = vmatprep.subr.mxu0 0.0
      %1602 = vmatpush2.msra.mxu0 0.0
      %1603 = vmatprep.subr.mxu0 0.0
      %1604 = vmatpush2.msra.mxu0 0.0
      %1605 = vmatprep.subr.mxu0 0.0
      %1606 = vmatpush2.msra.mxu0 0.0
      %1607 = vmatprep.mubr.f32.mxu0 0.0
      %1608 = vmatmul.mubr.f32.gmra.mxu0 %v1541
      %v1609 = vpop.f32.mrf.mxu0
      %v1610 = vadd.f32 0.0, %v1609
      %v1611 = vpop.f32.mrf.mxu0
      %1612 = vdwg.mxu0
      %v1614 = vsel %vm722, %v1610, 0
      %1616 = vmatprep.subr.mxu0 0.0
      %1617 = vmatpush1.msra.mxu0 0.0
      %1618 = vmatprep.subr.mxu0 0.0
      %1619 = vmatpush1.msra.mxu0 0.0
      %1620 = vmatprep.subr.mxu0 0.0
      %1621 = vmatpush1.msra.mxu0 0.0
      %1622 = vmatprep.subr.mxu0 0.0
      %1623 = vmatpush1.msra.mxu0 0.0
      %1624 = vmatprep.subr.mxu0 0.0
      %1625 = vmatpush1.msra.mxu0 0.0
      %1626 = vmatprep.subr.mxu0 0.0
      %1627 = vmatpush1.msra.mxu0 0.0
      %1628 = vmatprep.subr.mxu0 0.0
      %1629 = vmatpush1.msra.mxu0 0.0
      %1630 = vmatprep.subr.mxu0 0.0
      %1631 = vmatpush1.msra.mxu0 0.0
      %1632 = vmatprep.subr.mxu0 0.0
      %1633 = vmatpush1.msra.mxu0 0.0
      %1634 = vmatprep.subr.mxu0 0.0
      %1635 = vmatpush1.msra.mxu0 0.0
      %1636 = vmatprep.subr.mxu0 0.0
      %1637 = vmatpush1.msra.mxu0 0.0
      %1638 = vmatprep.subr.mxu0 0.0
      %1639 = vmatpush1.msra.mxu0 0.0
      %1640 = vmatprep.subr.mxu0 0.0
      %1641 = vmatpush1.msra.mxu0 0.0
      %1642 = vmatprep.subr.mxu0 0.0
      %1643 = vmatpush1.msra.mxu0 0.0
      %1644 = vmatprep.subr.mxu0 0.0
      %1645 = vmatpush1.msra.mxu0 0.0
      %1646 = vmatprep.subr.mxu0 0.0
      %1647 = vmatpush1.msra.mxu0 %v718
      %1648 = vmatprep.subr.mxu0 0.0
      %1649 = vmatpush2.msra.mxu0 0.0
      %1650 = vmatprep.subr.mxu0 0.0
      %1651 = vmatpush2.msra.mxu0 0.0
      %1652 = vmatprep.subr.mxu0 0.0
      %1653 = vmatpush2.msra.mxu0 0.0
      %1654 = vmatprep.subr.mxu0 0.0
      %1655 = vmatpush2.msra.mxu0 0.0
      %1656 = vmatprep.subr.mxu0 0.0
      %1657 = vmatpush2.msra.mxu0 0.0
      %1658 = vmatprep.subr.mxu0 0.0
      %1659 = vmatpush2.msra.mxu0 0.0
      %1660 = vmatprep.subr.mxu0 0.0
      %1661 = vmatpush2.msra.mxu0 0.0
      %1662 = vmatprep.subr.mxu0 0.0
      %1663 = vmatpush2.msra.mxu0 0.0
      %1664 = vmatprep.subr.mxu0 0.0
      %1665 = vmatpush2.msra.mxu0 0.0
      %1666 = vmatprep.subr.mxu0 0.0
      %1667 = vmatpush2.msra.mxu0 0.0
      %1668 = vmatprep.subr.mxu0 0.0
      %1669 = vmatpush2.msra.mxu0 0.0
      %1670 = vmatprep.subr.mxu0 0.0
      %1671 = vmatpush2.msra.mxu0 0.0
      %1672 = vmatprep.subr.mxu0 0.0
      %1673 = vmatpush2.msra.mxu0 0.0
      %1674 = vmatprep.subr.mxu0 0.0
      %1675 = vmatpush2.msra.mxu0 0.0
      %1676 = vmatprep.subr.mxu0 0.0
      %1677 = vmatpush2.msra.mxu0 0.0
      %1678 = vmatprep.subr.mxu0 0.0
      %1679 = vmatpush2.msra.mxu0 0.0
      %1680 = vmatprep.mubr.f32.mxu0 0.0
      %1681 = vmatmul.mubr.f32.gmra.mxu0 %v1614
      %v1682 = vpop.f32.mrf.mxu0
      %v1683 = vadd.f32 0.0, %v1682
      %v1684 = vpop.f32.mrf.mxu0
      %1685 = vdwg.mxu0
      %v1686 = vadd.f32 %v1445, %v1683
      %v1687 = vld [vmem:[%s7] sm:$0x1]
      %v1689 = vlaneseq
      %v1690 = vshrl.u32 %v1689, 7
      %v1691 = vsub.s32 0, %v1690
      %v1692 = vrot.slane %v1687, %v1691
      %v1694 = vadd.f32 %v1686, %v1692
      %v1695 = vadd.f32 %v1694, %v644
      %v1696 = vld [vmem:[%s8] sm:$0x1]
      %v1697 = vld [vmem:[%s9] sm:$0x1]
      %v1698 = vsel %vm616, %v1695, 0.0
      %1699 = vadd.xlane.f32.xlu0 %v1698
      %v1700 = vpop.xlane.xlu0 %1699
      %v1701 = vmul.f32 %v1700, %v620
      %v1702 = vsub.f32 %v1695, %v1701
      %v1703 = vmul.f32 %v1702, %v1702
      %v1704 = vsel %vm616, %v1703, 0.0
      %1705 = vadd.xlane.f32.xlu0 %v1704
      %v1706 = vpop.xlane.xlu0 %1705
      %v1707 = vmul.f32 %v1706, %v620
      %v1708 = vadd.f32 %v1707, 1e-12
      %v1709 = vrsqrt.pop %v1708
      %v1710 = vmul.f32 %v1702, %v1709
      %v1712 = vlaneseq
      %v1713 = vshrl.u32 %v1712, 7
      %v1714 = vsub.s32 0, %v1713
      %v1715 = vrot.slane %v1696, %v1714
      %v1717 = vmul.f32 %v1710, %v1715
      %v1719 = vlaneseq
      %v1720 = vshrl.u32 %v1719, 7
      %v1721 = vsub.s32 0, %v1720
      %v1722 = vrot.slane %v1697, %v1721
      %v1724 = vadd.f32 %v1717, %v1722
      %v1725 = vpack.c.bf16 %v1724, %v1724
      %v1726 = vld [vmem:[%s10] sm:$0xf]
      %v1727 = vld [vmem:[%s10 + $0x4] sm:$0xf]
      %v1728 = vld [vmem:[%s10 + $0x8] sm:$0xf]
      %v1729 = vld [vmem:[%s10 + $0xc] sm:$0xf]
      %v1730 = vld [vmem:[%s11] sm:$0x1]
      %v1732 = vlaneseq
      %v1733 = vshrl.u32 %v1732, 7
      %v1734 = vsub.s32 0, %v1733
      %v1735 = vrot.slane %v1730, %v1734
      %v1741 = vunpack.c.l.b16 %v1726
      %v1742 = vunpack.c.l.b16 %v1727
      %v1743 = vunpack.c.l.b16 %v1728
      %v1744 = vunpack.c.l.b16 %v1729
      %v1745 = vpack.c.b16 %v1742, %v1741
      %v1746 = vpack.c.b16 %v1744, %v1743
      %v1750 = vsel %vm616, %v1725, 0
      %1752 = vmatprep.subr.bf16.mxu0 0
      %1753 = vmatpush1.bf16.msra.mxu0 0
      %1754 = vmatprep.subr.bf16.mxu0 0
      %1755 = vmatpush1.bf16.msra.mxu0 0
      %1756 = vmatprep.subr.bf16.mxu0 0
      %1757 = vmatpush1.bf16.msra.mxu0 0
      %1758 = vmatprep.subr.bf16.mxu0 0
      %1759 = vmatpush1.bf16.msra.mxu0 0
      %1760 = vmatprep.subr.bf16.mxu0 0
      %1761 = vmatpush1.bf16.msra.mxu0 0
      %1762 = vmatprep.subr.bf16.mxu0 0
      %1763 = vmatpush1.bf16.msra.mxu0 0
      %1764 = vmatprep.subr.bf16.mxu0 0
      %1765 = vmatpush1.bf16.msra.mxu0 %v1746
      %1766 = vmatprep.subr.bf16.mxu0 0
      %1767 = vmatpush1.bf16.msra.mxu0 %v1745
      %1768 = vmatprep.subr.bf16.mxu0 0
      %1769 = vmatpush2.bf16.msra.mxu0 0
      %1770 = vmatprep.subr.bf16.mxu0 0
      %1771 = vmatpush2.bf16.msra.mxu0 0
      %1772 = vmatprep.subr.bf16.mxu0 0
      %1773 = vmatpush2.bf16.msra.mxu0 0
      %1774 = vmatprep.subr.bf16.mxu0 0
      %1775 = vmatpush2.bf16.msra.mxu0 0
      %1776 = vmatprep.subr.bf16.mxu0 0
      %1777 = vmatpush2.bf16.msra.mxu0 0
      %1778 = vmatprep.subr.bf16.mxu0 0
      %1779 = vmatpush2.bf16.msra.mxu0 0
      %1780 = vmatprep.subr.bf16.mxu0 0
      %1781 = vmatpush2.bf16.msra.mxu0 0
      %1782 = vmatprep.subr.bf16.mxu0 0
      %1783 = vmatpush2.bf16.msra.mxu0 0
      %1784 = vmatprep.mubr.bf16.mxu0 0
      %1785 = vmatmul.mubr.bf16.gmra.mxu0 %v1750
      %v1786 = vpop.f32.mrf.mxu0
      %v1787 = vadd.f32 %v1735, %v1786
      %v1788 = vpop.f32.mrf.mxu0
      %v1789 = vpop.f32.mrf.mxu0
      %v1790 = vpop.f32.mrf.mxu0
      %1791 = vdwg.mxu0
      %v1792 = vmul.f32 %v1787, %v1787
      %v1793 = vmul.f32 %v1787, %v1792
      %v1794 = vmul.f32 %v1793, 0.044715
      %v1795 = vadd.f32 %v1787, %v1794
      %v1796 = vmul.f32 %v1795, 0.7978846
      %v1797 = vtanh.pop %v1796
      %v1798 = vadd.f32 %v1797, 1.0
      %v1799 = vmul.f32 %v1798, 0.5
      %v1800 = vmul.f32 %v1787, %v1799
      %v1801 = vpack.c.bf16 %v1800, %v1800
      %v1802 = vld [vmem:[%s12] sm:$0xf]
      %v1803 = vld [vmem:[%s12 + $0x4] sm:$0xf]
      %v1804 = vld [vmem:[%s12 + $0x8] sm:$0xf]
      %v1805 = vld [vmem:[%s12 + $0xc] sm:$0xf]
      %v1806 = vld [vmem:[%s12 + $0x10] sm:$0xf]
      %v1807 = vld [vmem:[%s12 + $0x14] sm:$0xf]
      %v1808 = vld [vmem:[%s12 + $0x18] sm:$0xf]
      %v1809 = vld [vmem:[%s12 + $0x1c] sm:$0xf]
      %v1810 = vld [vmem:[%s13] sm:$0x1]
      %v1812 = vlaneseq
      %v1813 = vshrl.u32 %v1812, 7
      %v1814 = vsub.s32 0, %v1813
      %v1815 = vrot.slane %v1810, %v1814
      %v1825 = vunpack.c.l.b16 %v1802
      %v1826 = vunpack.c.l.b16 %v1803
      %v1827 = vunpack.c.l.b16 %v1804
      %v1828 = vunpack.c.l.b16 %v1805
      %v1829 = vunpack.c.l.b16 %v1806
      %v1830 = vunpack.c.l.b16 %v1807
      %v1831 = vunpack.c.l.b16 %v1808
      %v1832 = vunpack.c.l.b16 %v1809
      %v1833 = vpack.c.b16 %v1826, %v1825
      %v1834 = vpack.c.b16 %v1828, %v1827
      %v1835 = vpack.c.b16 %v1830, %v1829
      %v1836 = vpack.c.b16 %v1832, %v1831
      %vm1841 = vcmask 523264
      %v1843 = vsel %vm1841, %v1801, 0
      %1845 = vmatprep.subr.bf16.mxu0 0
      %1846 = vmatpush1.bf16.msra.mxu0 0
      %1847 = vmatprep.subr.bf16.mxu0 0
      %1848 = vmatpush1.bf16.msra.mxu0 0
      %1849 = vmatprep.subr.bf16.mxu0 0
      %1850 = vmatpush1.bf16.msra.mxu0 0
      %1851 = vmatprep.subr.bf16.mxu0 0
      %1852 = vmatpush1.bf16.msra.mxu0 0
      %1853 = vmatprep.subr.bf16.mxu0 0
      %1854 = vmatpush1.bf16.msra.mxu0 %v1836
      %1855 = vmatprep.subr.bf16.mxu0 0
      %1856 = vmatpush1.bf16.msra.mxu0 %v1835
      %1857 = vmatprep.subr.bf16.mxu0 0
      %1858 = vmatpush1.bf16.msra.mxu0 %v1834
      %1859 = vmatprep.subr.bf16.mxu0 0
      %1860 = vmatpush1.bf16.msra.mxu0 %v1833
      %1861 = vmatprep.subr.bf16.mxu0 0
      %1862 = vmatpush2.bf16.msra.mxu0 0
      %1863 = vmatprep.subr.bf16.mxu0 0
      %1864 = vmatpush2.bf16.msra.mxu0 0
      %1865 = vmatprep.subr.bf16.mxu0 0
      %1866 = vmatpush2.bf16.msra.mxu0 0
      %1867 = vmatprep.subr.bf16.mxu0 0
      %1868 = vmatpush2.bf16.msra.mxu0 0
      %1869 = vmatprep.subr.bf16.mxu0 0
      %1870 = vmatpush2.bf16.msra.mxu0 0
      %1871 = vmatprep.subr.bf16.mxu0 0
      %1872 = vmatpush2.bf16.msra.mxu0 0
      %1873 = vmatprep.subr.bf16.mxu0 0
      %1874 = vmatpush2.bf16.msra.mxu0 0
      %1875 = vmatprep.subr.bf16.mxu0 0
      %1876 = vmatpush2.bf16.msra.mxu0 0
      %1877 = vmatprep.mubr.bf16.mxu0 0
      %1878 = vmatmul.mubr.bf16.gmra.mxu0 %v1843
      %v1879 = vpop.f32.mrf.mxu0
      %v1880 = vadd.f32 %v1815, %v1879
      %v1881 = vpop.f32.mrf.mxu0
      %v1882 = vpop.f32.mrf.mxu0
      %v1883 = vpop.f32.mrf.mxu0
      %1884 = vdwg.mxu0
      %v1885 = vadd.f32 %v1880, %v1724
      %v1886 = vld [vmem:[%s14] sm:$0x1]
      %v1887 = vld [vmem:[%s15] sm:$0x1]
      %v1888 = vsel %vm616, %v1885, 0.0
      %1889 = vadd.xlane.f32.xlu0 %v1888
      %v1890 = vpop.xlane.xlu0 %1889
      %v1891 = vmul.f32 %v1890, %v620
      %v1892 = vsub.f32 %v1885, %v1891
      %v1893 = vmul.f32 %v1892, %v1892
      %v1894 = vsel %vm616, %v1893, 0.0
      %1895 = vadd.xlane.f32.xlu0 %v1894
      %v1896 = vpop.xlane.xlu0 %1895
      %v1897 = vmul.f32 %v1896, %v620
      %v1898 = vadd.f32 %v1897, 1e-12
      %v1899 = vrsqrt.pop %v1898
      %v1900 = vmul.f32 %v1892, %v1899
      %v1902 = vlaneseq
      %v1903 = vshrl.u32 %v1902, 7
      %v1904 = vsub.s32 0, %v1903
      %v1905 = vrot.slane %v1886, %v1904
      %v1907 = vmul.f32 %v1900, %v1905
      %v1909 = vlaneseq
      %v1910 = vshrl.u32 %v1909, 7
      %v1911 = vsub.s32 0, %v1910
      %v1912 = vrot.slane %v1887, %v1911
      %v1914 = vadd.f32 %v1907, %v1912
      %v1915 = vpack.c.bf16 %v1914, %v1914
      %s1916 = scalar_lea.vmem %s4, 16
      %v1917 = vld [vmem:[%s1916] sm:$0xf]
      %v1918 = vld [vmem:[%s1916 + $0x4] sm:$0xf]
      %v1919 = vld [vmem:[%s1916 + $0x8] sm:$0xf]
      %v1920 = vld [vmem:[%s1916 + $0xc] sm:$0xf]
      %s1921 = scalar_lea.vmem %s5, 1
      %v1922 = vld [vmem:[%s1921] sm:$0x1]
      %v1924 = vlaneseq
      %v1925 = vshrl.u32 %v1924, 7
      %v1926 = vsub.s32 0, %v1925
      %v1927 = vrot.slane %v1922, %v1926
      %v1933 = vunpack.c.l.b16 %v1917
      %v1934 = vunpack.c.l.b16 %v1918
      %v1935 = vunpack.c.l.b16 %v1919
      %v1936 = vunpack.c.l.b16 %v1920
      %v1937 = vpack.c.b16 %v1934, %v1933
      %v1938 = vpack.c.b16 %v1936, %v1935
      %v1942 = vsel %vm616, %v1915, 0
      %1944 = vmatprep.subr.bf16.mxu0 0
      %1945 = vmatpush1.bf16.msra.mxu0 0
      %1946 = vmatprep.subr.bf16.mxu0 0
      %1947 = vmatpush1.bf16.msra.mxu0 0
      %1948 = vmatprep.subr.bf16.mxu0 0
      %1949 = vmatpush1.bf16.msra.mxu0 0
      %1950 = vmatprep.subr.bf16.mxu0 0
      %1951 = vmatpush1.bf16.msra.mxu0 0
      %1952 = vmatprep.subr.bf16.mxu0 0
      %1953 = vmatpush1.bf16.msra.mxu0 0
      %1954 = vmatprep.subr.bf16.mxu0 0
      %1955 = vmatpush1.bf16.msra.mxu0 0
      %1956 = vmatprep.subr.bf16.mxu0 0
      %1957 = vmatpush1.bf16.msra.mxu0 %v1938
      %1958 = vmatprep.subr.bf16.mxu0 0
      %1959 = vmatpush1.bf16.msra.mxu0 %v1937
      %1960 = vmatprep.subr.bf16.mxu0 0
      %1961 = vmatpush2.bf16.msra.mxu0 0
      %1962 = vmatprep.subr.bf16.mxu0 0
      %1963 = vmatpush2.bf16.msra.mxu0 0
      %1964 = vmatprep.subr.bf16.mxu0 0
      %1965 = vmatpush2.bf16.msra.mxu0 0
      %1966 = vmatprep.subr.bf16.mxu0 0
      %1967 = vmatpush2.bf16.msra.mxu0 0
      %1968 = vmatprep.subr.bf16.mxu0 0
      %1969 = vmatpush2.bf16.msra.mxu0 0
      %1970 = vmatprep.subr.bf16.mxu0 0
      %1971 = vmatpush2.bf16.msra.mxu0 0
      %1972 = vmatprep.subr.bf16.mxu0 0
      %1973 = vmatpush2.bf16.msra.mxu0 0
      %1974 = vmatprep.subr.bf16.mxu0 0
      %1975 = vmatpush2.bf16.msra.mxu0 0
      %1976 = vmatprep.mubr.bf16.mxu0 0
      %1977 = vmatmul.mubr.bf16.gmra.mxu0 %v1942
      %v1978 = vpop.f32.mrf.mxu0
      %v1979 = vadd.f32 %v1927, %v1978
      %v1980 = vpop.f32.mrf.mxu0
      %v1981 = vpop.f32.mrf.mxu0
      %v1982 = vpop.f32.mrf.mxu0
      %1983 = vdwg.mxu0
      %s1984 = scalar_lea.vmem %s6, 32
      %v1985 = vld [vmem:[%s1984] sm:$0xff]
      %v1986 = vld [vmem:[%s1984 + $0x8] sm:$0xff]
      %v1987 = vld [vmem:[%s1984 + $0x10] sm:$0xff]
      %v1988 = vld [vmem:[%s1984 + $0x18] sm:$0xff]
      %1990 = vrot.lane.b32.xlu0 %v1979, 96
      %v1991 = vpop.permute.xlu0 %1990
      %v1992 = vsel %vm722, %v1979, 0
      %v1994 = vsel %vm722, %v1991, 0
      %1996 = vmatprep.subr.mxu0 0.0
      %1997 = vmatpush1.xpose.msra.mxu0 0.0
      %1998 = vmatprep.subr.mxu0 0.0
      %1999 = vmatpush1.xpose.msra.mxu0 0.0
      %2000 = vmatprep.subr.mxu0 0.0
      %2001 = vmatpush1.xpose.msra.mxu0 0.0
      %2002 = vmatprep.subr.mxu0 0.0
      %2003 = vmatpush1.xpose.msra.mxu0 0.0
      %2004 = vmatprep.subr.mxu0 0.0
      %2005 = vmatpush1.xpose.msra.mxu0 0.0
      %2006 = vmatprep.subr.mxu0 0.0
      %2007 = vmatpush1.xpose.msra.mxu0 0.0
      %2008 = vmatprep.subr.mxu0 0.0
      %2009 = vmatpush1.xpose.msra.mxu0 0.0
      %2010 = vmatprep.subr.mxu0 0.0
      %2011 = vmatpush1.xpose.msra.mxu0 0.0
      %2012 = vmatprep.subr.mxu0 0.0
      %2013 = vmatpush1.xpose.msra.mxu0 0.0
      %2014 = vmatprep.subr.mxu0 0.0
      %2015 = vmatpush1.xpose.msra.mxu0 0.0
      %2016 = vmatprep.subr.mxu0 0.0
      %2017 = vmatpush1.xpose.msra.mxu0 0.0
      %2018 = vmatprep.subr.mxu0 0.0
      %2019 = vmatpush1.xpose.msra.mxu0 0.0
      %2020 = vmatprep.subr.mxu0 0.0
      %2021 = vmatpush1.xpose.msra.mxu0 0.0
      %2022 = vmatprep.subr.mxu0 0.0
      %2023 = vmatpush1.xpose.msra.mxu0 0.0
      %2024 = vmatprep.subr.mxu0 0.0
      %2025 = vmatpush1.xpose.msra.mxu0 0.0
      %2026 = vmatprep.subr.mxu0 0.0
      %2027 = vmatpush1.xpose.msra.mxu0 %v1994
      %2028 = vmatprep.subr.mxu0 0.0
      %2029 = vmatpush2.xpose.msra.mxu0 0.0
      %2030 = vmatprep.subr.mxu0 0.0
      %2031 = vmatpush2.xpose.msra.mxu0 0.0
      %2032 = vmatprep.subr.mxu0 0.0
      %2033 = vmatpush2.xpose.msra.mxu0 0.0
      %2034 = vmatprep.subr.mxu0 0.0
      %2035 = vmatpush2.xpose.msra.mxu0 0.0
      %2036 = vmatprep.subr.mxu0 0.0
      %2037 = vmatpush2.xpose.msra.mxu0 0.0
      %2038 = vmatprep.subr.mxu0 0.0
      %2039 = vmatpush2.xpose.msra.mxu0 0.0
      %2040 = vmatprep.subr.mxu0 0.0
      %2041 = vmatpush2.xpose.msra.mxu0 0.0
      %2042 = vmatprep.subr.mxu0 0.0
      %2043 = vmatpush2.xpose.msra.mxu0 0.0
      %2044 = vmatprep.subr.mxu0 0.0
      %2045 = vmatpush2.xpose.msra.mxu0 0.0
      %2046 = vmatprep.subr.mxu0 0.0
      %2047 = vmatpush2.xpose.msra.mxu0 0.0
      %2048 = vmatprep.subr.mxu0 0.0
      %2049 = vmatpush2.xpose.msra.mxu0 0.0
      %2050 = vmatprep.subr.mxu0 0.0
      %2051 = vmatpush2.xpose.msra.mxu0 0.0
      %2052 = vmatprep.subr.mxu0 0.0
      %2053 = vmatpush2.xpose.msra.mxu0 0.0
      %2054 = vmatprep.subr.mxu0 0.0
      %2055 = vmatpush2.xpose.msra.mxu0 0.0
      %2056 = vmatprep.subr.mxu0 0.0
      %2057 = vmatpush2.xpose.msra.mxu0 0.0
      %2058 = vmatprep.subr.mxu0 0.0
      %2059 = vmatpush2.xpose.msra.mxu0 0.0
      %2060 = vmatprep.mubr.f32.mxu0 0.0
      %2061 = vmatmul.mubr.f32.gmra.mxu0 %v1992
      %v2062 = vpop.f32.mrf.mxu0
      %v2063 = vadd.f32 0.0, %v2062
      %v2064 = vpop.f32.mrf.mxu0
      %2065 = vdwg.mxu0
      %v2066 = vmul.f32 %v2063, 0.35355338
      %v2067 = vadd.f32 %v2066, %v802
      %v2068 = vsel %vm722, %v2067, -inf
      %2069 = vmax.xlane.f32.xlu0 %v2068
      %v2070 = vpop.xlane.xlu0 %2069
      %v2071 = vsub.f32 %v2067, %v2070
      %v2072 = vmul.f32 %v2071, 1.442695
      %v2073 = vpow.pop %v2072
      %v2074 = vsel %vm722, %v2073, 0.0
      %2075 = vadd.xlane.f32.xlu0 %v2074
      %v2076 = vpop.xlane.xlu0 %2075
      %v2077 = vrcp.pop %v2076
      %v2078 = vmul.f32 %v2073, %v2077
      %2079 = vrot.lane.b32.xlu0 %v1979, 64
      %v2080 = vpop.permute.xlu0 %2079
      %v2083 = vsel %vm722, %v2078, 0
      %2085 = vmatprep.subr.mxu0 0.0
      %2086 = vmatpush1.msra.mxu0 0.0
      %2087 = vmatprep.subr.mxu0 0.0
      %2088 = vmatpush1.msra.mxu0 0.0
      %2089 = vmatprep.subr.mxu0 0.0
      %2090 = vmatpush1.msra.mxu0 0.0
      %2091 = vmatprep.subr.mxu0 0.0
      %2092 = vmatpush1.msra.mxu0 0.0
      %2093 = vmatprep.subr.mxu0 0.0
      %2094 = vmatpush1.msra.mxu0 0.0
      %2095 = vmatprep.subr.mxu0 0.0
      %2096 = vmatpush1.msra.mxu0 0.0
      %2097 = vmatprep.subr.mxu0 0.0
      %2098 = vmatpush1.msra.mxu0 0.0
      %2099 = vmatprep.subr.mxu0 0.0
      %2100 = vmatpush1.msra.mxu0 0.0
      %2101 = vmatprep.subr.mxu0 0.0
      %2102 = vmatpush1.msra.mxu0 0.0
      %2103 = vmatprep.subr.mxu0 0.0
      %2104 = vmatpush1.msra.mxu0 0.0
      %2105 = vmatprep.subr.mxu0 0.0
      %2106 = vmatpush1.msra.mxu0 0.0
      %2107 = vmatprep.subr.mxu0 0.0
      %2108 = vmatpush1.msra.mxu0 0.0
      %2109 = vmatprep.subr.mxu0 0.0
      %2110 = vmatpush1.msra.mxu0 0.0
      %2111 = vmatprep.subr.mxu0 0.0
      %2112 = vmatpush1.msra.mxu0 0.0
      %2113 = vmatprep.subr.mxu0 0.0
      %2114 = vmatpush1.msra.mxu0 0.0
      %2115 = vmatprep.subr.mxu0 0.0
      %2116 = vmatpush1.msra.mxu0 %v2080
      %2117 = vmatprep.subr.mxu0 0.0
      %2118 = vmatpush2.msra.mxu0 0.0
      %2119 = vmatprep.subr.mxu0 0.0
      %2120 = vmatpush2.msra.mxu0 0.0
      %2121 = vmatprep.subr.mxu0 0.0
      %2122 = vmatpush2.msra.mxu0 0.0
      %2123 = vmatprep.subr.mxu0 0.0
      %2124 = vmatpush2.msra.mxu0 0.0
      %2125 = vmatprep.subr.mxu0 0.0
      %2126 = vmatpush2.msra.mxu0 0.0
      %2127 = vmatprep.subr.mxu0 0.0
      %2128 = vmatpush2.msra.mxu0 0.0
      %2129 = vmatprep.subr.mxu0 0.0
      %2130 = vmatpush2.msra.mxu0 0.0
      %2131 = vmatprep.subr.mxu0 0.0
      %2132 = vmatpush2.msra.mxu0 0.0
      %2133 = vmatprep.subr.mxu0 0.0
      %2134 = vmatpush2.msra.mxu0 0.0
      %2135 = vmatprep.subr.mxu0 0.0
      %2136 = vmatpush2.msra.mxu0 0.0
      %2137 = vmatprep.subr.mxu0 0.0
      %2138 = vmatpush2.msra.mxu0 0.0
      %2139 = vmatprep.subr.mxu0 0.0
      %2140 = vmatpush2.msra.mxu0 0.0
      %2141 = vmatprep.subr.mxu0 0.0
      %2142 = vmatpush2.msra.mxu0 0.0
      %2143 = vmatprep.subr.mxu0 0.0
      %2144 = vmatpush2.msra.mxu0 0.0
      %2145 = vmatprep.subr.mxu0 0.0
      %2146 = vmatpush2.msra.mxu0 0.0
      %2147 = vmatprep.subr.mxu0 0.0
      %2148 = vmatpush2.msra.mxu0 0.0
      %2149 = vmatprep.mubr.f32.mxu0 0.0
      %2150 = vmatmul.mubr.f32.gmra.mxu0 %v2083
      %v2151 = vpop.f32.mrf.mxu0
      %v2152 = vadd.f32 0.0, %v2151
      %v2153 = vpop.f32.mrf.mxu0
      %2154 = vdwg.mxu0
      %2155 = vrot.lane.b32.xlu0 %v1979, 120
      %v2156 = vpop.permute.xlu0 %2155
      %2157 = vrot.lane.b32.xlu0 %v1979, 88
      %v2158 = vpop.permute.xlu0 %2157
      %v2159 = vsel %vm722, %v2156, 0
      %v2161 = vsel %vm722, %v2158, 0
      %2163 = vmatprep.subr.mxu0 0.0
      %2164 = vmatpush1.xpose.msra.mxu0 0.0
      %2165 = vmatprep.subr.mxu0 0.0
      %2166 = vmatpush1.xpose.msra.mxu0 0.0
      %2167 = vmatprep.subr.mxu0 0.0
      %2168 = vmatpush1.xpose.msra.mxu0 0.0
      %2169 = vmatprep.subr.mxu0 0.0
      %2170 = vmatpush1.xpose.msra.mxu0 0.0
      %2171 = vmatprep.subr.mxu0 0.0
      %2172 = vmatpush1.xpose.msra.mxu0 0.0
      %2173 = vmatprep.subr.mxu0 0.0
      %2174 = vmatpush1.xpose.msra.mxu0 0.0
      %2175 = vmatprep.subr.mxu0 0.0
      %2176 = vmatpush1.xpose.msra.mxu0 0.0
      %2177 = vmatprep.subr.mxu0 0.0
      %2178 = vmatpush1.xpose.msra.mxu0 0.0
      %2179 = vmatprep.subr.mxu0 0.0
      %2180 = vmatpush1.xpose.msra.mxu0 0.0
      %2181 = vmatprep.subr.mxu0 0.0
      %2182 = vmatpush1.xpose.msra.mxu0 0.0
      %2183 = vmatprep.subr.mxu0 0.0
      %2184 = vmatpush1.xpose.msra.mxu0 0.0
      %2185 = vmatprep.subr.mxu0 0.0
      %2186 = vmatpush1.xpose.msra.mxu0 0.0
      %2187 = vmatprep.subr.mxu0 0.0
      %2188 = vmatpush1.xpose.msra.mxu0 0.0
      %2189 = vmatprep.subr.mxu0 0.0
      %2190 = vmatpush1.xpose.msra.mxu0 0.0
      %2191 = vmatprep.subr.mxu0 0.0
      %2192 = vmatpush1.xpose.msra.mxu0 0.0
      %2193 = vmatprep.subr.mxu0 0.0
      %2194 = vmatpush1.xpose.msra.mxu0 %v2161
      %2195 = vmatprep.subr.mxu0 0.0
      %2196 = vmatpush2.xpose.msra.mxu0 0.0
      %2197 = vmatprep.subr.mxu0 0.0
      %2198 = vmatpush2.xpose.msra.mxu0 0.0
      %2199 = vmatprep.subr.mxu0 0.0
      %2200 = vmatpush2.xpose.msra.mxu0 0.0
      %2201 = vmatprep.subr.mxu0 0.0
      %2202 = vmatpush2.xpose.msra.mxu0 0.0
      %2203 = vmatprep.subr.mxu0 0.0
      %2204 = vmatpush2.xpose.msra.mxu0 0.0
      %2205 = vmatprep.subr.mxu0 0.0
      %2206 = vmatpush2.xpose.msra.mxu0 0.0
      %2207 = vmatprep.subr.mxu0 0.0
      %2208 = vmatpush2.xpose.msra.mxu0 0.0
      %2209 = vmatprep.subr.mxu0 0.0
      %2210 = vmatpush2.xpose.msra.mxu0 0.0
      %2211 = vmatprep.subr.mxu0 0.0
      %2212 = vmatpush2.xpose.msra.mxu0 0.0
      %2213 = vmatprep.subr.mxu0 0.0
      %2214 = vmatpush2.xpose.msra.mxu0 0.0
      %2215 = vmatprep.subr.mxu0 0.0
      %2216 = vmatpush2.xpose.msra.mxu0 0.0
      %2217 = vmatprep.subr.mxu0 0.0
      %2218 = vmatpush2.xpose.msra.mxu0 0.0
      %2219 = vmatprep.subr.mxu0 0.0
      %2220 = vmatpush2.xpose.msra.mxu0 0.0
      %2221 = vmatprep.subr.mxu0 0.0
      %2222 = vmatpush2.xpose.msra.mxu0 0.0
      %2223 = vmatprep.subr.mxu0 0.0
      %2224 = vmatpush2.xpose.msra.mxu0 0.0
      %2225 = vmatprep.subr.mxu0 0.0
      %2226 = vmatpush2.xpose.msra.mxu0 0.0
      %2227 = vmatprep.mubr.f32.mxu0 0.0
      %2228 = vmatmul.mubr.f32.gmra.mxu0 %v2159
      %v2229 = vpop.f32.mrf.mxu0
      %v2230 = vadd.f32 0.0, %v2229
      %v2231 = vpop.f32.mrf.mxu0
      %2232 = vdwg.mxu0
      %v2233 = vmul.f32 %v2230, 0.35355338
      %v2234 = vadd.f32 %v2233, %v802
      %v2235 = vsel %vm722, %v2234, -inf
      %2236 = vmax.xlane.f32.xlu0 %v2235
      %v2237 = vpop.xlane.xlu0 %2236
      %v2238 = vsub.f32 %v2234, %v2237
      %v2239 = vmul.f32 %v2238, 1.442695
      %v2240 = vpow.pop %v2239
      %v2241 = vsel %vm722, %v2240, 0.0
      %2242 = vadd.xlane.f32.xlu0 %v2241
      %v2243 = vpop.xlane.xlu0 %2242
      %v2244 = vrcp.pop %v2243
      %v2245 = vmul.f32 %v2240, %v2244
      %2246 = vrot.lane.b32.xlu0 %v1979, 56
      %v2247 = vpop.permute.xlu0 %2246
      %v2250 = vsel %vm722, %v2245, 0
      %2252 = vmatprep.subr.mxu0 0.0
      %2253 = vmatpush1.msra.mxu0 0.0
      %2254 = vmatprep.subr.mxu0 0.0
      %2255 = vmatpush1.msra.mxu0 0.0
      %2256 = vmatprep.subr.mxu0 0.0
      %2257 = vmatpush1.msra.mxu0 0.0
      %2258 = vmatprep.subr.mxu0 0.0
      %2259 = vmatpush1.msra.mxu0 0.0
      %2260 = vmatprep.subr.mxu0 0.0
      %2261 = vmatpush1.msra.mxu0 0.0
      %2262 = vmatprep.subr.mxu0 0.0
      %2263 = vmatpush1.msra.mxu0 0.0
      %2264 = vmatprep.subr.mxu0 0.0
      %2265 = vmatpush1.msra.mxu0 0.0
      %2266 = vmatprep.subr.mxu0 0.0
      %2267 = vmatpush1.msra.mxu0 0.0
      %2268 = vmatprep.subr.mxu0 0.0
      %2269 = vmatpush1.msra.mxu0 0.0
      %2270 = vmatprep.subr.mxu0 0.0
      %2271 = vmatpush1.msra.mxu0 0.0
      %2272 = vmatprep.subr.mxu0 0.0
      %2273 = vmatpush1.msra.mxu0 0.0
      %2274 = vmatprep.subr.mxu0 0.0
      %2275 = vmatpush1.msra.mxu0 0.0
      %2276 = vmatprep.subr.mxu0 0.0
      %2277 = vmatpush1.msra.mxu0 0.0
      %2278 = vmatprep.subr.mxu0 0.0
      %2279 = vmatpush1.msra.mxu0 0.0
      %2280 = vmatprep.subr.mxu0 0.0
      %2281 = vmatpush1.msra.mxu0 0.0
      %2282 = vmatprep.subr.mxu0 0.0
      %2283 = vmatpush1.msra.mxu0 %v2247
      %2284 = vmatprep.subr.mxu0 0.0
      %2285 = vmatpush2.msra.mxu0 0.0
      %2286 = vmatprep.subr.mxu0 0.0
      %2287 = vmatpush2.msra.mxu0 0.0
      %2288 = vmatprep.subr.mxu0 0.0
      %2289 = vmatpush2.msra.mxu0 0.0
      %2290 = vmatprep.subr.mxu0 0.0
      %2291 = vmatpush2.msra.mxu0 0.0
      %2292 = vmatprep.subr.mxu0 0.0
      %2293 = vmatpush2.msra.mxu0 0.0
      %2294 = vmatprep.subr.mxu0 0.0
      %2295 = vmatpush2.msra.mxu0 0.0
      %2296 = vmatprep.subr.mxu0 0.0
      %2297 = vmatpush2.msra.mxu0 0.0
      %2298 = vmatprep.subr.mxu0 0.0
      %2299 = vmatpush2.msra.mxu0 0.0
      %2300 = vmatprep.subr.mxu0 0.0
      %2301 = vmatpush2.msra.mxu0 0.0
      %2302 = vmatprep.subr.mxu0 0.0
      %2303 = vmatpush2.msra.mxu0 0.0
      %2304 = vmatprep.subr.mxu0 0.0
      %2305 = vmatpush2.msra.mxu0 0.0
      %2306 = vmatprep.subr.mxu0 0.0
      %2307 = vmatpush2.msra.mxu0 0.0
      %2308 = vmatprep.subr.mxu0 0.0
      %2309 = vmatpush2.msra.mxu0 0.0
      %2310 = vmatprep.subr.mxu0 0.0
      %2311 = vmatpush2.msra.mxu0 0.0
      %2312 = vmatprep.subr.mxu0 0.0
      %2313 = vmatpush2.msra.mxu0 0.0
      %2314 = vmatprep.subr.mxu0 0.0
      %2315 = vmatpush2.msra.mxu0 0.0
      %2316 = vmatprep.mubr.f32.mxu0 0.0
      %2317 = vmatmul.mubr.f32.gmra.mxu0 %v2250
      %v2318 = vpop.f32.mrf.mxu0
      %v2319 = vadd.f32 0.0, %v2318
      %v2320 = vpop.f32.mrf.mxu0
      %2321 = vdwg.mxu0
      %v2323 = vsel %vm722, %v2319, 0
      %2325 = vmatprep.subr.mxu0 0.0
      %2326 = vmatpush1.msra.mxu0 0.0
      %2327 = vmatprep.subr.mxu0 0.0
      %2328 = vmatpush1.msra.mxu0 0.0
      %2329 = vmatprep.subr.mxu0 0.0
      %2330 = vmatpush1.msra.mxu0 0.0
      %2331 = vmatprep.subr.mxu0 0.0
      %2332 = vmatpush1.msra.mxu0 0.0
      %2333 = vmatprep.subr.mxu0 0.0
      %2334 = vmatpush1.msra.mxu0 0.0
      %2335 = vmatprep.subr.mxu0 0.0
      %2336 = vmatpush1.msra.mxu0 0.0
      %2337 = vmatprep.subr.mxu0 0.0
      %2338 = vmatpush1.msra.mxu0 0.0
      %2339 = vmatprep.subr.mxu0 0.0
      %2340 = vmatpush1.msra.mxu0 0.0
      %2341 = vmatprep.subr.mxu0 0.0
      %2342 = vmatpush1.msra.mxu0 0.0
      %2343 = vmatprep.subr.mxu0 0.0
      %2344 = vmatpush1.msra.mxu0 0.0
      %2345 = vmatprep.subr.mxu0 0.0
      %2346 = vmatpush1.msra.mxu0 0.0
      %2347 = vmatprep.subr.mxu0 0.0
      %2348 = vmatpush1.msra.mxu0 0.0
      %2349 = vmatprep.subr.mxu0 0.0
      %2350 = vmatpush1.msra.mxu0 0.0
      %2351 = vmatprep.subr.mxu0 0.0
      %2352 = vmatpush1.msra.mxu0 0.0
      %2353 = vmatprep.subr.mxu0 0.0
      %2354 = vmatpush1.msra.mxu0 0.0
      %2355 = vmatprep.subr.mxu0 0.0
      %2356 = vmatpush1.msra.mxu0 %v1986
      %2357 = vmatprep.subr.mxu0 0.0
      %2358 = vmatpush2.msra.mxu0 0.0
      %2359 = vmatprep.subr.mxu0 0.0
      %2360 = vmatpush2.msra.mxu0 0.0
      %2361 = vmatprep.subr.mxu0 0.0
      %2362 = vmatpush2.msra.mxu0 0.0
      %2363 = vmatprep.subr.mxu0 0.0
      %2364 = vmatpush2.msra.mxu0 0.0
      %2365 = vmatprep.subr.mxu0 0.0
      %2366 = vmatpush2.msra.mxu0 0.0
      %2367 = vmatprep.subr.mxu0 0.0
      %2368 = vmatpush2.msra.mxu0 0.0
      %2369 = vmatprep.subr.mxu0 0.0
      %2370 = vmatpush2.msra.mxu0 0.0
      %2371 = vmatprep.subr.mxu0 0.0
      %2372 = vmatpush2.msra.mxu0 0.0
      %2373 = vmatprep.subr.mxu0 0.0
      %2374 = vmatpush2.msra.mxu0 0.0
      %2375 = vmatprep.subr.mxu0 0.0
      %2376 = vmatpush2.msra.mxu0 0.0
      %2377 = vmatprep.subr.mxu0 0.0
      %2378 = vmatpush2.msra.mxu0 0.0
      %2379 = vmatprep.subr.mxu0 0.0
      %2380 = vmatpush2.msra.mxu0 0.0
      %2381 = vmatprep.subr.mxu0 0.0
      %2382 = vmatpush2.msra.mxu0 0.0
      %2383 = vmatprep.subr.mxu0 0.0
      %2384 = vmatpush2.msra.mxu0 0.0
      %2385 = vmatprep.subr.mxu0 0.0
      %2386 = vmatpush2.msra.mxu0 0.0
      %2387 = vmatprep.subr.mxu0 0.0
      %2388 = vmatpush2.msra.mxu0 0.0
      %2389 = vmatprep.mubr.f32.mxu0 0.0
      %2390 = vmatmul.mubr.f32.gmra.mxu0 %v2323
      %v2391 = vpop.f32.mrf.mxu0
      %v2392 = vadd.f32 0.0, %v2391
      %v2393 = vpop.f32.mrf.mxu0
      %2394 = vdwg.mxu0
      %v2396 = vsel %vm722, %v2152, 0
      %2398 = vmatprep.subr.mxu0 0.0
      %2399 = vmatpush1.msra.mxu0 0.0
      %2400 = vmatprep.subr.mxu0 0.0
      %2401 = vmatpush1.msra.mxu0 0.0
      %2402 = vmatprep.subr.mxu0 0.0
      %2403 = vmatpush1.msra.mxu0 0.0
      %2404 = vmatprep.subr.mxu0 0.0
      %2405 = vmatpush1.msra.mxu0 0.0
      %2406 = vmatprep.subr.mxu0 0.0
      %2407 = vmatpush1.msra.mxu0 0.0
      %2408 = vmatprep.subr.mxu0 0.0
      %2409 = vmatpush1.msra.mxu0 0.0
      %2410 = vmatprep.subr.mxu0 0.0
      %2411 = vmatpush1.msra.mxu0 0.0
      %2412 = vmatprep.subr.mxu0 0.0
      %2413 = vmatpush1.msra.mxu0 0.0
      %2414 = vmatprep.subr.mxu0 0.0
      %2415 = vmatpush1.msra.mxu0 0.0
      %2416 = vmatprep.subr.mxu0 0.0
      %2417 = vmatpush1.msra.mxu0 0.0
      %2418 = vmatprep.subr.mxu0 0.0
      %2419 = vmatpush1.msra.mxu0 0.0
      %2420 = vmatprep.subr.mxu0 0.0
      %2421 = vmatpush1.msra.mxu0 0.0
      %2422 = vmatprep.subr.mxu0 0.0
      %2423 = vmatpush1.msra.mxu0 0.0
      %2424 = vmatprep.subr.mxu0 0.0
      %2425 = vmatpush1.msra.mxu0 0.0
      %2426 = vmatprep.subr.mxu0 0.0
      %2427 = vmatpush1.msra.mxu0 0.0
      %2428 = vmatprep.subr.mxu0 0.0
      %2429 = vmatpush1.msra.mxu0 %v1985
      %2430 = vmatprep.subr.mxu0 0.0
      %2431 = vmatpush2.msra.mxu0 0.0
      %2432 = vmatprep.subr.mxu0 0.0
      %2433 = vmatpush2.msra.mxu0 0.0
      %2434 = vmatprep.subr.mxu0 0.0
      %2435 = vmatpush2.msra.mxu0 0.0
      %2436 = vmatprep.subr.mxu0 0.0
      %2437 = vmatpush2.msra.mxu0 0.0
      %2438 = vmatprep.subr.mxu0 0.0
      %2439 = vmatpush2.msra.mxu0 0.0
      %2440 = vmatprep.subr.mxu0 0.0
      %2441 = vmatpush2.msra.mxu0 0.0
      %2442 = vmatprep.subr.mxu0 0.0
      %2443 = vmatpush2.msra.mxu0 0.0
      %2444 = vmatprep.subr.mxu0 0.0
      %2445 = vmatpush2.msra.mxu0 0.0
      %2446 = vmatprep.subr.mxu0 0.0
      %2447 = vmatpush2.msra.mxu0 0.0
      %2448 = vmatprep.subr.mxu0 0.0
      %2449 = vmatpush2.msra.mxu0 0.0
      %2450 = vmatprep.subr.mxu0 0.0
      %2451 = vmatpush2.msra.mxu0 0.0
      %2452 = vmatprep.subr.mxu0 0.0
      %2453 = vmatpush2.msra.mxu0 0.0
      %2454 = vmatprep.subr.mxu0 0.0
      %2455 = vmatpush2.msra.mxu0 0.0
      %2456 = vmatprep.subr.mxu0 0.0
      %2457 = vmatpush2.msra.mxu0 0.0
      %2458 = vmatprep.subr.mxu0 0.0
      %2459 = vmatpush2.msra.mxu0 0.0
      %2460 = vmatprep.subr.mxu0 0.0
      %2461 = vmatpush2.msra.mxu0 0.0
      %2462 = vmatprep.mubr.f32.mxu0 0.0
      %2463 = vmatmul.mubr.f32.gmra.mxu0 %v2396
      %v2464 = vpop.f32.mrf.mxu0
      %v2465 = vadd.f32 %v2392, %v2464
      %v2466 = vpop.f32.mrf.mxu0
      %2467 = vdwg.mxu0
      %2468 = vrot.lane.b32.xlu0 %v1979, 112
      %v2469 = vpop.permute.xlu0 %2468
      %2470 = vrot.lane.b32.xlu0 %v1979, 80
      %v2471 = vpop.permute.xlu0 %2470
      %v2472 = vsel %vm722, %v2469, 0
      %v2474 = vsel %vm722, %v2471, 0
      %2476 = vmatprep.subr.mxu0 0.0
      %2477 = vmatpush1.xpose.msra.mxu0 0.0
      %2478 = vmatprep.subr.mxu0 0.0
      %2479 = vmatpush1.xpose.msra.mxu0 0.0
      %2480 = vmatprep.subr.mxu0 0.0
      %2481 = vmatpush1.xpose.msra.mxu0 0.0
      %2482 = vmatprep.subr.mxu0 0.0
      %2483 = vmatpush1.xpose.msra.mxu0 0.0
      %2484 = vmatprep.subr.mxu0 0.0
      %2485 = vmatpush1.xpose.msra.mxu0 0.0
      %2486 = vmatprep.subr.mxu0 0.0
      %2487 = vmatpush1.xpose.msra.mxu0 0.0
      %2488 = vmatprep.subr.mxu0 0.0
      %2489 = vmatpush1.xpose.msra.mxu0 0.0
      %2490 = vmatprep.subr.mxu0 0.0
      %2491 = vmatpush1.xpose.msra.mxu0 0.0
      %2492 = vmatprep.subr.mxu0 0.0
      %2493 = vmatpush1.xpose.msra.mxu0 0.0
      %2494 = vmatprep.subr.mxu0 0.0
      %2495 = vmatpush1.xpose.msra.mxu0 0.0
      %2496 = vmatprep.subr.mxu0 0.0
      %2497 = vmatpush1.xpose.msra.mxu0 0.0
      %2498 = vmatprep.subr.mxu0 0.0
      %2499 = vmatpush1.xpose.msra.mxu0 0.0
      %2500 = vmatprep.subr.mxu0 0.0
      %2501 = vmatpush1.xpose.msra.mxu0 0.0
      %2502 = vmatprep.subr.mxu0 0.0
      %2503 = vmatpush1.xpose.msra.mxu0 0.0
      %2504 = vmatprep.subr.mxu0 0.0
      %2505 = vmatpush1.xpose.msra.mxu0 0.0
      %2506 = vmatprep.subr.mxu0 0.0
      %2507 = vmatpush1.xpose.msra.mxu0 %v2474
      %2508 = vmatprep.subr.mxu0 0.0
      %2509 = vmatpush2.xpose.msra.mxu0 0.0
      %2510 = vmatprep.subr.mxu0 0.0
      %2511 = vmatpush2.xpose.msra.mxu0 0.0
      %2512 = vmatprep.subr.mxu0 0.0
      %2513 = vmatpush2.xpose.msra.mxu0 0.0
      %2514 = vmatprep.subr.mxu0 0.0
      %2515 = vmatpush2.xpose.msra.mxu0 0.0
      %2516 = vmatprep.subr.mxu0 0.0
      %2517 = vmatpush2.xpose.msra.mxu0 0.0
      %2518 = vmatprep.subr.mxu0 0.0
      %2519 = vmatpush2.xpose.msra.mxu0 0.0
      %2520 = vmatprep.subr.mxu0 0.0
      %2521 = vmatpush2.xpose.msra.mxu0 0.0
      %2522 = vmatprep.subr.mxu0 0.0
      %2523 = vmatpush2.xpose.msra.mxu0 0.0
      %2524 = vmatprep.subr.mxu0 0.0
      %2525 = vmatpush2.xpose.msra.mxu0 0.0
      %2526 = vmatprep.subr.mxu0 0.0
      %2527 = vmatpush2.xpose.msra.mxu0 0.0
      %2528 = vmatprep.subr.mxu0 0.0
      %2529 = vmatpush2.xpose.msra.mxu0 0.0
      %2530 = vmatprep.subr.mxu0 0.0
      %2531 = vmatpush2.xpose.msra.mxu0 0.0
      %2532 = vmatprep.subr.mxu0 0.0
      %2533 = vmatpush2.xpose.msra.mxu0 0.0
      %2534 = vmatprep.subr.mxu0 0.0
      %2535 = vmatpush2.xpose.msra.mxu0 0.0
      %2536 = vmatprep.subr.mxu0 0.0
      %2537 = vmatpush2.xpose.msra.mxu0 0.0
      %2538 = vmatprep.subr.mxu0 0.0
      %2539 = vmatpush2.xpose.msra.mxu0 0.0
      %2540 = vmatprep.mubr.f32.mxu0 0.0
      %2541 = vmatmul.mubr.f32.gmra.mxu0 %v2472
      %v2542 = vpop.f32.mrf.mxu0
      %v2543 = vadd.f32 0.0, %v2542
      %v2544 = vpop.f32.mrf.mxu0
      %2545 = vdwg.mxu0
      %v2546 = vmul.f32 %v2543, 0.35355338
      %v2547 = vadd.f32 %v2546, %v802
      %v2548 = vsel %vm722, %v2547, -inf
      %2549 = vmax.xlane.f32.xlu0 %v2548
      %v2550 = vpop.xlane.xlu0 %2549
      %v2551 = vsub.f32 %v2547, %v2550
      %v2552 = vmul.f32 %v2551, 1.442695
      %v2553 = vpow.pop %v2552
      %v2554 = vsel %vm722, %v2553, 0.0
      %2555 = vadd.xlane.f32.xlu0 %v2554
      %v2556 = vpop.xlane.xlu0 %2555
      %v2557 = vrcp.pop %v2556
      %v2558 = vmul.f32 %v2553, %v2557
      %2559 = vrot.lane.b32.xlu0 %v1979, 48
      %v2560 = vpop.permute.xlu0 %2559
      %v2563 = vsel %vm722, %v2558, 0
      %2565 = vmatprep.subr.mxu0 0.0
      %2566 = vmatpush1.msra.mxu0 0.0
      %2567 = vmatprep.subr.mxu0 0.0
      %2568 = vmatpush1.msra.mxu0 0.0
      %2569 = vmatprep.subr.mxu0 0.0
      %2570 = vmatpush1.msra.mxu0 0.0
      %2571 = vmatprep.subr.mxu0 0.0
      %2572 = vmatpush1.msra.mxu0 0.0
      %2573 = vmatprep.subr.mxu0 0.0
      %2574 = vmatpush1.msra.mxu0 0.0
      %2575 = vmatprep.subr.mxu0 0.0
      %2576 = vmatpush1.msra.mxu0 0.0
      %2577 = vmatprep.subr.mxu0 0.0
      %2578 = vmatpush1.msra.mxu0 0.0
      %2579 = vmatprep.subr.mxu0 0.0
      %2580 = vmatpush1.msra.mxu0 0.0
      %2581 = vmatprep.subr.mxu0 0.0
      %2582 = vmatpush1.msra.mxu0 0.0
      %2583 = vmatprep.subr.mxu0 0.0
      %2584 = vmatpush1.msra.mxu0 0.0
      %2585 = vmatprep.subr.mxu0 0.0
      %2586 = vmatpush1.msra.mxu0 0.0
      %2587 = vmatprep.subr.mxu0 0.0
      %2588 = vmatpush1.msra.mxu0 0.0
      %2589 = vmatprep.subr.mxu0 0.0
      %2590 = vmatpush1.msra.mxu0 0.0
      %2591 = vmatprep.subr.mxu0 0.0
      %2592 = vmatpush1.msra.mxu0 0.0
      %2593 = vmatprep.subr.mxu0 0.0
      %2594 = vmatpush1.msra.mxu0 0.0
      %2595 = vmatprep.subr.mxu0 0.0
      %2596 = vmatpush1.msra.mxu0 %v2560
      %2597 = vmatprep.subr.mxu0 0.0
      %2598 = vmatpush2.msra.mxu0 0.0
      %2599 = vmatprep.subr.mxu0 0.0
      %2600 = vmatpush2.msra.mxu0 0.0
      %2601 = vmatprep.subr.mxu0 0.0
      %2602 = vmatpush2.msra.mxu0 0.0
      %2603 = vmatprep.subr.mxu0 0.0
      %2604 = vmatpush2.msra.mxu0 0.0
      %2605 = vmatprep.subr.mxu0 0.0
      %2606 = vmatpush2.msra.mxu0 0.0
      %2607 = vmatprep.subr.mxu0 0.0
      %2608 = vmatpush2.msra.mxu0 0.0
      %2609 = vmatprep.subr.mxu0 0.0
      %2610 = vmatpush2.msra.mxu0 0.0
      %2611 = vmatprep.subr.mxu0 0.0
      %2612 = vmatpush2.msra.mxu0 0.0
      %2613 = vmatprep.subr.mxu0 0.0
      %2614 = vmatpush2.msra.mxu0 0.0
      %2615 = vmatprep.subr.mxu0 0.0
      %2616 = vmatpush2.msra.mxu0 0.0
      %2617 = vmatprep.subr.mxu0 0.0
      %2618 = vmatpush2.msra.mxu0 0.0
      %2619 = vmatprep.subr.mxu0 0.0
      %2620 = vmatpush2.msra.mxu0 0.0
      %2621 = vmatprep.subr.mxu0 0.0
      %2622 = vmatpush2.msra.mxu0 0.0
      %2623 = vmatprep.subr.mxu0 0.0
      %2624 = vmatpush2.msra.mxu0 0.0
      %2625 = vmatprep.subr.mxu0 0.0
      %2626 = vmatpush2.msra.mxu0 0.0
      %2627 = vmatprep.subr.mxu0 0.0
      %2628 = vmatpush2.msra.mxu0 0.0
      %2629 = vmatprep.mubr.f32.mxu0 0.0
      %2630 = vmatmul.mubr.f32.gmra.mxu0 %v2563
      %v2631 = vpop.f32.mrf.mxu0
      %v2632 = vadd.f32 0.0, %v2631
      %v2633 = vpop.f32.mrf.mxu0
      %2634 = vdwg.mxu0
      %v2636 = vsel %vm722, %v2632, 0
      %2638 = vmatprep.subr.mxu0 0.0
      %2639 = vmatpush1.msra.mxu0 0.0
      %2640 = vmatprep.subr.mxu0 0.0
      %2641 = vmatpush1.msra.mxu0 0.0
      %2642 = vmatprep.subr.mxu0 0.0
      %2643 = vmatpush1.msra.mxu0 0.0
      %2644 = vmatprep.subr.mxu0 0.0
      %2645 = vmatpush1.msra.mxu0 0.0
      %2646 = vmatprep.subr.mxu0 0.0
      %2647 = vmatpush1.msra.mxu0 0.0
      %2648 = vmatprep.subr.mxu0 0.0
      %2649 = vmatpush1.msra.mxu0 0.0
      %2650 = vmatprep.subr.mxu0 0.0
      %2651 = vmatpush1.msra.mxu0 0.0
      %2652 = vmatprep.subr.mxu0 0.0
      %2653 = vmatpush1.msra.mxu0 0.0
      %2654 = vmatprep.subr.mxu0 0.0
      %2655 = vmatpush1.msra.mxu0 0.0
      %2656 = vmatprep.subr.mxu0 0.0
      %2657 = vmatpush1.msra.mxu0 0.0
      %2658 = vmatprep.subr.mxu0 0.0
      %2659 = vmatpush1.msra.mxu0 0.0
      %2660 = vmatprep.subr.mxu0 0.0
      %2661 = vmatpush1.msra.mxu0 0.0
      %2662 = vmatprep.subr.mxu0 0.0
      %2663 = vmatpush1.msra.mxu0 0.0
      %2664 = vmatprep.subr.mxu0 0.0
      %2665 = vmatpush1.msra.mxu0 0.0
      %2666 = vmatprep.subr.mxu0 0.0
      %2667 = vmatpush1.msra.mxu0 0.0
      %2668 = vmatprep.subr.mxu0 0.0
      %2669 = vmatpush1.msra.mxu0 %v1987
      %2670 = vmatprep.subr.mxu0 0.0
      %2671 = vmatpush2.msra.mxu0 0.0
      %2672 = vmatprep.subr.mxu0 0.0
      %2673 = vmatpush2.msra.mxu0 0.0
      %2674 = vmatprep.subr.mxu0 0.0
      %2675 = vmatpush2.msra.mxu0 0.0
      %2676 = vmatprep.subr.mxu0 0.0
      %2677 = vmatpush2.msra.mxu0 0.0
      %2678 = vmatprep.subr.mxu0 0.0
      %2679 = vmatpush2.msra.mxu0 0.0
      %2680 = vmatprep.subr.mxu0 0.0
      %2681 = vmatpush2.msra.mxu0 0.0
      %2682 = vmatprep.subr.mxu0 0.0
      %2683 = vmatpush2.msra.mxu0 0.0
      %2684 = vmatprep.subr.mxu0 0.0
      %2685 = vmatpush2.msra.mxu0 0.0
      %2686 = vmatprep.subr.mxu0 0.0
      %2687 = vmatpush2.msra.mxu0 0.0
      %2688 = vmatprep.subr.mxu0 0.0
      %2689 = vmatpush2.msra.mxu0 0.0
      %2690 = vmatprep.subr.mxu0 0.0
      %2691 = vmatpush2.msra.mxu0 0.0
      %2692 = vmatprep.subr.mxu0 0.0
      %2693 = vmatpush2.msra.mxu0 0.0
      %2694 = vmatprep.subr.mxu0 0.0
      %2695 = vmatpush2.msra.mxu0 0.0
      %2696 = vmatprep.subr.mxu0 0.0
      %2697 = vmatpush2.msra.mxu0 0.0
      %2698 = vmatprep.subr.mxu0 0.0
      %2699 = vmatpush2.msra.mxu0 0.0
      %2700 = vmatprep.subr.mxu0 0.0
      %2701 = vmatpush2.msra.mxu0 0.0
      %2702 = vmatprep.mubr.f32.mxu0 0.0
      %2703 = vmatmul.mubr.f32.gmra.mxu0 %v2636
      %v2704 = vpop.f32.mrf.mxu0
      %v2705 = vadd.f32 0.0, %v2704
      %v2706 = vpop.f32.mrf.mxu0
      %2707 = vdwg.mxu0
      %v2708 = vadd.f32 %v2465, %v2705
      %2709 = vrot.lane.b32.xlu0 %v1979, 104
      %v2710 = vpop.permute.xlu0 %2709
      %2711 = vrot.lane.b32.xlu0 %v1979, 72
      %v2712 = vpop.permute.xlu0 %2711
      %v2713 = vsel %vm722, %v2710, 0
      %v2715 = vsel %vm722, %v2712, 0
      %2717 = vmatprep.subr.mxu0 0.0
      %2718 = vmatpush1.xpose.msra.mxu0 0.0
      %2719 = vmatprep.subr.mxu0 0.0
      %2720 = vmatpush1.xpose.msra.mxu0 0.0
      %2721 = vmatprep.subr.mxu0 0.0
      %2722 = vmatpush1.xpose.msra.mxu0 0.0
      %2723 = vmatprep.subr.mxu0 0.0
      %2724 = vmatpush1.xpose.msra.mxu0 0.0
      %2725 = vmatprep.subr.mxu0 0.0
      %2726 = vmatpush1.xpose.msra.mxu0 0.0
      %2727 = vmatprep.subr.mxu0 0.0
      %2728 = vmatpush1.xpose.msra.mxu0 0.0
      %2729 = vmatprep.subr.mxu0 0.0
      %2730 = vmatpush1.xpose.msra.mxu0 0.0
      %2731 = vmatprep.subr.mxu0 0.0
      %2732 = vmatpush1.xpose.msra.mxu0 0.0
      %2733 = vmatprep.subr.mxu0 0.0
      %2734 = vmatpush1.xpose.msra.mxu0 0.0
      %2735 = vmatprep.subr.mxu0 0.0
      %2736 = vmatpush1.xpose.msra.mxu0 0.0
      %2737 = vmatprep.subr.mxu0 0.0
      %2738 = vmatpush1.xpose.msra.mxu0 0.0
      %2739 = vmatprep.subr.mxu0 0.0
      %2740 = vmatpush1.xpose.msra.mxu0 0.0
      %2741 = vmatprep.subr.mxu0 0.0
      %2742 = vmatpush1.xpose.msra.mxu0 0.0
      %2743 = vmatprep.subr.mxu0 0.0
      %2744 = vmatpush1.xpose.msra.mxu0 0.0
      %2745 = vmatprep.subr.mxu0 0.0
      %2746 = vmatpush1.xpose.msra.mxu0 0.0
      %2747 = vmatprep.subr.mxu0 0.0
      %2748 = vmatpush1.xpose.msra.mxu0 %v2715
      %2749 = vmatprep.subr.mxu0 0.0
      %2750 = vmatpush2.xpose.msra.mxu0 0.0
      %2751 = vmatprep.subr.mxu0 0.0
      %2752 = vmatpush2.xpose.msra.mxu0 0.0
      %2753 = vmatprep.subr.mxu0 0.0
      %2754 = vmatpush2.xpose.msra.mxu0 0.0
      %2755 = vmatprep.subr.mxu0 0.0
      %2756 = vmatpush2.xpose.msra.mxu0 0.0
      %2757 = vmatprep.subr.mxu0 0.0
      %2758 = vmatpush2.xpose.msra.mxu0 0.0
      %2759 = vmatprep.subr.mxu0 0.0
      %2760 = vmatpush2.xpose.msra.mxu0 0.0
      %2761 = vmatprep.subr.mxu0 0.0
      %2762 = vmatpush2.xpose.msra.mxu0 0.0
      %2763 = vmatprep.subr.mxu0 0.0
      %2764 = vmatpush2.xpose.msra.mxu0 0.0
      %2765 = vmatprep.subr.mxu0 0.0
      %2766 = vmatpush2.xpose.msra.mxu0 0.0
      %2767 = vmatprep.subr.mxu0 0.0
      %2768 = vmatpush2.xpose.msra.mxu0 0.0
      %2769 = vmatprep.subr.mxu0 0.0
      %2770 = vmatpush2.xpose.msra.mxu0 0.0
      %2771 = vmatprep.subr.mxu0 0.0
      %2772 = vmatpush2.xpose.msra.mxu0 0.0
      %2773 = vmatprep.subr.mxu0 0.0
      %2774 = vmatpush2.xpose.msra.mxu0 0.0
      %2775 = vmatprep.subr.mxu0 0.0
      %2776 = vmatpush2.xpose.msra.mxu0 0.0
      %2777 = vmatprep.subr.mxu0 0.0
      %2778 = vmatpush2.xpose.msra.mxu0 0.0
      %2779 = vmatprep.subr.mxu0 0.0
      %2780 = vmatpush2.xpose.msra.mxu0 0.0
      %2781 = vmatprep.mubr.f32.mxu0 0.0
      %2782 = vmatmul.mubr.f32.gmra.mxu0 %v2713
      %v2783 = vpop.f32.mrf.mxu0
      %v2784 = vadd.f32 0.0, %v2783
      %v2785 = vpop.f32.mrf.mxu0
      %2786 = vdwg.mxu0
      %v2787 = vmul.f32 %v2784, 0.35355338
      %v2788 = vadd.f32 %v2787, %v802
      %v2789 = vsel %vm722, %v2788, -inf
      %2790 = vmax.xlane.f32.xlu0 %v2789
      %v2791 = vpop.xlane.xlu0 %2790
      %v2792 = vsub.f32 %v2788, %v2791
      %v2793 = vmul.f32 %v2792, 1.442695
      %v2794 = vpow.pop %v2793
      %v2795 = vsel %vm722, %v2794, 0.0
      %2796 = vadd.xlane.f32.xlu0 %v2795
      %v2797 = vpop.xlane.xlu0 %2796
      %v2798 = vrcp.pop %v2797
      %v2799 = vmul.f32 %v2794, %v2798
      %2800 = vrot.lane.b32.xlu0 %v1979, 40
      %v2801 = vpop.permute.xlu0 %2800
      %v2804 = vsel %vm722, %v2799, 0
      %2806 = vmatprep.subr.mxu0 0.0
      %2807 = vmatpush1.msra.mxu0 0.0
      %2808 = vmatprep.subr.mxu0 0.0
      %2809 = vmatpush1.msra.mxu0 0.0
      %2810 = vmatprep.subr.mxu0 0.0
      %2811 = vmatpush1.msra.mxu0 0.0
      %2812 = vmatprep.subr.mxu0 0.0
      %2813 = vmatpush1.msra.mxu0 0.0
      %2814 = vmatprep.subr.mxu0 0.0
      %2815 = vmatpush1.msra.mxu0 0.0
      %2816 = vmatprep.subr.mxu0 0.0
      %2817 = vmatpush1.msra.mxu0 0.0
      %2818 = vmatprep.subr.mxu0 0.0
      %2819 = vmatpush1.msra.mxu0 0.0
      %2820 = vmatprep.subr.mxu0 0.0
      %2821 = vmatpush1.msra.mxu0 0.0
      %2822 = vmatprep.subr.mxu0 0.0
      %2823 = vmatpush1.msra.mxu0 0.0
      %2824 = vmatprep.subr.mxu0 0.0
      %2825 = vmatpush1.msra.mxu0 0.0
      %2826 = vmatprep.subr.mxu0 0.0
      %2827 = vmatpush1.msra.mxu0 0.0
      %2828 = vmatprep.subr.mxu0 0.0
      %2829 = vmatpush1.msra.mxu0 0.0
      %2830 = vmatprep.subr.mxu0 0.0
      %2831 = vmatpush1.msra.mxu0 0.0
      %2832 = vmatprep.subr.mxu0 0.0
      %2833 = vmatpush1.msra.mxu0 0.0
      %2834 = vmatprep.subr.mxu0 0.0
      %2835 = vmatpush1.msra.mxu0 0.0
      %2836 = vmatprep.subr.mxu0 0.0
      %2837 = vmatpush1.msra.mxu0 %v2801
      %2838 = vmatprep.subr.mxu0 0.0
      %2839 = vmatpush2.msra.mxu0 0.0
      %2840 = vmatprep.subr.mxu0 0.0
      %2841 = vmatpush2.msra.mxu0 0.0
      %2842 = vmatprep.subr.mxu0 0.0
      %2843 = vmatpush2.msra.mxu0 0.0
      %2844 = vmatprep.subr.mxu0 0.0
      %2845 = vmatpush2.msra.mxu0 0.0
      %2846 = vmatprep.subr.mxu0 0.0
      %2847 = vmatpush2.msra.mxu0 0.0
      %2848 = vmatprep.subr.mxu0 0.0
      %2849 = vmatpush2.msra.mxu0 0.0
      %2850 = vmatprep.subr.mxu0 0.0
      %2851 = vmatpush2.msra.mxu0 0.0
      %2852 = vmatprep.subr.mxu0 0.0
      %2853 = vmatpush2.msra.mxu0 0.0
      %2854 = vmatprep.subr.mxu0 0.0
      %2855 = vmatpush2.msra.mxu0 0.0
      %2856 = vmatprep.subr.mxu0 0.0
      %2857 = vmatpush2.msra.mxu0 0.0
      %2858 = vmatprep.subr.mxu0 0.0
      %2859 = vmatpush2.msra.mxu0 0.0
      %2860 = vmatprep.subr.mxu0 0.0
      %2861 = vmatpush2.msra.mxu0 0.0
      %2862 = vmatprep.subr.mxu0 0.0
      %2863 = vmatpush2.msra.mxu0 0.0
      %2864 = vmatprep.subr.mxu0 0.0
      %2865 = vmatpush2.msra.mxu0 0.0
      %2866 = vmatprep.subr.mxu0 0.0
      %2867 = vmatpush2.msra.mxu0 0.0
      %2868 = vmatprep.subr.mxu0 0.0
      %2869 = vmatpush2.msra.mxu0 0.0
      %2870 = vmatprep.mubr.f32.mxu0 0.0
      %2871 = vmatmul.mubr.f32.gmra.mxu0 %v2804
      %v2872 = vpop.f32.mrf.mxu0
      %v2873 = vadd.f32 0.0, %v2872
      %v2874 = vpop.f32.mrf.mxu0
      %2875 = vdwg.mxu0
      %v2877 = vsel %vm722, %v2873, 0
      %2879 = vmatprep.subr.mxu0 0.0
      %2880 = vmatpush1.msra.mxu0 0.0
      %2881 = vmatprep.subr.mxu0 0.0
      %2882 = vmatpush1.msra.mxu0 0.0
      %2883 = vmatprep.subr.mxu0 0.0
      %2884 = vmatpush1.msra.mxu0 0.0
      %2885 = vmatprep.subr.mxu0 0.0
      %2886 = vmatpush1.msra.mxu0 0.0
      %2887 = vmatprep.subr.mxu0 0.0
      %2888 = vmatpush1.msra.mxu0 0.0
      %2889 = vmatprep.subr.mxu0 0.0
      %2890 = vmatpush1.msra.mxu0 0.0
      %2891 = vmatprep.subr.mxu0 0.0
      %2892 = vmatpush1.msra.mxu0 0.0
      %2893 = vmatprep.subr.mxu0 0.0
      %2894 = vmatpush1.msra.mxu0 0.0
      %2895 = vmatprep.subr.mxu0 0.0
      %2896 = vmatpush1.msra.mxu0 0.0
      %2897 = vmatprep.subr.mxu0 0.0
      %2898 = vmatpush1.msra.mxu0 0.0
      %2899 = vmatprep.subr.mxu0 0.0
      %2900 = vmatpush1.msra.mxu0 0.0
      %2901 = vmatprep.subr.mxu0 0.0
      %2902 = vmatpush1.msra.mxu0 0.0
      %2903 = vmatprep.subr.mxu0 0.0
      %2904 = vmatpush1.msra.mxu0 0.0
      %2905 = vmatprep.subr.mxu0 0.0
      %2906 = vmatpush1.msra.mxu0 0.0
      %2907 = vmatprep.subr.mxu0 0.0
      %2908 = vmatpush1.msra.mxu0 0.0
      %2909 = vmatprep.subr.mxu0 0.0
      %2910 = vmatpush1.msra.mxu0 %v1988
      %2911 = vmatprep.subr.mxu0 0.0
      %2912 = vmatpush2.msra.mxu0 0.0
      %2913 = vmatprep.subr.mxu0 0.0
      %2914 = vmatpush2.msra.mxu0 0.0
      %2915 = vmatprep.subr.mxu0 0.0
      %2916 = vmatpush2.msra.mxu0 0.0
      %2917 = vmatprep.subr.mxu0 0.0
      %2918 = vmatpush2.msra.mxu0 0.0
      %2919 = vmatprep.subr.mxu0 0.0
      %2920 = vmatpush2.msra.mxu0 0.0
      %2921 = vmatprep.subr.mxu0 0.0
      %2922 = vmatpush2.msra.mxu0 0.0
      %2923 = vmatprep.subr.mxu0 0.0
      %2924 = vmatpush2.msra.mxu0 0.0
      %2925 = vmatprep.subr.mxu0 0.0
      %2926 = vmatpush2.msra.mxu0 0.0
      %2927 = vmatprep.subr.mxu0 0.0
      %2928 = vmatpush2.msra.mxu0 0.0
      %2929 = vmatprep.subr.mxu0 0.0
      %2930 = vmatpush2.msra.mxu0 0.0
      %2931 = vmatprep.subr.mxu0 0.0
      %2932 = vmatpush2.msra.mxu0 0.0
      %2933 = vmatprep.subr.mxu0 0.0
      %2934 = vmatpush2.msra.mxu0 0.0
      %2935 = vmatprep.subr.mxu0 0.0
      %2936 = vmatpush2.msra.mxu0 0.0
      %2937 = vmatprep.subr.mxu0 0.0
      %2938 = vmatpush2.msra.mxu0 0.0
      %2939 = vmatprep.subr.mxu0 0.0
      %2940 = vmatpush2.msra.mxu0 0.0
      %2941 = vmatprep.subr.mxu0 0.0
      %2942 = vmatpush2.msra.mxu0 0.0
      %2943 = vmatprep.mubr.f32.mxu0 0.0
      %2944 = vmatmul.mubr.f32.gmra.mxu0 %v2877
      %v2945 = vpop.f32.mrf.mxu0
      %v2946 = vadd.f32 0.0, %v2945
      %v2947 = vpop.f32.mrf.mxu0
      %2948 = vdwg.mxu0
      %v2949 = vadd.f32 %v2708, %v2946
      %s2950 = scalar_lea.vmem %s7, 1
      %v2951 = vld [vmem:[%s2950] sm:$0x1]
      %v2953 = vlaneseq
      %v2954 = vshrl.u32 %v2953, 7
      %v2955 = vsub.s32 0, %v2954
      %v2956 = vrot.slane %v2951, %v2955
      %v2958 = vadd.f32 %v2949, %v2956
      %v2959 = vadd.f32 %v2958, %v1914
      %s2960 = scalar_lea.vmem %s8, 1
      %v2961 = vld [vmem:[%s2960] sm:$0x1]
      %s2962 = scalar_lea.vmem %s9, 1
      %v2963 = vld [vmem:[%s2962] sm:$0x1]
      %v2964 = vsel %vm616, %v2959, 0.0
      %2965 = vadd.xlane.f32.xlu0 %v2964
      %v2966 = vpop.xlane.xlu0 %2965
      %v2967 = vmul.f32 %v2966, %v620
      %v2968 = vsub.f32 %v2959, %v2967
      %v2969 = vmul.f32 %v2968, %v2968
      %v2970 = vsel %vm616, %v2969, 0.0
      %2971 = vadd.xlane.f32.xlu0 %v2970
      %v2972 = vpop.xlane.xlu0 %2971
      %v2973 = vmul.f32 %v2972, %v620
      %v2974 = vadd.f32 %v2973, 1e-12
      %v2975 = vrsqrt.pop %v2974
      %v2976 = vmul.f32 %v2968, %v2975
      %v2978 = vlaneseq
      %v2979 = vshrl.u32 %v2978, 7
      %v2980 = vsub.s32 0, %v2979
      %v2981 = vrot.slane %v2961, %v2980
      %v2983 = vmul.f32 %v2976, %v2981
      %v2985 = vlaneseq
      %v2986 = vshrl.u32 %v2985, 7
      %v2987 = vsub.s32 0, %v2986
      %v2988 = vrot.slane %v2963, %v2987
      %v2990 = vadd.f32 %v2983, %v2988
      %v2991 = vpack.c.bf16 %v2990, %v2990
      %s2992 = scalar_lea.vmem %s10, 16
      %v2993 = vld [vmem:[%s2992] sm:$0xf]
      %v2994 = vld [vmem:[%s2992 + $0x4] sm:$0xf]
      %v2995 = vld [vmem:[%s2992 + $0x8] sm:$0xf]
      %v2996 = vld [vmem:[%s2992 + $0xc] sm:$0xf]
      %s2997 = scalar_lea.vmem %s11, 1
      %v2998 = vld [vmem:[%s2997] sm:$0x1]
      %v3000 = vlaneseq
      %v3001 = vshrl.u32 %v3000, 7
      %v3002 = vsub.s32 0, %v3001
      %v3003 = vrot.slane %v2998, %v3002
      %v3009 = vunpack.c.l.b16 %v2993
      %v3010 = vunpack.c.l.b16 %v2994
      %v3011 = vunpack.c.l.b16 %v2995
      %v3012 = vunpack.c.l.b16 %v2996
      %v3013 = vpack.c.b16 %v3010, %v3009
      %v3014 = vpack.c.b16 %v3012, %v3011
      %v3018 = vsel %vm616, %v2991, 0
      %3020 = vmatprep.subr.bf16.mxu0 0
      %3021 = vmatpush1.bf16.msra.mxu0 0
      %3022 = vmatprep.subr.bf16.mxu0 0
      %3023 = vmatpush1.bf16.msra.mxu0 0
      %3024 = vmatprep.subr.bf16.mxu0 0
      %3025 = vmatpush1.bf16.msra.mxu0 0
      %3026 = vmatprep.subr.bf16.mxu0 0
      %3027 = vmatpush1.bf16.msra.mxu0 0
      %3028 = vmatprep.subr.bf16.mxu0 0
      %3029 = vmatpush1.bf16.msra.mxu0 0
      %3030 = vmatprep.subr.bf16.mxu0 0
      %3031 = vmatpush1.bf16.msra.mxu0 0
      %3032 = vmatprep.subr.bf16.mxu0 0
      %3033 = vmatpush1.bf16.msra.mxu0 %v3014
      %3034 = vmatprep.subr.bf16.mxu0 0
      %3035 = vmatpush1.bf16.msra.mxu0 %v3013
      %3036 = vmatprep.subr.bf16.mxu0 0
      %3037 = vmatpush2.bf16.msra.mxu0 0
      %3038 = vmatprep.subr.bf16.mxu0 0
      %3039 = vmatpush2.bf16.msra.mxu0 0
      %3040 = vmatprep.subr.bf16.mxu0 0
      %3041 = vmatpush2.bf16.msra.mxu0 0
      %3042 = vmatprep.subr.bf16.mxu0 0
      %3043 = vmatpush2.bf16.msra.mxu0 0
      %3044 = vmatprep.subr.bf16.mxu0 0
      %3045 = vmatpush2.bf16.msra.mxu0 0
      %3046 = vmatprep.subr.bf16.mxu0 0
      %3047 = vmatpush2.bf16.msra.mxu0 0
      %3048 = vmatprep.subr.bf16.mxu0 0
      %3049 = vmatpush2.bf16.msra.mxu0 0
      %3050 = vmatprep.subr.bf16.mxu0 0
      %3051 = vmatpush2.bf16.msra.mxu0 0
      %3052 = vmatprep.mubr.bf16.mxu0 0
      %3053 = vmatmul.mubr.bf16.gmra.mxu0 %v3018
      %v3054 = vpop.f32.mrf.mxu0
      %v3055 = vadd.f32 %v3003, %v3054
      %v3056 = vpop.f32.mrf.mxu0
      %v3057 = vpop.f32.mrf.mxu0
      %v3058 = vpop.f32.mrf.mxu0
      %3059 = vdwg.mxu0
      %v3060 = vmul.f32 %v3055, %v3055
      %v3061 = vmul.f32 %v3055, %v3060
      %v3062 = vmul.f32 %v3061, 0.044715
      %v3063 = vadd.f32 %v3055, %v3062
      %v3064 = vmul.f32 %v3063, 0.7978846
      %v3065 = vtanh.pop %v3064
      %v3066 = vadd.f32 %v3065, 1.0
      %v3067 = vmul.f32 %v3066, 0.5
      %v3068 = vmul.f32 %v3055, %v3067
      %v3069 = vpack.c.bf16 %v3068, %v3068
      %s3070 = scalar_lea.vmem %s12, 32
      %v3071 = vld [vmem:[%s3070] sm:$0xf]
      %v3072 = vld [vmem:[%s3070 + $0x4] sm:$0xf]
      %v3073 = vld [vmem:[%s3070 + $0x8] sm:$0xf]
      %v3074 = vld [vmem:[%s3070 + $0xc] sm:$0xf]
      %v3075 = vld [vmem:[%s3070 + $0x10] sm:$0xf]
      %v3076 = vld [vmem:[%s3070 + $0x14] sm:$0xf]
      %v3077 = vld [vmem:[%s3070 + $0x18] sm:$0xf]
      %v3078 = vld [vmem:[%s3070 + $0x1c] sm:$0xf]
      %s3079 = scalar_lea.vmem %s13, 1
      %v3080 = vld [vmem:[%s3079] sm:$0x1]
      %v3082 = vlaneseq
      %v3083 = vshrl.u32 %v3082, 7
      %v3084 = vsub.s32 0, %v3083
      %v3085 = vrot.slane %v3080, %v3084
      %v3095 = vunpack.c.l.b16 %v3071
      %v3096 = vunpack.c.l.b16 %v3072
      %v3097 = vunpack.c.l.b16 %v3073
      %v3098 = vunpack.c.l.b16 %v3074
      %v3099 = vunpack.c.l.b16 %v3075
      %v3100 = vunpack.c.l.b16 %v3076
      %v3101 = vunpack.c.l.b16 %v3077
      %v3102 = vunpack.c.l.b16 %v3078
      %v3103 = vpack.c.b16 %v3096, %v3095
      %v3104 = vpack.c.b16 %v3098, %v3097
      %v3105 = vpack.c.b16 %v3100, %v3099
      %v3106 = vpack.c.b16 %v3102, %v3101
      %v3112 = vsel %vm1841, %v3069, 0
      %3114 = vmatprep.subr.bf16.mxu0 0
      %3115 = vmatpush1.bf16.msra.mxu0 0
      %3116 = vmatprep.subr.bf16.mxu0 0
      %3117 = vmatpush1.bf16.msra.mxu0 0
      %3118 = vmatprep.subr.bf16.mxu0 0
      %3119 = vmatpush1.bf16.msra.mxu0 0
      %3120 = vmatprep.subr.bf16.mxu0 0
      %3121 = vmatpush1.bf16.msra.mxu0 0
      %3122 = vmatprep.subr.bf16.mxu0 0
      %3123 = vmatpush1.bf16.msra.mxu0 %v3106
      %3124 = vmatprep.subr.bf16.mxu0 0
      %3125 = vmatpush1.bf16.msra.mxu0 %v3105
      %3126 = vmatprep.subr.bf16.mxu0 0
      %3127 = vmatpush1.bf16.msra.mxu0 %v3104
      %3128 = vmatprep.subr.bf16.mxu0 0
      %3129 = vmatpush1.bf16.msra.mxu0 %v3103
      %3130 = vmatprep.subr.bf16.mxu0 0
      %3131 = vmatpush2.bf16.msra.mxu0 0
      %3132 = vmatprep.subr.bf16.mxu0 0
      %3133 = vmatpush2.bf16.msra.mxu0 0
      %3134 = vmatprep.subr.bf16.mxu0 0
      %3135 = vmatpush2.bf16.msra.mxu0 0
      %3136 = vmatprep.subr.bf16.mxu0 0
      %3137 = vmatpush2.bf16.msra.mxu0 0
      %3138 = vmatprep.subr.bf16.mxu0 0
      %3139 = vmatpush2.bf16.msra.mxu0 0
      %3140 = vmatprep.subr.bf16.mxu0 0
      %3141 = vmatpush2.bf16.msra.mxu0 0
      %3142 = vmatprep.subr.bf16.mxu0 0
      %3143 = vmatpush2.bf16.msra.mxu0 0
      %3144 = vmatprep.subr.bf16.mxu0 0
      %3145 = vmatpush2.bf16.msra.mxu0 0
      %3146 = vmatprep.mubr.bf16.mxu0 0
      %3147 = vmatmul.mubr.bf16.gmra.mxu0 %v3112
      %v3148 = vpop.f32.mrf.mxu0
      %v3149 = vadd.f32 %v3085, %v3148
      %v3150 = vpop.f32.mrf.mxu0
      %v3151 = vpop.f32.mrf.mxu0
      %v3152 = vpop.f32.mrf.mxu0
      %3153 = vdwg.mxu0
      %v3154 = vadd.f32 %v3149, %v2990
      %s3155 = scalar_lea.vmem %s14, 1
      %v3156 = vld [vmem:[%s3155] sm:$0x1]
      %s3157 = scalar_lea.vmem %s15, 1
      %v3158 = vld [vmem:[%s3157] sm:$0x1]
      %v3159 = vsel %vm616, %v3154, 0.0
      %3160 = vadd.xlane.f32.xlu0 %v3159
      %v3161 = vpop.xlane.xlu0 %3160
      %v3162 = vmul.f32 %v3161, %v620
      %v3163 = vsub.f32 %v3154, %v3162
      %v3164 = vmul.f32 %v3163, %v3163
      %v3165 = vsel %vm616, %v3164, 0.0
      %3166 = vadd.xlane.f32.xlu0 %v3165
      %v3167 = vpop.xlane.xlu0 %3166
      %v3168 = vmul.f32 %v3167, %v620
      %v3169 = vadd.f32 %v3168, 1e-12
      %v3170 = vrsqrt.pop %v3169
      %v3171 = vmul.f32 %v3163, %v3170
      %v3173 = vlaneseq
      %v3174 = vshrl.u32 %v3173, 7
      %v3175 = vsub.s32 0, %v3174
      %v3176 = vrot.slane %v3156, %v3175
      %v3178 = vmul.f32 %v3171, %v3176
      %v3180 = vlaneseq
      %v3181 = vshrl.u32 %v3180, 7
      %v3182 = vsub.s32 0, %v3181
      %v3183 = vrot.slane %v3158, %v3182
      %v3185 = vadd.f32 %v3178, %v3183
      %v3186 = vsel %vm616, %v3185, 0.0
      %v3187 = vrot.slane %v3186, 4
      %v3188 = vadd.f32 %v3186, %v3187
      %v3189 = vrot.slane %v3188, 2
      %v3190 = vadd.f32 %v3188, %v3189
      %v3191 = vrot.slane %v3190, 1
      %v3192 = vadd.f32 %v3190, %v3191
      %v3193 = vrcp.pop 8.0
      %v3194 = vmul.f32 %v3192, %v3193
      %v3195 = vsel %vm616, %v3185, -inf
      %v3196 = vrot.slane %v3195, 4
      %v3197 = vmax.f32 %v3195, %v3196
      %v3198 = vrot.slane %v3197, 2
      %v3199 = vmax.f32 %v3197, %v3198
      %v3200 = vrot.slane %v3199, 1
      %v3201 = vmax.f32 %v3199, %v3200
      %v3202 = vld [vmem:[%s16] sm:$0xff]
      %v3203 = vld [vmem:[%s16 + $0x8] sm:$0xff]
      %v3204 = vld [vmem:[%s16 + $0x10] sm:$0xff]
      %v3205 = vld [vmem:[%s16 + $0x18] sm:$0xff]
      %v3206 = vld [vmem:[%s17] sm:$0xff]
      %v3207 = vld [vmem:[%s17 + $0x8] sm:$0xff]
      %v3208 = vld [vmem:[%s17 + $0x10] sm:$0xff]
      %v3209 = vld [vmem:[%s17 + $0x18] sm:$0xff]
      %v3211 = vsel %vm616, %v3201, 0
      %3213 = vmatprep.subr.mxu0 0.0
      %3214 = vmatpush1.msra.mxu0 0.0
      %3215 = vmatprep.subr.mxu0 0.0
      %3216 = vmatpush1.msra.mxu0 0.0
      %3217 = vmatprep.subr.mxu0 0.0
      %3218 = vmatpush1.msra.mxu0 0.0
      %3219 = vmatprep.subr.mxu0 0.0
      %3220 = vmatpush1.msra.mxu0 0.0
      %3221 = vmatprep.subr.mxu0 0.0
      %3222 = vmatpush1.msra.mxu0 0.0
      %3223 = vmatprep.subr.mxu0 0.0
      %3224 = vmatpush1.msra.mxu0 0.0
      %3225 = vmatprep.subr.mxu0 0.0
      %3226 = vmatpush1.msra.mxu0 0.0
      %3227 = vmatprep.subr.mxu0 0.0
      %3228 = vmatpush1.msra.mxu0 0.0
      %3229 = vmatprep.subr.mxu0 0.0
      %3230 = vmatpush1.msra.mxu0 0.0
      %3231 = vmatprep.subr.mxu0 0.0
      %3232 = vmatpush1.msra.mxu0 0.0
      %3233 = vmatprep.subr.mxu0 0.0
      %3234 = vmatpush1.msra.mxu0 0.0
      %3235 = vmatprep.subr.mxu0 0.0
      %3236 = vmatpush1.msra.mxu0 0.0
      %3237 = vmatprep.subr.mxu0 0.0
      %3238 = vmatpush1.msra.mxu0 %v3209
      %3239 = vmatprep.subr.mxu0 0.0
      %3240 = vmatpush1.msra.mxu0 %v3208
      %3241 = vmatprep.subr.mxu0 0.0
      %3242 = vmatpush1.msra.mxu0 %v3207
      %3243 = vmatprep.subr.mxu0 0.0
      %3244 = vmatpush1.msra.mxu0 %v3206
      %3245 = vmatprep.subr.mxu0 0.0
      %3246 = vmatpush2.msra.mxu0 0.0
      %3247 = vmatprep.subr.mxu0 0.0
      %3248 = vmatpush2.msra.mxu0 0.0
      %3249 = vmatprep.subr.mxu0 0.0
      %3250 = vmatpush2.msra.mxu0 0.0
      %3251 = vmatprep.subr.mxu0 0.0
      %3252 = vmatpush2.msra.mxu0 0.0
      %3253 = vmatprep.subr.mxu0 0.0
      %3254 = vmatpush2.msra.mxu0 0.0
      %3255 = vmatprep.subr.mxu0 0.0
      %3256 = vmatpush2.msra.mxu0 0.0
      %3257 = vmatprep.subr.mxu0 0.0
      %3258 = vmatpush2.msra.mxu0 0.0
      %3259 = vmatprep.subr.mxu0 0.0
      %3260 = vmatpush2.msra.mxu0 0.0
      %3261 = vmatprep.subr.mxu0 0.0
      %3262 = vmatpush2.msra.mxu0 0.0
      %3263 = vmatprep.subr.mxu0 0.0
      %3264 = vmatpush2.msra.mxu0 0.0
      %3265 = vmatprep.subr.mxu0 0.0
      %3266 = vmatpush2.msra.mxu0 0.0
      %3267 = vmatprep.subr.mxu0 0.0
      %3268 = vmatpush2.msra.mxu0 0.0
      %3269 = vmatprep.subr.mxu0 0.0
      %3270 = vmatpush2.msra.mxu0 0.0
      %3271 = vmatprep.subr.mxu0 0.0
      %3272 = vmatpush2.msra.mxu0 0.0
      %3273 = vmatprep.subr.mxu0 0.0
      %3274 = vmatpush2.msra.mxu0 0.0
      %3275 = vmatprep.subr.mxu0 0.0
      %3276 = vmatpush2.msra.mxu0 0.0
      %3277 = vmatprep.mubr.f32.mxu0 0.0
      %3278 = vmatmul.mubr.f32.gmra.mxu0 %v3211
      %v3279 = vpop.f32.mrf.mxu0
      %v3280 = vadd.f32 0.0, %v3279
      %v3281 = vpop.f32.mrf.mxu0
      %3282 = vdwg.mxu0
      %v3284 = vsel %vm616, %v3194, 0
      %3286 = vmatprep.subr.mxu0 0.0
      %3287 = vmatpush1.msra.mxu0 0.0
      %3288 = vmatprep.subr.mxu0 0.0
      %3289 = vmatpush1.msra.mxu0 0.0
      %3290 = vmatprep.subr.mxu0 0.0
      %3291 = vmatpush1.msra.mxu0 0.0
      %3292 = vmatprep.subr.mxu0 0.0
      %3293 = vmatpush1.msra.mxu0 0.0
      %3294 = vmatprep.subr.mxu0 0.0
      %3295 = vmatpush1.msra.mxu0 0.0
      %3296 = vmatprep.subr.mxu0 0.0
      %3297 = vmatpush1.msra.mxu0 0.0
      %3298 = vmatprep.subr.mxu0 0.0
      %3299 = vmatpush1.msra.mxu0 0.0
      %3300 = vmatprep.subr.mxu0 0.0
      %3301 = vmatpush1.msra.mxu0 0.0
      %3302 = vmatprep.subr.mxu0 0.0
      %3303 = vmatpush1.msra.mxu0 0.0
      %3304 = vmatprep.subr.mxu0 0.0
      %3305 = vmatpush1.msra.mxu0 0.0
      %3306 = vmatprep.subr.mxu0 0.0
      %3307 = vmatpush1.msra.mxu0 0.0
      %3308 = vmatprep.subr.mxu0 0.0
      %3309 = vmatpush1.msra.mxu0 0.0
      %3310 = vmatprep.subr.mxu0 0.0
      %3311 = vmatpush1.msra.mxu0 %v3205
      %3312 = vmatprep.subr.mxu0 0.0
      %3313 = vmatpush1.msra.mxu0 %v3204
      %3314 = vmatprep.subr.mxu0 0.0
      %3315 = vmatpush1.msra.mxu0 %v3203
      %3316 = vmatprep.subr.mxu0 0.0
      %3317 = vmatpush1.msra.mxu0 %v3202
      %3318 = vmatprep.subr.mxu0 0.0
      %3319 = vmatpush2.msra.mxu0 0.0
      %3320 = vmatprep.subr.mxu0 0.0
      %3321 = vmatpush2.msra.mxu0 0.0
      %3322 = vmatprep.subr.mxu0 0.0
      %3323 = vmatpush2.msra.mxu0 0.0
      %3324 = vmatprep.subr.mxu0 0.0
      %3325 = vmatpush2.msra.mxu0 0.0
      %3326 = vmatprep.subr.mxu0 0.0
      %3327 = vmatpush2.msra.mxu0 0.0
      %3328 = vmatprep.subr.mxu0 0.0
      %3329 = vmatpush2.msra.mxu0 0.0
      %3330 = vmatprep.subr.mxu0 0.0
      %3331 = vmatpush2.msra.mxu0 0.0
      %3332 = vmatprep.subr.mxu0 0.0
      %3333 = vmatpush2.msra.mxu0 0.0
      %3334 = vmatprep.subr.mxu0 0.0
      %3335 = vmatpush2.msra.mxu0 0.0
      %3336 = vmatprep.subr.mxu0 0.0
      %3337 = vmatpush2.msra.mxu0 0.0
      %3338 = vmatprep.subr.mxu0 0.0
      %3339 = vmatpush2.msra.mxu0 0.0
      %3340 = vmatprep.subr.mxu0 0.0
      %3341 = vmatpush2.msra.mxu0 0.0
      %3342 = vmatprep.subr.mxu0 0.0
      %3343 = vmatpush2.msra.mxu0 0.0
      %3344 = vmatprep.subr.mxu0 0.0
      %3345 = vmatpush2.msra.mxu0 0.0
      %3346 = vmatprep.subr.mxu0 0.0
      %3347 = vmatpush2.msra.mxu0 0.0
      %3348 = vmatprep.subr.mxu0 0.0
      %3349 = vmatpush2.msra.mxu0 0.0
      %3350 = vmatprep.mubr.f32.mxu0 0.0
      %3351 = vmatmul.mubr.f32.gmra.mxu0 %v3284
      %v3352 = vpop.f32.mrf.mxu0
      %v3353 = vadd.f32 %v3280, %v3352
      %v3354 = vpop.f32.mrf.mxu0
      %3355 = vdwg.mxu0
      %v3356 = vld [vmem:[#allocation2] sm:$0x1]
      %v3357 = vadd.f32 %v3353, %v3356
      %vm3358 = vcmask 0
      %3359 = vst.msk [vmem:[%s611] sm:$0x1] %vm3358, %v3357
      %p3360 = scmp.lt.s32.totalorder %s32, 1
      %s3361 = scalar_select %p3360, %s32, 1
      %s3362 = scalar_lea.vmem %s19, %s3361
      // Predicated region
      $region97: #{bert_base_uncased_forward.1} parent=95 // pred_check
        %p3363 = pneg %p459
      $region98: #{bert_base_uncased_forward.1} parent=95 // pred_check_branch
        %3365 = sbr.rel (%p3363) target = $region100
      $region99: #{bert_base_uncased_forward.1} parent=95 // pred_region
        _
      $region100: #{bert_base_uncased_forward.1} parent=95 // pred_fallthru
        _
    $region96: #{bert_base_uncased_forward.1} parent=5 // pred_fallthru
      _
    %p3366 = scmp.le.s32.totalorder 2, %s27
    // Predicated region
    $region101: #{bert_base_uncased_forward.1} parent=5 // pred_check
      %p3367 = pneg %p3366
    $region102: #{bert_base_uncased_forward.1} parent=5 // pred_check_branch
      %3369 = sbr.rel (%p3367) target = $region104
    $region103: #{bert_base_uncased_forward.1} parent=5 // pred_region
      %s3370 = ssub.s32 %s27, 2
      // Predicated region
      $region105: #{bert_base_uncased_forward.1} parent=103 // pred_check
        %p3371 = pneg %p465
      $region106: #{bert_base_uncased_forward.1} parent=103 // pred_check_branch
        %3373 = sbr.rel (%p3371) target = $region108
      $region107: #{bert_base_uncased_forward.1} parent=103 // pred_region
        %p3374 = scmp.lt.s32.totalorder %s33, 1
        %s3375 = scalar_select %p3374, %s33, 1
        %s3376 = scalar_lea.vmem %s19, %s3375
      $region108: #{bert_base_uncased_forward.1} parent=103 // pred_fallthru
        _
    $region104: #{bert_base_uncased_forward.1} parent=5 // pred_fallthru
      _
  $region6: #{bert_base_uncased_forward.1} parent=0 // loop_footer
    %s31 = sadd.s32 1, %s27
  $region7: #{bert_base_uncased_forward.1} parent=0 // loop_footer_branch
    %26 = sbr.rel target = $region3
  $region8: #{bert_base_uncased_forward.1} parent=0 // loop_exit
    _

</llo_original>
